<compile_context>
chip_gen: v5e
topology: v5e:2x2
jax: 0.10.0
libtpu: 0.0.40
codegen_flags: <defaults>
</compile_context>

<pallas_src>
import jax
import jax.numpy as jnp
from jax.experimental import pallas as pl
from jax.experimental.pallas import tpu as pltpu


EMB_DIM = 384
H1, H2, H3 = 512, 256, 128


def _mlp_kernel(k_ref, a_ref,
                w1_ref, b1_ref,
                w2_ref, b2_ref,
                w3_ref, b3_ref,
                w4_ref, b4_ref,
                o_ref, xcat_ref):
    dot_dtype = w1_ref.dtype

    # Fused dim=1 concat: cast the f32 activation blocks to the MXU dtype here (no
    # separate wrapper-side cast pass) and pack them into one VMEM scratch so layer 1
    # is a single K=768 MXU pass.
    xcat_ref[:, :EMB_DIM] = k_ref[...].astype(dot_dtype)
    xcat_ref[:, EMB_DIM:] = a_ref[...].astype(dot_dtype)

    # Layer 1: Linear(768->512) + ReLU   (Dropout = identity at inference)
    h1 = jnp.dot(xcat_ref[...], w1_ref[...],
                 preferred_element_type=jnp.float32) + b1_ref[...]
    h1 = jnp.maximum(h1, 0.0).astype(dot_dtype)

    # Layer 2: Linear(512->256) + ReLU   (Dropout = identity at inference)
    h2 = jnp.dot(h1, w2_ref[...], preferred_element_type=jnp.float32) + b2_ref[...]
    h2 = jnp.maximum(h2, 0.0).astype(dot_dtype)

    # Layer 3: Linear(256->128) + ReLU
    h3 = jnp.dot(h2, w3_ref[...], preferred_element_type=jnp.float32) + b3_ref[...]
    h3 = jnp.maximum(h3, 0.0)

    # Layer 4: Linear(128->1) + Sigmoid as a VPU multiply + lane (XLU) reduce; a
    # (tile_b,128)x(128,1) MXU pass would waste the systolic array.
    logits = jnp.sum(h3 * w4_ref[...], axis=-1, keepdims=True) + b4_ref[...]

    # Rows beyond the true batch (partial last tile) carry garbage but stay confined to
    # their own rows through every layer; the out-of-bounds part of this store is
    # dropped by Pallas, so they never reach HBM.
    o_ref[...] = jax.nn.sigmoid(logits)


def prepare_params(params, *, dot_dtype=jnp.bfloat16):
    """One-time weight prep, hoisted out of the forward path.

    params: dict with w1..w4 stored [in, out] and b1..b4 stored [1, out] (float32).
    """
    return {
        "w1": params["w1"].astype(dot_dtype),                    # (768, 512)
        "w2": params["w2"].astype(dot_dtype),                    # (512, 256)
        "w3": params["w3"].astype(dot_dtype),                    # (256, 128)
        "w4": params["w4"].reshape(1, H3).astype(jnp.float32),   # (1, 128)  VPU path, f32
        "b1": params["b1"].reshape(1, H1).astype(jnp.float32),   # (1, H) rows: sublane bcast
        "b2": params["b2"].reshape(1, H2).astype(jnp.float32),
        "b3": params["b3"].reshape(1, H3).astype(jnp.float32),
        "b4": params["b4"].reshape(1, 1).astype(jnp.float32),
    }


def recommendation_mlp(keyphrase_emb, anime_emb, prepared, *,
                       tile_b=2048, vmem_limit_bytes=48 << 20):
    """Fused MLP forward pass.

    keyphrase_emb, anime_emb: (B, 384) float32, passed straight through (no wrapper-side
        transpose / cast / pad passes; the bf16 cast happens inside the kernel).
    prepared: output of prepare_params().
    Returns (B, 1) float32 in (0, 1).
    """
    B = keyphrase_emb.shape[0]
    assert keyphrase_emb.shape == (B, EMB_DIM) and anime_emb.shape == (B, EMB_DIM)

    # Clamp the batch tile to the 128-rounded batch so tiny batches don't waste VMEM;
    # keep it a multiple of 128 for MXU-friendly M tiles.  Partial edge blocks are
    # handled by Pallas (OOB reads are undefined but row-confined, OOB writes dropped).
    tile_b = min(tile_b, pl.cdiv(B, 128) * 128)
    assert tile_b % 128 == 0, "tile_b must be a multiple of 128"
    num_tiles = pl.cdiv(B, tile_b)

    dot_dtype = prepared["w1"].dtype

    # Streamed activations: the batch tile advances along the sublane axis each step.
    act_spec = pl.BlockSpec((tile_b, EMB_DIM), lambda i: (i, 0))

    # Weights/biases: constant block index -> DMA'd once, VMEM-resident across steps.
    # TODO(synk): on v7x, pipeline_mode=pl.Buffered(1) on these resident blocks would
    # skip double-buffering them and save ~2 MiB of the 64 MiB VMEM.
    def resident_spec(arr):
        return pl.BlockSpec(arr.shape, lambda i: (0, 0))

    in_specs = [
        act_spec, act_spec,
        resident_spec(prepared["w1"]), resident_spec(prepared["b1"]),
        resident_spec(prepared["w2"]), resident_spec(prepared["b2"]),
        resident_spec(prepared["w3"]), resident_spec(prepared["b3"]),
        resident_spec(prepared["w4"]), resident_spec(prepared["b4"]),
    ]
    out_spec = pl.BlockSpec((tile_b, 1), lambda i: (i, 0))

    elem = jnp.dtype(dot_dtype).itemsize
    w_bytes = sum(prepared[k].size for k in ("w1", "w2", "w3")) * elem
    flops = 2 * B * (2 * EMB_DIM * H1 + H1 * H2 + H2 * H3 + H3)
    bytes_accessed = (2 * B * EMB_DIM * 4 + w_bytes
                      + (prepared["w4"].size + H1 + H2 + H3 + 1 + B) * 4)
    cost = pl.CostEstimate(flops=flops, transcendentals=B,
                           bytes_accessed=bytes_accessed)

    return pl.pallas_call(
        _mlp_kernel,
        out_shape=jax.ShapeDtypeStruct((B, 1), jnp.float32),
        grid_spec=pltpu.PrefetchScalarGridSpec(
            num_scalar_prefetch=0,
            grid=(num_tiles,),
            in_specs=in_specs,
            out_specs=out_spec,
            scratch_shapes=[pltpu.VMEM((tile_b, 2 * EMB_DIM), dot_dtype)],
        ),
        compiler_params=pltpu.CompilerParams(
            # Shard batch tiles across TensorCores on v7x (helps when num_tiles >= 2).
            dimension_semantics=("parallel",),
            # 48 MiB fits v7x's 64 MiB physical VMEM at tile_b=2048; raise toward
            # ~96 MiB on v5e/v6e (128 MiB physical) if using tile_b=4096.
            vmem_limit_bytes=vmem_limit_bytes,
        ),
        cost_estimate=cost,
    )(keyphrase_emb, anime_emb,
      prepared["w1"], prepared["b1"],
      prepared["w2"], prepared["b2"],
      prepared["w3"], prepared["b3"],
      prepared["w4"], prepared["b4"])


def init_params(key):
    """Deterministic init mimicking torch.nn.Linear default (U[-1/sqrt(fan_in), 1/sqrt(fan_in)])."""
    dims = [(2 * EMB_DIM, H1), (H1, H2), (H2, H3), (H3, 1)]
    params = {}
    for idx, (fan_in, fan_out) in enumerate(dims, start=1):
        key, kw, kb = jax.random.split(key, 3)
        bound = 1.0 / jnp.sqrt(jnp.float32(fan_in))
        params[f"w{idx}"] = jax.random.uniform(
            kw, (fan_in, fan_out), jnp.float32, minval=-bound, maxval=bound)
        params[f"b{idx}"] = jax.random.uniform(
            kb, (1, fan_out), jnp.float32, minval=-bound, maxval=bound)
    return params


def reference_forward(keyphrase_emb, anime_emb, params):
    x = jnp.concatenate([keyphrase_emb, anime_emb], axis=1)
    h = jnp.maximum(x @ params["w1"] + params["b1"], 0.0)
    h = jnp.maximum(h @ params["w2"] + params["b2"], 0.0)
    h = jnp.maximum(h @ params["w3"] + params["b3"], 0.0)
    return jax.nn.sigmoid(h @ params["w4"] + params["b4"])


if __name__ == "__main__":
    key = jax.random.PRNGKey(0)
    key, k_kp, k_an = jax.random.split(key, 3)

    # Small test: B=200 with tile_b=128 exercises a multi-tile grid plus a partial
    # (masked) last block -- with no wrapper-side padding, casting or slicing passes.
    B = 200
    keyphrase_emb = jax.random.normal(k_kp, (B, EMB_DIM), jnp.float32)
    anime_emb = jax.random.normal(k_an, (B, EMB_DIM), jnp.float32)

    params = init_params(key)
    prepared = prepare_params(params)     # one-time weight prep, hoisted out of forward

    out = recommendation_mlp(keyphrase_emb, anime_emb, prepared, tile_b=128)
    out = jax.block_until_ready(out)

    ref = reference_forward(keyphrase_emb, anime_emb, params)
    assert out.shape == (B, 1)
    # bf16 MXU operands with f32 accumulation: allow small drift vs the f32 reference.
    assert jnp.max(jnp.abs(out - ref)) < 2e-2, "mismatch vs JAX reference"

    print("KERNEL_OK")
</pallas_src>

<mosaic_0001>
module attributes {stable_mosaic.version = 11 : i64} {
  func.func @_mlp_kernel(%arg0: i32, %arg1: memref<128x384xf32, #tpu.memory_space<vmem>>, %arg2: memref<128x384xf32, #tpu.memory_space<vmem>>, %arg3: memref<768x512xbf16, #tpu.memory_space<vmem>>, %arg4: memref<1x512xf32, #tpu.memory_space<vmem>>, %arg5: memref<512x256xbf16, #tpu.memory_space<vmem>>, %arg6: memref<1x256xf32, #tpu.memory_space<vmem>>, %arg7: memref<256x128xbf16, #tpu.memory_space<vmem>>, %arg8: memref<1x128xf32, #tpu.memory_space<vmem>>, %arg9: memref<1x128xf32, #tpu.memory_space<vmem>>, %arg10: memref<1x1xf32, #tpu.memory_space<vmem>>, %arg11: memref<128x1xf32, #tpu.memory_space<vmem>>, %arg12: memref<128x768xbf16, #tpu.memory_space<vmem>>) attributes {dimension_semantics = [#tpu.dimension_semantics<parallel>], iteration_bounds = array<i64: 2>, scalar_prefetch = 0 : i64, scratch_operands = 1 : i64, tpu.core_type = #tpu.core_type<tc>, window_params = [{transform_indices = @transform_0, window_bounds = array<i64: 128, 384>}, {transform_indices = @transform_1, window_bounds = array<i64: 128, 384>}, {pipeline_mode = #tpu.pipeline_mode<synchronous>, transform_indices = @transform_2, window_bounds = array<i64: 768, 512>}, {pipeline_mode = #tpu.pipeline_mode<synchronous>, transform_indices = @transform_3, window_bounds = array<i64: 1, 512>}, {pipeline_mode = #tpu.pipeline_mode<synchronous>, transform_indices = @transform_4, window_bounds = array<i64: 512, 256>}, {pipeline_mode = #tpu.pipeline_mode<synchronous>, transform_indices = @transform_5, window_bounds = array<i64: 1, 256>}, {pipeline_mode = #tpu.pipeline_mode<synchronous>, transform_indices = @transform_6, window_bounds = array<i64: 256, 128>}, {pipeline_mode = #tpu.pipeline_mode<synchronous>, transform_indices = @transform_7, window_bounds = array<i64: 1, 128>}, {pipeline_mode = #tpu.pipeline_mode<synchronous>, transform_indices = @transform_8, window_bounds = array<i64: 1, 128>}, {pipeline_mode = #tpu.pipeline_mode<synchronous>, transform_indices = @transform_9, window_bounds = array<i64: 1, 1>}, {transform_indices = @transform_10, window_bounds = array<i64: 128, 1>}]} {
    %c0 = arith.constant 0 : index
    %c0_0 = arith.constant 0 : index
    %0 = vector.load %arg1[%c0, %c0_0] : memref<128x384xf32, #tpu.memory_space<vmem>>, vector<128x384xf32>
    %1 = arith.truncf %0 : vector<128x384xf32> to vector<128x384xbf16>
    %c0_1 = arith.constant 0 : index
    %c0_2 = arith.constant 0 : index
    %2 = vector.load %arg12[%c0_1, %c0_2] : memref<128x768xbf16, #tpu.memory_space<vmem>>, vector<128x384xbf16>
    tpu.vector_store %arg12[%c0_1, %c0_2], %1 {strides = array<i32>} : memref<128x768xbf16, #tpu.memory_space<vmem>>, vector<128x384xbf16>,
    %c0_3 = arith.constant 0 : index
    %c0_4 = arith.constant 0 : index
    %3 = vector.load %arg2[%c0_3, %c0_4] : memref<128x384xf32, #tpu.memory_space<vmem>>, vector<128x384xf32>
    %4 = arith.truncf %3 : vector<128x384xf32> to vector<128x384xbf16>
    %c0_5 = arith.constant 0 : index
    %c384 = arith.constant 384 : index
    %5 = vector.load %arg12[%c0_5, %c384] : memref<128x768xbf16, #tpu.memory_space<vmem>>, vector<128x384xbf16>
    tpu.vector_store %arg12[%c0_5, %c384], %4 {strides = array<i32>} : memref<128x768xbf16, #tpu.memory_space<vmem>>, vector<128x384xbf16>,
    %c0_6 = arith.constant 0 : index
    %c0_7 = arith.constant 0 : index
    %6 = vector.load %arg12[%c0_6, %c0_7] : memref<128x768xbf16, #tpu.memory_space<vmem>>, vector<128x768xbf16>
    %c0_8 = arith.constant 0 : index
    %c0_9 = arith.constant 0 : index
    %7 = vector.load %arg3[%c0_8, %c0_9] : memref<768x512xbf16, #tpu.memory_space<vmem>>, vector<768x512xbf16>
    %cst = arith.constant dense<0.000000e+00> : vector<128x512xf32>
    %8 = tpu.matmul %6, %7, %cst {dimension_numbers = #tpu.dot_dimension_numbers<[1], [0], [0], [1], [0, 0, 1, 1], [], []>} : vector<128x768xbf16>, vector<768x512xbf16>, vector<128x512xf32> -> vector<128x512xf32>
    %c0_10 = arith.constant 0 : index
    %c0_11 = arith.constant 0 : index
    %9 = vector.load %arg4[%c0_10, %c0_11] : memref<1x512xf32, #tpu.memory_space<vmem>>, vector<1x512xf32>
    %10 = vector.broadcast %9 : vector<1x512xf32> to vector<128x512xf32>
    %11 = arith.addf %8, %10 : vector<128x512xf32>
    %cst_12 = arith.constant 0.000000e+00 : f32
    %12 = vector.broadcast %cst_12 : f32 to vector<128x512xf32>
    %13 = arith.maximumf %11, %12 : vector<128x512xf32>
    %14 = arith.truncf %13 : vector<128x512xf32> to vector<128x512xbf16>
    %c0_13 = arith.constant 0 : index
    %c0_14 = arith.constant 0 : index
    %15 = vector.load %arg5[%c0_13, %c0_14] : memref<512x256xbf16, #tpu.memory_space<vmem>>, vector<512x256xbf16>
    %cst_15 = arith.constant dense<0.000000e+00> : vector<128x256xf32>
    %16 = tpu.matmul %14, %15, %cst_15 {dimension_numbers = #tpu.dot_dimension_numbers<[1], [0], [0], [1], [0, 0, 1, 1], [], []>} : vector<128x512xbf16>, vector<512x256xbf16>, vector<128x256xf32> -> vector<128x256xf32>
    %c0_16 = arith.constant 0 : index
    %c0_17 = arith.constant 0 : index
    %17 = vector.load %arg6[%c0_16, %c0_17] : memref<1x256xf32, #tpu.memory_space<vmem>>, vector<1x256xf32>
    %18 = vector.broadcast %17 : vector<1x256xf32> to vector<128x256xf32>
    %19 = arith.addf %16, %18 : vector<128x256xf32>
    %cst_18 = arith.constant 0.000000e+00 : f32
    %20 = vector.broadcast %cst_18 : f32 to vector<128x256xf32>
    %21 = arith.maximumf %19, %20 : vector<128x256xf32>
    %22 = arith.truncf %21 : vector<128x256xf32> to vector<128x256xbf16>
    %c0_19 = arith.constant 0 : index
    %c0_20 = arith.constant 0 : index
    %23 = vector.load %arg7[%c0_19, %c0_20] : memref<256x128xbf16, #tpu.memory_space<vmem>>, vector<256x128xbf16>
    %cst_21 = arith.constant dense<0.000000e+00> : vector<128x128xf32>
    %24 = tpu.matmul %22, %23, %cst_21 {dimension_numbers = #tpu.dot_dimension_numbers<[1], [0], [0], [1], [0, 0, 1, 1], [], []>} : vector<128x256xbf16>, vector<256x128xbf16>, vector<128x128xf32> -> vector<128x128xf32>
    %c0_22 = arith.constant 0 : index
    %c0_23 = arith.constant 0 : index
    %25 = vector.load %arg8[%c0_22, %c0_23] : memref<1x128xf32, #tpu.memory_space<vmem>>, vector<1x128xf32>
    %26 = vector.broadcast %25 : vector<1x128xf32> to vector<128x128xf32>
    %27 = arith.addf %24, %26 : vector<128x128xf32>
    %cst_24 = arith.constant 0.000000e+00 : f32
    %28 = vector.broadcast %cst_24 : f32 to vector<128x128xf32>
    %29 = arith.maximumf %27, %28 : vector<128x128xf32>
    %c0_25 = arith.constant 0 : index
    %c0_26 = arith.constant 0 : index
    %30 = vector.load %arg9[%c0_25, %c0_26] : memref<1x128xf32, #tpu.memory_space<vmem>>, vector<1x128xf32>
    %31 = vector.broadcast %30 : vector<1x128xf32> to vector<128x128xf32>
    %32 = arith.mulf %29, %31 : vector<128x128xf32>
    %cst_27 = arith.constant dense<0.000000e+00> : vector<128xf32>
    %33 = vector.multi_reduction <add>, %32, %cst_27 [1] : vector<128x128xf32> to vector<128xf32>
    %34 = vector.shape_cast %33 : vector<128xf32> to vector<128x1xf32>
    %c0_28 = arith.constant 0 : index
    %c0_29 = arith.constant 0 : index
    %35 = vector.load %arg10[%c0_28, %c0_29] : memref<1x1xf32, #tpu.memory_space<vmem>>, vector<1x1xf32>
    %36 = vector.broadcast %35 : vector<1x1xf32> to vector<128x1xf32>
    %37 = arith.addf %34, %36 : vector<128x1xf32>
    %38 = arith.negf %37 : vector<128x1xf32>
    %39 = math.exp %38 : vector<128x1xf32>
    %cst_30 = arith.constant 1.000000e+00 : f32
    %40 = vector.broadcast %cst_30 : f32 to vector<128x1xf32>
    %41 = arith.addf %40, %39 : vector<128x1xf32>
    %42 = arith.divf %40, %41 : vector<128x1xf32>
    %c0_31 = arith.constant 0 : index
    %c0_32 = arith.constant 0 : index
    %43 = vector.load %arg11[%c0_31, %c0_32] : memref<128x1xf32, #tpu.memory_space<vmem>>, vector<128x1xf32>
    tpu.vector_store %arg11[%c0_31, %c0_32], %42 {strides = array<i32>} : memref<128x1xf32, #tpu.memory_space<vmem>>, vector<128x1xf32>,
    return
  }
  func.func @transform_0(%arg0: i32) -> (i32, i32) {
    %c0_i32 = arith.constant 0 : i32
    %c0_i32_0 = arith.constant 0 : i32
    return %arg0, %c0_i32 : i32, i32
  }
  func.func @transform_1(%arg0: i32) -> (i32, i32) {
    %c0_i32 = arith.constant 0 : i32
    %c0_i32_0 = arith.constant 0 : i32
    return %arg0, %c0_i32 : i32, i32
  }
  func.func @transform_2(%arg0: i32) -> (i32, i32) {
    %c0_i32 = arith.constant 0 : i32
    %c0_i32_0 = arith.constant 0 : i32
    %c0_i32_1 = arith.constant 0 : i32
    return %c0_i32, %c0_i32_0 : i32, i32
  }
  func.func @transform_3(%arg0: i32) -> (i32, i32) {
    %c0_i32 = arith.constant 0 : i32
    %c0_i32_0 = arith.constant 0 : i32
    %c0_i32_1 = arith.constant 0 : i32
    return %c0_i32, %c0_i32_0 : i32, i32
  }
  func.func @transform_4(%arg0: i32) -> (i32, i32) {
    %c0_i32 = arith.constant 0 : i32
    %c0_i32_0 = arith.constant 0 : i32
    %c0_i32_1 = arith.constant 0 : i32
    return %c0_i32, %c0_i32_0 : i32, i32
  }
  func.func @transform_5(%arg0: i32) -> (i32, i32) {
    %c0_i32 = arith.constant 0 : i32
    %c0_i32_0 = arith.constant 0 : i32
    %c0_i32_1 = arith.constant 0 : i32
    return %c0_i32, %c0_i32_0 : i32, i32
  }
  func.func @transform_6(%arg0: i32) -> (i32, i32) {
    %c0_i32 = arith.constant 0 : i32
    %c0_i32_0 = arith.constant 0 : i32
    %c0_i32_1 = arith.constant 0 : i32
    return %c0_i32, %c0_i32_0 : i32, i32
  }
  func.func @transform_7(%arg0: i32) -> (i32, i32) {
    %c0_i32 = arith.constant 0 : i32
    %c0_i32_0 = arith.constant 0 : i32
    %c0_i32_1 = arith.constant 0 : i32
    return %c0_i32, %c0_i32_0 : i32, i32
  }
  func.func @transform_8(%arg0: i32) -> (i32, i32) {
    %c0_i32 = arith.constant 0 : i32
    %c0_i32_0 = arith.constant 0 : i32
    %c0_i32_1 = arith.constant 0 : i32
    return %c0_i32, %c0_i32_0 : i32, i32
  }
  func.func @transform_9(%arg0: i32) -> (i32, i32) {
    %c0_i32 = arith.constant 0 : i32
    %c0_i32_0 = arith.constant 0 : i32
    %c0_i32_1 = arith.constant 0 : i32
    return %c0_i32, %c0_i32_0 : i32, i32
  }
  func.func @transform_10(%arg0: i32) -> (i32, i32) {
    %c0_i32 = arith.constant 0 : i32
    %c0_i32_0 = arith.constant 0 : i32
    return %arg0, %c0_i32 : i32, i32
  }
}

</mosaic_0001>

<llo_original>
// kernel: tpu_custom_call.1
$region0: #{tpu_custom_call.1}
  #allocation0 [shape = 'u32[]', space=smem, size = 0x4, offset = 0x4, fixed_abs, tag = 'smem constant byte address 0x4 - core index']
  #allocation1 [shape = 'u32[72,128]{1,0:T(1,128)}', space=vmem, size = 0x9000, scoped, tag = 'internal scratch']
  #allocation2 [shape = 'bf16[128,768]{1,0:T(8,128)(2,1)}', space=vmem, size = 0x30000, scoped, tag = 'scratch operand']
  #allocation3 [shape = 'f32[1,1]{1,0:T(1,128)S(1)}', space=vmem, size = 0x200, scoped, tag = 'scoped memory for tpu_custom_call.1']
  %s0 = inlined_call_operand.hbm [shape: f32[200,384], index: 0, kind: input, shape index: {}]
  %s1 = inlined_call_operand.hbm [shape: f32[200,384], index: 1, kind: input, shape index: {}]
  %s2 = inlined_call_operand.hbm [shape: bf16[768,512], index: 2, kind: input, shape index: {}]
  %s3 = inlined_call_operand.vmem [shape: f32[1,512], index: 3, kind: input, shape index: {}]
  %s4 = inlined_call_operand.hbm [shape: bf16[512,256], index: 4, kind: input, shape index: {}]
  %s5 = inlined_call_operand.vmem [shape: f32[1,256], index: 5, kind: input, shape index: {}]
  %s6 = inlined_call_operand.hbm [shape: bf16[256,128], index: 6, kind: input, shape index: {}]
  %s7 = inlined_call_operand.vmem [shape: f32[1,128], index: 7, kind: input, shape index: {}]
  %s8 = inlined_call_operand.vmem [shape: f32[1,128], index: 8, kind: input, shape index: {}]
  %s9 = inlined_call_operand.<no memory space> [shape: f32[1,1], index: 9, kind: input, shape index: {}]
  %s10 = inlined_call_operand.vmem [shape: f32[200,1], index: 10, kind: output, shape index: {}]
  %s11 = sld [smem:[#allocation0]]
  $region141: #{tpu_custom_call.1} parent=0
    _
  %s13 = ssub.s32 1, %s11
  %s14 = scalar_select 0, %s13, %s11
  %v15 = vstv %s9
  %16 = vst [vmem:[#allocation3] sm:$0x1] %v15
  $region1: #{tpu_custom_call.1} parent=0
    #allocation4 [shape = 'u8[393216]{0}', space=vmem, size = 0x60000, scoped, tag = 'input window, operand 0']
    #allocation5 [shape = 's32[2]{0}', space=sflag, size = 0x8, scoped, tag = 'scoped memory for tpu_custom_call.1']
    #allocation6 [shape = 'u8[393216]{0}', space=vmem, size = 0x60000, scoped, tag = 'input window, operand 1']
    #allocation7 [shape = 's32[2]{0}', space=sflag, size = 0x8, scoped, tag = 'scoped memory for tpu_custom_call.1']
    #allocation8 [shape = 'u8[786432]{0}', space=vmem, size = 0xc0000, scoped, tag = 'input window, operand 2, single buffered']
    #allocation9 [shape = 'u8[262144]{0}', space=vmem, size = 0x40000, scoped, tag = 'input window, operand 4, single buffered']
    #allocation10 [shape = 's32[1]{0}', space=sflag, size = 0x4, scoped, tag = 'scoped memory for tpu_custom_call.1']
    #allocation11 [shape = 'u8[65536]{0}', space=vmem, size = 0x10000, scoped, tag = 'input window, operand 6, single buffered']
    #allocation12 [shape = 'u8[131072]{0}', space=vmem, size = 0x20000, scoped, tag = 'output window, operand 0']
    %17 = vsyncpa [#allocation5], 0
    %s18 = scalar_lea.sflag [#allocation5], 1
    %19 = vsyncpa %s18, 0
    %20 = vsyncpa [#allocation7], 0
    %s21 = scalar_lea.sflag [#allocation7], 1
    %22 = vsyncpa %s21, 0
    %23 = vsyncpa [#allocation10], 0
    loop: start=0, step=1, limit=4
    $region2: #{tpu_custom_call.1} parent=1 // loop_pre_header
      _
    $region3: #{tpu_custom_call.1} parent=1 // loop_header
      %s25 = sphi 0, %s29
      %p26 = scmp.ge.s32.totalorder %s25, 4
      %s35 = sphi 0, %s37
      %s38 = sphi 0, %s35
      %s39 = sphi 0, %s38
      %s55 = sphi 0, %s39
      %s61 = sphi 0, %s63
      %s64 = sphi 0, %s61
      %s65 = sphi 0, %s64
      %s81 = sphi 0, %s65
      %s85 = sphi 0, %s85
      %s87 = sphi 0, %s85
      %s88 = sphi 0, %s87
      %s102 = sphi 0, %s88
      %s106 = sphi 0, %s106
      %s108 = sphi 0, %s106
      %s109 = sphi 0, %s108
      %s123 = sphi 0, %s109
      %s127 = sphi 0, %s127
      %s129 = sphi 0, %s127
      %s130 = sphi 0, %s129
      %s144 = sphi 0, %s130
      %s148 = sphi 0, %s148
      %s150 = sphi 0, %s148
      %s151 = sphi 0, %s150
      %s165 = sphi 0, %s151
      %s169 = sphi 0, %s169
      %s171 = sphi 0, %s169
      %s172 = sphi 0, %s171
      %s186 = sphi 0, %s172
      %s190 = sphi 0, %s190
      %s192 = sphi 0, %s190
      %s193 = sphi 0, %s192
      %s207 = sphi 0, %s193
      %s211 = sphi 0, %s211
      %s213 = sphi 0, %s211
      %s214 = sphi 0, %s213
      %s228 = sphi 0, %s214
      %s232 = sphi 0, %s232
      %s234 = sphi 0, %s232
      %s235 = sphi 0, %s234
      %s249 = sphi 0, %s235
      %s255 = sphi 0, %s257
      %s258 = sphi 0, %s255
      %s259 = sphi 0, %s258
      %s275 = sphi 0, %s259
    $region4: #{tpu_custom_call.1} parent=1 // loop_header_branch
      %28 = sbr.rel (%p26) target = $region8
    $region5: #{tpu_custom_call.1} parent=1 // loop_body
      %s30 = ssub.s32 %s25, 1
      %s31 = ssub.s32 %s25, 2
      %s32 = sadd.s32 %s25, 1
      %s33 = ssub.s32 %s25, %s32
      %p34 = scmp.eq.s32.totalorder %s33, 0
      %s36 = sadd.s32 %s35, 1
      %s37 = scalar_select %p34, %s35, %s36
      %p40 = pneg %p34
      %p41 = scmp.eq.s32.totalorder %s25, 1
      %p42 = por %p40, %p41
      %p43 = scmp.ne.s32.totalorder %s35, %s38
      %p44 = scmp.eq.s32.totalorder %s25, 0
      %p45 = por %p43, %p44
      %p46 = scmp.ne.s32.totalorder %s35, %s38
      %p47 = scmp.eq.s32.totalorder %s30, 1
      %p48 = por %p46, %p47
      %p49 = scmp.ne.s32.totalorder %s38, %s39
      %p50 = scmp.eq.s32.totalorder %s30, 0
      %p51 = por %p49, %p50
      %p52 = scmp.ne.s32.totalorder %s38, %s39
      %p53 = scmp.eq.s32.totalorder %s31, 1
      %p54 = por %p52, %p53
      %p56 = scmp.ne.s32.totalorder %s39, %s55
      %p57 = scmp.eq.s32.totalorder %s31, 0
      %p58 = por %p56, %p57
      %s59 = ssub.s32 %s25, %s32
      %p60 = scmp.eq.s32.totalorder %s59, 0
      %s62 = sadd.s32 %s61, 1
      %s63 = scalar_select %p60, %s61, %s62
      %p66 = pneg %p60
      %p67 = scmp.eq.s32.totalorder %s25, 1
      %p68 = por %p66, %p67
      %p69 = scmp.ne.s32.totalorder %s61, %s64
      %p70 = scmp.eq.s32.totalorder %s25, 0
      %p71 = por %p69, %p70
      %p72 = scmp.ne.s32.totalorder %s61, %s64
      %p73 = scmp.eq.s32.totalorder %s30, 1
      %p74 = por %p72, %p73
      %p75 = scmp.ne.s32.totalorder %s64, %s65
      %p76 = scmp.eq.s32.totalorder %s30, 0
      %p77 = por %p75, %p76
      %p78 = scmp.ne.s32.totalorder %s64, %s65
      %p79 = scmp.eq.s32.totalorder %s31, 1
      %p80 = por %p78, %p79
      %p82 = scmp.ne.s32.totalorder %s65, %s81
      %p83 = scmp.eq.s32.totalorder %s31, 0
      %p84 = por %p82, %p83
      %s86 = sadd.s32 %s85, 1
      %p89 = scmp.eq.s32.totalorder %s25, 1
      %p90 = scmp.ne.s32.totalorder %s85, %s87
      %p91 = scmp.eq.s32.totalorder %s25, 0
      %p92 = por %p90, %p91
      %p93 = scmp.ne.s32.totalorder %s85, %s87
      %p94 = scmp.eq.s32.totalorder %s30, 1
      %p95 = por %p93, %p94
      %p96 = scmp.ne.s32.totalorder %s87, %s88
      %p97 = scmp.eq.s32.totalorder %s30, 0
      %p98 = por %p96, %p97
      %p99 = scmp.ne.s32.totalorder %s87, %s88
      %p100 = scmp.eq.s32.totalorder %s31, 1
      %p101 = por %p99, %p100
      %p103 = scmp.ne.s32.totalorder %s88, %s102
      %p104 = scmp.eq.s32.totalorder %s31, 0
      %p105 = por %p103, %p104
      %s107 = sadd.s32 %s106, 1
      %p110 = scmp.eq.s32.totalorder %s25, 1
      %p111 = scmp.ne.s32.totalorder %s106, %s108
      %p112 = scmp.eq.s32.totalorder %s25, 0
      %p113 = por %p111, %p112
      %p114 = scmp.ne.s32.totalorder %s106, %s108
      %p115 = scmp.eq.s32.totalorder %s30, 1
      %p116 = por %p114, %p115
      %p117 = scmp.ne.s32.totalorder %s108, %s109
      %p118 = scmp.eq.s32.totalorder %s30, 0
      %p119 = por %p117, %p118
      %p120 = scmp.ne.s32.totalorder %s108, %s109
      %p121 = scmp.eq.s32.totalorder %s31, 1
      %p122 = por %p120, %p121
      %p124 = scmp.ne.s32.totalorder %s109, %s123
      %p125 = scmp.eq.s32.totalorder %s31, 0
      %p126 = por %p124, %p125
      %s128 = sadd.s32 %s127, 1
      %p131 = scmp.eq.s32.totalorder %s25, 1
      %p132 = scmp.ne.s32.totalorder %s127, %s129
      %p133 = scmp.eq.s32.totalorder %s25, 0
      %p134 = por %p132, %p133
      %p135 = scmp.ne.s32.totalorder %s127, %s129
      %p136 = scmp.eq.s32.totalorder %s30, 1
      %p137 = por %p135, %p136
      %p138 = scmp.ne.s32.totalorder %s129, %s130
      %p139 = scmp.eq.s32.totalorder %s30, 0
      %p140 = por %p138, %p139
      %p141 = scmp.ne.s32.totalorder %s129, %s130
      %p142 = scmp.eq.s32.totalorder %s31, 1
      %p143 = por %p141, %p142
      %p145 = scmp.ne.s32.totalorder %s130, %s144
      %p146 = scmp.eq.s32.totalorder %s31, 0
      %p147 = por %p145, %p146
      %s149 = sadd.s32 %s148, 1
      %p152 = scmp.eq.s32.totalorder %s25, 1
      %p153 = scmp.ne.s32.totalorder %s148, %s150
      %p154 = scmp.eq.s32.totalorder %s25, 0
      %p155 = por %p153, %p154
      %p156 = scmp.ne.s32.totalorder %s148, %s150
      %p157 = scmp.eq.s32.totalorder %s30, 1
      %p158 = por %p156, %p157
      %p159 = scmp.ne.s32.totalorder %s150, %s151
      %p160 = scmp.eq.s32.totalorder %s30, 0
      %p161 = por %p159, %p160
      %p162 = scmp.ne.s32.totalorder %s150, %s151
      %p163 = scmp.eq.s32.totalorder %s31, 1
      %p164 = por %p162, %p163
      %p166 = scmp.ne.s32.totalorder %s151, %s165
      %p167 = scmp.eq.s32.totalorder %s31, 0
      %p168 = por %p166, %p167
      %s170 = sadd.s32 %s169, 1
      %p173 = scmp.eq.s32.totalorder %s25, 1
      %p174 = scmp.ne.s32.totalorder %s169, %s171
      %p175 = scmp.eq.s32.totalorder %s25, 0
      %p176 = por %p174, %p175
      %p177 = scmp.ne.s32.totalorder %s169, %s171
      %p178 = scmp.eq.s32.totalorder %s30, 1
      %p179 = por %p177, %p178
      %p180 = scmp.ne.s32.totalorder %s171, %s172
      %p181 = scmp.eq.s32.totalorder %s30, 0
      %p182 = por %p180, %p181
      %p183 = scmp.ne.s32.totalorder %s171, %s172
      %p184 = scmp.eq.s32.totalorder %s31, 1
      %p185 = por %p183, %p184
      %p187 = scmp.ne.s32.totalorder %s172, %s186
      %p188 = scmp.eq.s32.totalorder %s31, 0
      %p189 = por %p187, %p188
      %s191 = sadd.s32 %s190, 1
      %p194 = scmp.eq.s32.totalorder %s25, 1
      %p195 = scmp.ne.s32.totalorder %s190, %s192
      %p196 = scmp.eq.s32.totalorder %s25, 0
      %p197 = por %p195, %p196
      %p198 = scmp.ne.s32.totalorder %s190, %s192
      %p199 = scmp.eq.s32.totalorder %s30, 1
      %p200 = por %p198, %p199
      %p201 = scmp.ne.s32.totalorder %s192, %s193
      %p202 = scmp.eq.s32.totalorder %s30, 0
      %p203 = por %p201, %p202
      %p204 = scmp.ne.s32.totalorder %s192, %s193
      %p205 = scmp.eq.s32.totalorder %s31, 1
      %p206 = por %p204, %p205
      %p208 = scmp.ne.s32.totalorder %s193, %s207
      %p209 = scmp.eq.s32.totalorder %s31, 0
      %p210 = por %p208, %p209
      %s212 = sadd.s32 %s211, 1
      %p215 = scmp.eq.s32.totalorder %s25, 1
      %p216 = scmp.ne.s32.totalorder %s211, %s213
      %p217 = scmp.eq.s32.totalorder %s25, 0
      %p218 = por %p216, %p217
      %p219 = scmp.ne.s32.totalorder %s211, %s213
      %p220 = scmp.eq.s32.totalorder %s30, 1
      %p221 = por %p219, %p220
      %p222 = scmp.ne.s32.totalorder %s213, %s214
      %p223 = scmp.eq.s32.totalorder %s30, 0
      %p224 = por %p222, %p223
      %p225 = scmp.ne.s32.totalorder %s213, %s214
      %p226 = scmp.eq.s32.totalorder %s31, 1
      %p227 = por %p225, %p226
      %p229 = scmp.ne.s32.totalorder %s214, %s228
      %p230 = scmp.eq.s32.totalorder %s31, 0
      %p231 = por %p229, %p230
      %s233 = sadd.s32 %s232, 1
      %p236 = scmp.eq.s32.totalorder %s25, 1
      %p237 = scmp.ne.s32.totalorder %s232, %s234
      %p238 = scmp.eq.s32.totalorder %s25, 0
      %p239 = por %p237, %p238
      %p240 = scmp.ne.s32.totalorder %s232, %s234
      %p241 = scmp.eq.s32.totalorder %s30, 1
      %p242 = por %p240, %p241
      %p243 = scmp.ne.s32.totalorder %s234, %s235
      %p244 = scmp.eq.s32.totalorder %s30, 0
      %p245 = por %p243, %p244
      %p246 = scmp.ne.s32.totalorder %s234, %s235
      %p247 = scmp.eq.s32.totalorder %s31, 1
      %p248 = por %p246, %p247
      %p250 = scmp.ne.s32.totalorder %s235, %s249
      %p251 = scmp.eq.s32.totalorder %s31, 0
      %p252 = por %p250, %p251
      %s253 = ssub.s32 %s25, %s32
      %p254 = scmp.eq.s32.totalorder %s253, 0
      %s256 = sadd.s32 %s255, 1
      %s257 = scalar_select %p254, %s255, %s256
      %p260 = pneg %p254
      %p261 = scmp.eq.s32.totalorder %s25, 1
      %p262 = por %p260, %p261
      %p263 = scmp.ne.s32.totalorder %s255, %s258
      %p264 = scmp.eq.s32.totalorder %s25, 0
      %p265 = por %p263, %p264
      %p266 = scmp.ne.s32.totalorder %s255, %s258
      %p267 = scmp.eq.s32.totalorder %s30, 1
      %p268 = por %p266, %p267
      %p269 = scmp.ne.s32.totalorder %s258, %s259
      %p270 = scmp.eq.s32.totalorder %s30, 0
      %p271 = por %p269, %p270
      %p272 = scmp.ne.s32.totalorder %s258, %s259
      %p273 = scmp.eq.s32.totalorder %s31, 1
      %p274 = por %p272, %p273
      %p276 = scmp.ne.s32.totalorder %s259, %s275
      %p277 = scmp.eq.s32.totalorder %s31, 0
      %p278 = por %p276, %p277
      %p279 = scmp.le.s32.totalorder 1, %s25
      %p280 = scmp.lt.s32.totalorder %s25, 3
      %p281 = pnand %p279, %p280
      %p282 = pneg %p281
      // Predicated region
      $region9: #{tpu_custom_call.1} parent=5 // pred_check
        _
      $region10: #{tpu_custom_call.1} parent=5 // pred_check_branch
        %284 = sbr.rel (%p281) target = $region12
      $region11: #{tpu_custom_call.1} parent=5 // pred_region
        %s285 = ssub.s32 %s25, 1
        // Predicated region
        $region13: #{tpu_custom_call.1} parent=11 // pred_check
          %p286 = pneg %p98
        $region14: #{tpu_custom_call.1} parent=11 // pred_check_branch
          %288 = sbr.rel (%p286) target = $region16
        $region15: #{tpu_custom_call.1} parent=11 // pred_region
          %290 = vsyncadd [#allocation7], 0
          %s291 = sshll.u32 %s2, 4
          %s292 = int_to_ptr.hbm [resolvable:$true] %s291
          %s293 = sshll.u32 [#allocation8], 4
          %s294 = int_to_ptr.vmem [resolvable:$true] %s293
          %299 = dma.hbm_to_vmem [thread:$0]  %s292, 24576, %s294, [#allocation7], 256, 256, 16
        $region16: #{tpu_custom_call.1} parent=11 // pred_fallthru
          _
        // Predicated region
        $region17: #{tpu_custom_call.1} parent=11 // pred_check
          %p300 = pneg %p119
        $region18: #{tpu_custom_call.1} parent=11 // pred_check_branch
          %302 = sbr.rel (%p300) target = $region20
        $region19: #{tpu_custom_call.1} parent=11 // pred_region
          _
        $region20: #{tpu_custom_call.1} parent=11 // pred_fallthru
          _
        // Predicated region
        $region21: #{tpu_custom_call.1} parent=11 // pred_check
          %p303 = pneg %p140
        $region22: #{tpu_custom_call.1} parent=11 // pred_check_branch
          %305 = sbr.rel (%p303) target = $region24
        $region23: #{tpu_custom_call.1} parent=11 // pred_region
          %307 = vsyncadd [#allocation10], 0
          %s308 = sshll.u32 %s4, 4
          %s309 = int_to_ptr.hbm [resolvable:$true] %s308
          %s310 = sshll.u32 [#allocation9], 4
          %s311 = int_to_ptr.vmem [resolvable:$true] %s310
          %316 = dma.hbm_to_vmem [thread:$0]  %s309, 8192, %s311, [#allocation10], 128, 128, 8
        $region24: #{tpu_custom_call.1} parent=11 // pred_fallthru
          _
        // Predicated region
        $region25: #{tpu_custom_call.1} parent=11 // pred_check
          %p317 = pneg %p161
        $region26: #{tpu_custom_call.1} parent=11 // pred_check_branch
          %319 = sbr.rel (%p317) target = $region28
        $region27: #{tpu_custom_call.1} parent=11 // pred_region
          _
        $region28: #{tpu_custom_call.1} parent=11 // pred_fallthru
          _
        // Predicated region
        $region29: #{tpu_custom_call.1} parent=11 // pred_check
          %p320 = pneg %p182
        $region30: #{tpu_custom_call.1} parent=11 // pred_check_branch
          %322 = sbr.rel (%p320) target = $region32
        $region31: #{tpu_custom_call.1} parent=11 // pred_region
          %324 = vsyncadd [#allocation10], 0
          %s325 = sshll.u32 %s6, 4
          %s326 = int_to_ptr.hbm [resolvable:$true] %s325
          %s327 = sshll.u32 [#allocation11], 4
          %s328 = int_to_ptr.vmem [resolvable:$true] %s327
          %333 = dma.hbm_to_vmem [thread:$0]  %s326, 2048, %s328, [#allocation10], 64, 64, 4
        $region32: #{tpu_custom_call.1} parent=11 // pred_fallthru
          _
        // Predicated region
        $region33: #{tpu_custom_call.1} parent=11 // pred_check
          %p334 = pneg %p203
        $region34: #{tpu_custom_call.1} parent=11 // pred_check_branch
          %336 = sbr.rel (%p334) target = $region36
        $region35: #{tpu_custom_call.1} parent=11 // pred_region
          _
        $region36: #{tpu_custom_call.1} parent=11 // pred_fallthru
          _
        // Predicated region
        $region37: #{tpu_custom_call.1} parent=11 // pred_check
          %p337 = pneg %p224
        $region38: #{tpu_custom_call.1} parent=11 // pred_check_branch
          %339 = sbr.rel (%p337) target = $region40
        $region39: #{tpu_custom_call.1} parent=11 // pred_region
          _
        $region40: #{tpu_custom_call.1} parent=11 // pred_fallthru
          _
        // Predicated region
        $region41: #{tpu_custom_call.1} parent=11 // pred_check
          %p340 = pneg %p245
        $region42: #{tpu_custom_call.1} parent=11 // pred_check_branch
          %342 = sbr.rel (%p340) target = $region44
        $region43: #{tpu_custom_call.1} parent=11 // pred_region
          _
        $region44: #{tpu_custom_call.1} parent=11 // pred_fallthru
          _
      $region12: #{tpu_custom_call.1} parent=5 // pred_fallthru
        _
      %p343 = scmp.lt.s32.totalorder %s25, 2
      // Predicated region
      $region45: #{tpu_custom_call.1} parent=5 // pred_check
        %p344 = pneg %p343
      $region46: #{tpu_custom_call.1} parent=5 // pred_check_branch
        %346 = sbr.rel (%p344) target = $region48
      $region47: #{tpu_custom_call.1} parent=5 // pred_region
        // Predicated region
        $region49: #{tpu_custom_call.1} parent=47 // pred_check
          %p347 = pneg %p45
        $region50: #{tpu_custom_call.1} parent=47 // pred_check_branch
          %349 = sbr.rel (%p347) target = $region52
        $region51: #{tpu_custom_call.1} parent=47 // pred_region
          %s350 = sand.u32 %s35, 1
          %s351 = scalar_lea.sflag [#allocation5], %s350
          %s352 = sand.u32 %s35, 1
          %s353 = smul.addr %s352, 384
          %s354 = scalar_lea.vmem [#allocation4], %s353
          %s355 = smul.u32 16, %s25
          %s356 = ssub.s32 25, %s355
          %p357 = scmp.lt.s32.totalorder %s356, 16
          %s358 = scalar_select %p357, %s356, 16
          %s359 = smul.u32 8, %s358
          %s360 = smul.u32 %s359, 3
          %s361 = ssub.s32 384, %s360
          %s362 = sshll.u32 %s361, 4
          %363 = vsyncadd %s351, %s362
          %p364 = scmp.ne.s32.totalorder 0, %s360
          %s365 = smul.addr %s355, 3
          %s366 = smul.addr %s365, 8
          %s367 = scalar_lea.hbm %s0, %s366
          %s368 = smul.u32 24, %s358
          %s369 = sshll.u32 %s367, 4
          %s370 = int_to_ptr.hbm [resolvable:$true] %s369
          %s371 = sshll.u32 %s354, 4
          %s372 = int_to_ptr.vmem [resolvable:$true] %s371
          %s373 = sshll.u32 %s368, 4
          %377 = dma.hbm_to_vmem [thread:$0]  (%p364), %s370, %s373, %s372, %s351, 384, 384, 24
        $region52: #{tpu_custom_call.1} parent=47 // pred_fallthru
          _
        // Predicated region
        $region53: #{tpu_custom_call.1} parent=47 // pred_check
          %p378 = pneg %p71
        $region54: #{tpu_custom_call.1} parent=47 // pred_check_branch
          %380 = sbr.rel (%p378) target = $region56
        $region55: #{tpu_custom_call.1} parent=47 // pred_region
          %s381 = sand.u32 %s25, 1
          %s382 = scalar_lea.sflag [#allocation7], %s381
          %s383 = sand.u32 %s61, 1
          %s384 = smul.addr %s383, 384
          %s385 = scalar_lea.vmem [#allocation6], %s384
          %s386 = smul.u32 16, %s25
          %s387 = ssub.s32 25, %s386
          %p388 = scmp.lt.s32.totalorder %s387, 16
          %s389 = scalar_select %p388, %s387, 16
          %s390 = smul.u32 8, %s389
          %s391 = smul.u32 %s390, 3
          %s392 = ssub.s32 384, %s391
          %s393 = sshll.u32 %s392, 4
          %394 = vsyncadd %s382, %s393
          %p395 = scmp.ne.s32.totalorder 0, %s391
          %s396 = smul.addr %s386, 3
          %s397 = smul.addr %s396, 8
          %s398 = scalar_lea.hbm %s1, %s397
          %s399 = smul.u32 24, %s389
          %s400 = sshll.u32 %s398, 4
          %s401 = int_to_ptr.hbm [resolvable:$true] %s400
          %s402 = sshll.u32 %s385, 4
          %s403 = int_to_ptr.vmem [resolvable:$true] %s402
          %s404 = sshll.u32 %s399, 4
          %408 = dma.hbm_to_vmem [thread:$0]  (%p395), %s401, %s404, %s403, %s382, 384, 384, 24
        $region56: #{tpu_custom_call.1} parent=47 // pred_fallthru
          _
      $region48: #{tpu_custom_call.1} parent=5 // pred_fallthru
        _
      %p409 = scmp.le.s32.totalorder 1, %s25
      %p410 = scmp.lt.s32.totalorder %s25, 3
      %p411 = pnand %p409, %p410
      %p412 = pneg %p411
      // Predicated region
      $region57: #{tpu_custom_call.1} parent=5 // pred_check
        _
      $region58: #{tpu_custom_call.1} parent=5 // pred_check_branch
        %414 = sbr.rel (%p411) target = $region60
      $region59: #{tpu_custom_call.1} parent=5 // pred_region
        %s415 = ssub.s32 %s25, 1
        %s416 = sand.u32 %s38, 1
        %s417 = scalar_lea.sflag [#allocation5], %s416
        %s418 = sand.u32 %s38, 1
        %s419 = smul.addr %s418, 384
        %s420 = scalar_lea.vmem [#allocation4], %s419
        // Predicated region
        $region61: #{tpu_custom_call.1} parent=59 // pred_check
          %p421 = pneg %p51
        $region62: #{tpu_custom_call.1} parent=59 // pred_check_branch
          %423 = sbr.rel (%p421) target = $region64
        $region63: #{tpu_custom_call.1} parent=59 // pred_region
          %425 = dma.done %s417, 6144
        $region64: #{tpu_custom_call.1} parent=59 // pred_fallthru
          _
        %s426 = sand.u32 %s30, 1
        %s427 = scalar_lea.sflag [#allocation7], %s426
        %s428 = sand.u32 %s64, 1
        %s429 = smul.addr %s428, 384
        %s430 = scalar_lea.vmem [#allocation6], %s429
        // Predicated region
        $region65: #{tpu_custom_call.1} parent=59 // pred_check
          %p431 = pneg %p77
        $region66: #{tpu_custom_call.1} parent=59 // pred_check_branch
          %433 = sbr.rel (%p431) target = $region68
        $region67: #{tpu_custom_call.1} parent=59 // pred_region
          %435 = dma.done %s427, 6144
        $region68: #{tpu_custom_call.1} parent=59 // pred_fallthru
          _
        // Predicated region
        $region69: #{tpu_custom_call.1} parent=59 // pred_check
          %p436 = pneg %p98
        $region70: #{tpu_custom_call.1} parent=59 // pred_check_branch
          %438 = sbr.rel (%p436) target = $region72
        $region71: #{tpu_custom_call.1} parent=59 // pred_region
          %440 = dma.done [#allocation7], 24576
        $region72: #{tpu_custom_call.1} parent=59 // pred_fallthru
          _
        // Predicated region
        $region73: #{tpu_custom_call.1} parent=59 // pred_check
          %p441 = pneg %p140
        $region74: #{tpu_custom_call.1} parent=59 // pred_check_branch
          %443 = sbr.rel (%p441) target = $region76
        $region75: #{tpu_custom_call.1} parent=59 // pred_region
          %445 = dma.done [#allocation10], 8192
        $region76: #{tpu_custom_call.1} parent=59 // pred_fallthru
          _
        // Predicated region
        $region77: #{tpu_custom_call.1} parent=59 // pred_check
          %p446 = pneg %p182
        $region78: #{tpu_custom_call.1} parent=59 // pred_check_branch
          %448 = sbr.rel (%p446) target = $region80
        $region79: #{tpu_custom_call.1} parent=59 // pred_region
          %450 = dma.done [#allocation10], 2048
        $region80: #{tpu_custom_call.1} parent=59 // pred_fallthru
          _
        %s451 = sand.u32 %s38, 1
        %s452 = scalar_lea.sflag [#allocation5], %s451
        %s453 = sand.u32 %s38, 1
        %s454 = smul.addr %s453, 384
        %s455 = scalar_lea.vmem [#allocation4], %s454
        %p456 = pneg %p51
        %p457 = pneg %p48
        %s458 = sand.u32 %s30, 1
        %s459 = scalar_lea.sflag [#allocation7], %s458
        %s460 = sand.u32 %s64, 1
        %s461 = smul.addr %s460, 384
        %s462 = scalar_lea.vmem [#allocation6], %s461
        %p463 = pneg %p77
        %p464 = pneg %p74
        %p465 = pneg %p98
        %p466 = pneg %p95
        %p467 = pneg %p119
        %p468 = pneg %p116
        %p469 = pneg %p140
        %p470 = pneg %p137
        %p471 = pneg %p161
        %p472 = pneg %p158
        %p473 = pneg %p182
        %p474 = pneg %p179
        %p475 = pneg %p203
        %p476 = pneg %p200
        %p477 = pneg %p224
        %p478 = pneg %p221
        %p479 = pneg %p245
        %p480 = pneg %p242
        %p481 = pneg %p271
        %p482 = pneg %p268
        %s483 = sand.u32 %s258, 1
        %s484 = sand.u32 %s258, 1
        %s485 = smul.addr %s484, 128
        %s486 = scalar_lea.vmem [#allocation12], %s485
        %s487 = smul.u32 16, %s30
        %s488 = ssub.s32 25, %s487
        %p489 = scmp.lt.s32.totalorder %s488, 16
        %s490 = scalar_select %p489, %s488, 16
        %s491 = smul.u32 8, %s490
        %s492 = smul.u32 %s491, 3
        %s493 = smul.u32 16, %s30
        %s494 = ssub.s32 25, %s493
        %p495 = scmp.lt.s32.totalorder %s494, 16
        %s496 = scalar_select %p495, %s494, 16
        %s497 = smul.u32 8, %s496
        %s498 = smul.u32 %s497, 3
        %s499 = smul.u32 16, %s30
        %s500 = ssub.s32 25, %s499
        %p501 = scmp.lt.s32.totalorder %s500, 16
        %s502 = scalar_select %p501, %s500, 16
        %s503 = smul.u32 8, %s502
        %v504 = vld [vmem:[%s420] sm:$0xff]
        %v505 = vld [vmem:[%s420 + $0x8] sm:$0xff]
        %v506 = vld [vmem:[%s420 + $0x10] sm:$0xff]
        %v507 = vld [vmem:[%s420 + $0x18] sm:$0xff]
        %v508 = vld [vmem:[%s420 + $0x20] sm:$0xff]
        %v509 = vld [vmem:[%s420 + $0x28] sm:$0xff]
        %v510 = vld [vmem:[%s420 + $0x30] sm:$0xff]
        %v511 = vld [vmem:[%s420 + $0x38] sm:$0xff]
        %v512 = vld [vmem:[%s420 + $0x40] sm:$0xff]
        %v513 = vld [vmem:[%s420 + $0x48] sm:$0xff]
        %v514 = vld [vmem:[%s420 + $0x50] sm:$0xff]
        %v515 = vld [vmem:[%s420 + $0x58] sm:$0xff]
        %v516 = vld [vmem:[%s420 + $0x60] sm:$0xff]
        %v517 = vld [vmem:[%s420 + $0x68] sm:$0xff]
        %v518 = vld [vmem:[%s420 + $0x70] sm:$0xff]
        %v519 = vld [vmem:[%s420 + $0x78] sm:$0xff]
        %v520 = vld [vmem:[%s420 + $0x80] sm:$0xff]
        %v521 = vld [vmem:[%s420 + $0x88] sm:$0xff]
        %v522 = vld [vmem:[%s420 + $0x90] sm:$0xff]
        %v523 = vld [vmem:[%s420 + $0x98] sm:$0xff]
        %v524 = vld [vmem:[%s420 + $0xa0] sm:$0xff]
        %v525 = vld [vmem:[%s420 + $0xa8] sm:$0xff]
        %v526 = vld [vmem:[%s420 + $0xb0] sm:$0xff]
        %v527 = vld [vmem:[%s420 + $0xb8] sm:$0xff]
        %v528 = vld [vmem:[%s420 + $0xc0] sm:$0xff]
        %v529 = vld [vmem:[%s420 + $0xc8] sm:$0xff]
        %v530 = vld [vmem:[%s420 + $0xd0] sm:$0xff]
        %v531 = vld [vmem:[%s420 + $0xd8] sm:$0xff]
        %v532 = vld [vmem:[%s420 + $0xe0] sm:$0xff]
        %v533 = vld [vmem:[%s420 + $0xe8] sm:$0xff]
        %v534 = vld [vmem:[%s420 + $0xf0] sm:$0xff]
        %v535 = vld [vmem:[%s420 + $0xf8] sm:$0xff]
        %v536 = vld [vmem:[%s420 + $0x100] sm:$0xff]
        %v537 = vld [vmem:[%s420 + $0x108] sm:$0xff]
        %v538 = vld [vmem:[%s420 + $0x110] sm:$0xff]
        %v539 = vld [vmem:[%s420 + $0x118] sm:$0xff]
        %v540 = vld [vmem:[%s420 + $0x120] sm:$0xff]
        %v541 = vld [vmem:[%s420 + $0x128] sm:$0xff]
        %v542 = vld [vmem:[%s420 + $0x130] sm:$0xff]
        %v543 = vld [vmem:[%s420 + $0x138] sm:$0xff]
        %v544 = vld [vmem:[%s420 + $0x140] sm:$0xff]
        %v545 = vld [vmem:[%s420 + $0x148] sm:$0xff]
        %v546 = vld [vmem:[%s420 + $0x150] sm:$0xff]
        %v547 = vld [vmem:[%s420 + $0x158] sm:$0xff]
        %v548 = vld [vmem:[%s420 + $0x160] sm:$0xff]
        %v549 = vld [vmem:[%s420 + $0x168] sm:$0xff]
        %v550 = vld [vmem:[%s420 + $0x170] sm:$0xff]
        %v551 = vld [vmem:[%s420 + $0x178] sm:$0xff]
        %v552 = vpack.c.bf16 %v505, %v504
        %v553 = vpack.c.bf16 %v506, %v506
        %v554 = vpack.c.bf16 %v508, %v507
        %v555 = vpack.c.bf16 %v509, %v509
        %v556 = vpack.c.bf16 %v511, %v510
        %v557 = vpack.c.bf16 %v512, %v512
        %v558 = vpack.c.bf16 %v514, %v513
        %v559 = vpack.c.bf16 %v515, %v515
        %v560 = vpack.c.bf16 %v517, %v516
        %v561 = vpack.c.bf16 %v518, %v518
        %v562 = vpack.c.bf16 %v520, %v519
        %v563 = vpack.c.bf16 %v521, %v521
        %v564 = vpack.c.bf16 %v523, %v522
        %v565 = vpack.c.bf16 %v524, %v524
        %v566 = vpack.c.bf16 %v526, %v525
        %v567 = vpack.c.bf16 %v527, %v527
        %v568 = vpack.c.bf16 %v529, %v528
        %v569 = vpack.c.bf16 %v530, %v530
        %v570 = vpack.c.bf16 %v532, %v531
        %v571 = vpack.c.bf16 %v533, %v533
        %v572 = vpack.c.bf16 %v535, %v534
        %v573 = vpack.c.bf16 %v536, %v536
        %v574 = vpack.c.bf16 %v538, %v537
        %v575 = vpack.c.bf16 %v539, %v539
        %v576 = vpack.c.bf16 %v541, %v540
        %v577 = vpack.c.bf16 %v542, %v542
        %v578 = vpack.c.bf16 %v544, %v543
        %v579 = vpack.c.bf16 %v545, %v545
        %v580 = vpack.c.bf16 %v547, %v546
        %v581 = vpack.c.bf16 %v548, %v548
        %v582 = vpack.c.bf16 %v550, %v549
        %v583 = vpack.c.bf16 %v551, %v551
        %584 = vst [vmem:[#allocation2] sm:$0xff] %v552
        %585 = vst [vmem:[#allocation2 + $0x8] sm:$0xf] %v553
        %586 = vst [vmem:[#allocation2 + $0x18] sm:$0xff] %v554
        %587 = vst [vmem:[#allocation2 + $0x20] sm:$0xf] %v555
        %588 = vst [vmem:[#allocation2 + $0x30] sm:$0xff] %v556
        %589 = vst [vmem:[#allocation2 + $0x38] sm:$0xf] %v557
        %590 = vst [vmem:[#allocation2 + $0x48] sm:$0xff] %v558
        %591 = vst [vmem:[#allocation2 + $0x50] sm:$0xf] %v559
        %592 = vst [vmem:[#allocation2 + $0x60] sm:$0xff] %v560
        %593 = vst [vmem:[#allocation2 + $0x68] sm:$0xf] %v561
        %594 = vst [vmem:[#allocation2 + $0x78] sm:$0xff] %v562
        %595 = vst [vmem:[#allocation2 + $0x80] sm:$0xf] %v563
        %596 = vst [vmem:[#allocation2 + $0x90] sm:$0xff] %v564
        %597 = vst [vmem:[#allocation2 + $0x98] sm:$0xf] %v565
        %598 = vst [vmem:[#allocation2 + $0xa8] sm:$0xff] %v566
        %599 = vst [vmem:[#allocation2 + $0xb0] sm:$0xf] %v567
        %600 = vst [vmem:[#allocation2 + $0xc0] sm:$0xff] %v568
        %601 = vst [vmem:[#allocation2 + $0xc8] sm:$0xf] %v569
        %602 = vst [vmem:[#allocation2 + $0xd8] sm:$0xff] %v570
        %603 = vst [vmem:[#allocation2 + $0xe0] sm:$0xf] %v571
        %604 = vst [vmem:[#allocation2 + $0xf0] sm:$0xff] %v572
        %605 = vst [vmem:[#allocation2 + $0xf8] sm:$0xf] %v573
        %606 = vst [vmem:[#allocation2 + $0x108] sm:$0xff] %v574
        %607 = vst [vmem:[#allocation2 + $0x110] sm:$0xf] %v575
        %608 = vst [vmem:[#allocation2 + $0x120] sm:$0xff] %v576
        %609 = vst [vmem:[#allocation2 + $0x128] sm:$0xf] %v577
        %610 = vst [vmem:[#allocation2 + $0x138] sm:$0xff] %v578
        %611 = vst [vmem:[#allocation2 + $0x140] sm:$0xf] %v579
        %612 = vst [vmem:[#allocation2 + $0x150] sm:$0xff] %v580
        %613 = vst [vmem:[#allocation2 + $0x158] sm:$0xf] %v581
        %614 = vst [vmem:[#allocation2 + $0x168] sm:$0xff] %v582
        %615 = vst [vmem:[#allocation2 + $0x170] sm:$0xf] %v583
        %v616 = vld [vmem:[%s430] sm:$0xff]
        %v617 = vld [vmem:[%s430 + $0x8] sm:$0xff]
        %v618 = vld [vmem:[%s430 + $0x10] sm:$0xff]
        %v619 = vld [vmem:[%s430 + $0x18] sm:$0xff]
        %v620 = vld [vmem:[%s430 + $0x20] sm:$0xff]
        %v621 = vld [vmem:[%s430 + $0x28] sm:$0xff]
        %v622 = vld [vmem:[%s430 + $0x30] sm:$0xff]
        %v623 = vld [vmem:[%s430 + $0x38] sm:$0xff]
        %v624 = vld [vmem:[%s430 + $0x40] sm:$0xff]
        %v625 = vld [vmem:[%s430 + $0x48] sm:$0xff]
        %v626 = vld [vmem:[%s430 + $0x50] sm:$0xff]
        %v627 = vld [vmem:[%s430 + $0x58] sm:$0xff]
        %v628 = vld [vmem:[%s430 + $0x60] sm:$0xff]
        %v629 = vld [vmem:[%s430 + $0x68] sm:$0xff]
        %v630 = vld [vmem:[%s430 + $0x70] sm:$0xff]
        %v631 = vld [vmem:[%s430 + $0x78] sm:$0xff]
        %v632 = vld [vmem:[%s430 + $0x80] sm:$0xff]
        %v633 = vld [vmem:[%s430 + $0x88] sm:$0xff]
        %v634 = vld [vmem:[%s430 + $0x90] sm:$0xff]
        %v635 = vld [vmem:[%s430 + $0x98] sm:$0xff]
        %v636 = vld [vmem:[%s430 + $0xa0] sm:$0xff]
        %v637 = vld [vmem:[%s430 + $0xa8] sm:$0xff]
        %v638 = vld [vmem:[%s430 + $0xb0] sm:$0xff]
        %v639 = vld [vmem:[%s430 + $0xb8] sm:$0xff]
        %v640 = vld [vmem:[%s430 + $0xc0] sm:$0xff]
        %v641 = vld [vmem:[%s430 + $0xc8] sm:$0xff]
        %v642 = vld [vmem:[%s430 + $0xd0] sm:$0xff]
        %v643 = vld [vmem:[%s430 + $0xd8] sm:$0xff]
        %v644 = vld [vmem:[%s430 + $0xe0] sm:$0xff]
        %v645 = vld [vmem:[%s430 + $0xe8] sm:$0xff]
        %v646 = vld [vmem:[%s430 + $0xf0] sm:$0xff]
        %v647 = vld [vmem:[%s430 + $0xf8] sm:$0xff]
        %v648 = vld [vmem:[%s430 + $0x100] sm:$0xff]
        %v649 = vld [vmem:[%s430 + $0x108] sm:$0xff]
        %v650 = vld [vmem:[%s430 + $0x110] sm:$0xff]
        %v651 = vld [vmem:[%s430 + $0x118] sm:$0xff]
        %v652 = vld [vmem:[%s430 + $0x120] sm:$0xff]
        %v653 = vld [vmem:[%s430 + $0x128] sm:$0xff]
        %v654 = vld [vmem:[%s430 + $0x130] sm:$0xff]
        %v655 = vld [vmem:[%s430 + $0x138] sm:$0xff]
        %v656 = vld [vmem:[%s430 + $0x140] sm:$0xff]
        %v657 = vld [vmem:[%s430 + $0x148] sm:$0xff]
        %v658 = vld [vmem:[%s430 + $0x150] sm:$0xff]
        %v659 = vld [vmem:[%s430 + $0x158] sm:$0xff]
        %v660 = vld [vmem:[%s430 + $0x160] sm:$0xff]
        %v661 = vld [vmem:[%s430 + $0x168] sm:$0xff]
        %v662 = vld [vmem:[%s430 + $0x170] sm:$0xff]
        %v663 = vld [vmem:[%s430 + $0x178] sm:$0xff]
        %v664 = vpack.c.bf16 %v617, %v616
        %v665 = vpack.c.bf16 %v618, %v618
        %v666 = vpack.c.bf16 %v620, %v619
        %v667 = vpack.c.bf16 %v621, %v621
        %v668 = vpack.c.bf16 %v623, %v622
        %v669 = vpack.c.bf16 %v624, %v624
        %v670 = vpack.c.bf16 %v626, %v625
        %v671 = vpack.c.bf16 %v627, %v627
        %v672 = vpack.c.bf16 %v629, %v628
        %v673 = vpack.c.bf16 %v630, %v630
        %v674 = vpack.c.bf16 %v632, %v631
        %v675 = vpack.c.bf16 %v633, %v633
        %v676 = vpack.c.bf16 %v635, %v634
        %v677 = vpack.c.bf16 %v636, %v636
        %v678 = vpack.c.bf16 %v638, %v637
        %v679 = vpack.c.bf16 %v639, %v639
        %v680 = vpack.c.bf16 %v641, %v640
        %v681 = vpack.c.bf16 %v642, %v642
        %v682 = vpack.c.bf16 %v644, %v643
        %v683 = vpack.c.bf16 %v645, %v645
        %v684 = vpack.c.bf16 %v647, %v646
        %v685 = vpack.c.bf16 %v648, %v648
        %v686 = vpack.c.bf16 %v650, %v649
        %v687 = vpack.c.bf16 %v651, %v651
        %v688 = vpack.c.bf16 %v653, %v652
        %v689 = vpack.c.bf16 %v654, %v654
        %v690 = vpack.c.bf16 %v656, %v655
        %v691 = vpack.c.bf16 %v657, %v657
        %v692 = vpack.c.bf16 %v659, %v658
        %v693 = vpack.c.bf16 %v660, %v660
        %v694 = vpack.c.bf16 %v662, %v661
        %v695 = vpack.c.bf16 %v663, %v663
        %696 = vst [vmem:[#allocation2 + $0xc] sm:$0xff] %v664
        %697 = vst [vmem:[#allocation2 + $0x14] sm:$0xf] %v665
        %698 = vst [vmem:[#allocation2 + $0x24] sm:$0xff] %v666
        %699 = vst [vmem:[#allocation2 + $0x2c] sm:$0xf] %v667
        %700 = vst [vmem:[#allocation2 + $0x3c] sm:$0xff] %v668
        %701 = vst [vmem:[#allocation2 + $0x44] sm:$0xf] %v669
        %702 = vst [vmem:[#allocation2 + $0x54] sm:$0xff] %v670
        %703 = vst [vmem:[#allocation2 + $0x5c] sm:$0xf] %v671
        %704 = vst [vmem:[#allocation2 + $0x6c] sm:$0xff] %v672
        %705 = vst [vmem:[#allocation2 + $0x74] sm:$0xf] %v673
        %706 = vst [vmem:[#allocation2 + $0x84] sm:$0xff] %v674
        %707 = vst [vmem:[#allocation2 + $0x8c] sm:$0xf] %v675
        %708 = vst [vmem:[#allocation2 + $0x9c] sm:$0xff] %v676
        %709 = vst [vmem:[#allocation2 + $0xa4] sm:$0xf] %v677
        %710 = vst [vmem:[#allocation2 + $0xb4] sm:$0xff] %v678
        %711 = vst [vmem:[#allocation2 + $0xbc] sm:$0xf] %v679
        %712 = vst [vmem:[#allocation2 + $0xcc] sm:$0xff] %v680
        %713 = vst [vmem:[#allocation2 + $0xd4] sm:$0xf] %v681
        %714 = vst [vmem:[#allocation2 + $0xe4] sm:$0xff] %v682
        %715 = vst [vmem:[#allocation2 + $0xec] sm:$0xf] %v683
        %716 = vst [vmem:[#allocation2 + $0xfc] sm:$0xff] %v684
        %717 = vst [vmem:[#allocation2 + $0x104] sm:$0xf] %v685
        %718 = vst [vmem:[#allocation2 + $0x114] sm:$0xff] %v686
        %719 = vst [vmem:[#allocation2 + $0x11c] sm:$0xf] %v687
        %720 = vst [vmem:[#allocation2 + $0x12c] sm:$0xff] %v688
        %721 = vst [vmem:[#allocation2 + $0x134] sm:$0xf] %v689
        %722 = vst [vmem:[#allocation2 + $0x144] sm:$0xff] %v690
        %723 = vst [vmem:[#allocation2 + $0x14c] sm:$0xf] %v691
        %724 = vst [vmem:[#allocation2 + $0x15c] sm:$0xff] %v692
        %725 = vst [vmem:[#allocation2 + $0x164] sm:$0xf] %v693
        %726 = vst [vmem:[#allocation2 + $0x174] sm:$0xff] %v694
        %727 = vst [vmem:[#allocation2 + $0x17c] sm:$0xf] %v695
        %v728 = vld [vmem:[#allocation2] sm:$0xff]
        %v729 = vld [vmem:[#allocation2 + $0x8] sm:$0xff]
        %v730 = vld [vmem:[#allocation2 + $0x10] sm:$0xff]
        %v731 = vld [vmem:[#allocation2 + $0x18] sm:$0xff]
        %v732 = vld [vmem:[#allocation2 + $0x20] sm:$0xff]
        %v733 = vld [vmem:[#allocation2 + $0x28] sm:$0xff]
        %v734 = vld [vmem:[#allocation2 + $0x30] sm:$0xff]
        %v735 = vld [vmem:[#allocation2 + $0x38] sm:$0xff]
        %v736 = vld [vmem:[#allocation2 + $0x40] sm:$0xff]
        %v737 = vld [vmem:[#allocation2 + $0x48] sm:$0xff]
        %v738 = vld [vmem:[#allocation2 + $0x50] sm:$0xff]
        %v739 = vld [vmem:[#allocation2 + $0x58] sm:$0xff]
        %v740 = vld [vmem:[#allocation2 + $0x60] sm:$0xff]
        %v741 = vld [vmem:[#allocation2 + $0x68] sm:$0xff]
        %v742 = vld [vmem:[#allocation2 + $0x70] sm:$0xff]
        %v743 = vld [vmem:[#allocation2 + $0x78] sm:$0xff]
        %v744 = vld [vmem:[#allocation2 + $0x80] sm:$0xff]
        %v745 = vld [vmem:[#allocation2 + $0x88] sm:$0xff]
        %v746 = vld [vmem:[#allocation2 + $0x90] sm:$0xff]
        %v747 = vld [vmem:[#allocation2 + $0x98] sm:$0xff]
        %v748 = vld [vmem:[#allocation2 + $0xa0] sm:$0xff]
        %v749 = vld [vmem:[#allocation2 + $0xa8] sm:$0xff]
        %v750 = vld [vmem:[#allocation2 + $0xb0] sm:$0xff]
        %v751 = vld [vmem:[#allocation2 + $0xb8] sm:$0xff]
        %v752 = vld [vmem:[#allocation2 + $0xc0] sm:$0xff]
        %v753 = vld [vmem:[#allocation2 + $0xc8] sm:$0xff]
        %v754 = vld [vmem:[#allocation2 + $0xd0] sm:$0xff]
        %v755 = vld [vmem:[#allocation2 + $0xd8] sm:$0xff]
        %v756 = vld [vmem:[#allocation2 + $0xe0] sm:$0xff]
        %v757 = vld [vmem:[#allocation2 + $0xe8] sm:$0xff]
        %v758 = vld [vmem:[#allocation2 + $0xf0] sm:$0xff]
        %v759 = vld [vmem:[#allocation2 + $0xf8] sm:$0xff]
        %v760 = vld [vmem:[#allocation2 + $0x100] sm:$0xff]
        %v761 = vld [vmem:[#allocation2 + $0x108] sm:$0xff]
        %v762 = vld [vmem:[#allocation2 + $0x110] sm:$0xff]
        %v763 = vld [vmem:[#allocation2 + $0x118] sm:$0xff]
        %v764 = vld [vmem:[#allocation2 + $0x120] sm:$0xff]
        %v765 = vld [vmem:[#allocation2 + $0x128] sm:$0xff]
        %v766 = vld [vmem:[#allocation2 + $0x130] sm:$0xff]
        %v767 = vld [vmem:[#allocation2 + $0x138] sm:$0xff]
        %v768 = vld [vmem:[#allocation2 + $0x140] sm:$0xff]
        %v769 = vld [vmem:[#allocation2 + $0x148] sm:$0xff]
        %v770 = vld [vmem:[#allocation2 + $0x150] sm:$0xff]
        %v771 = vld [vmem:[#allocation2 + $0x158] sm:$0xff]
        %v772 = vld [vmem:[#allocation2 + $0x160] sm:$0xff]
        %v773 = vld [vmem:[#allocation2 + $0x168] sm:$0xff]
        %v774 = vld [vmem:[#allocation2 + $0x170] sm:$0xff]
        %v775 = vld [vmem:[#allocation2 + $0x178] sm:$0xff]
        %v776 = vld [vmem:[#allocation8] sm:$0xff]
        %v777 = vld [vmem:[#allocation8 + $0x8] sm:$0xff]
        %v778 = vld [vmem:[#allocation8 + $0x10] sm:$0xff]
        %v779 = vld [vmem:[#allocation8 + $0x18] sm:$0xff]
        %v780 = vld [vmem:[#allocation8 + $0x20] sm:$0xff]
        %v781 = vld [vmem:[#allocation8 + $0x28] sm:$0xff]
        %v782 = vld [vmem:[#allocation8 + $0x30] sm:$0xff]
        %v783 = vld [vmem:[#allocation8 + $0x38] sm:$0xff]
        %v784 = vld [vmem:[#allocation8 + $0x40] sm:$0xff]
        %v785 = vld [vmem:[#allocation8 + $0x48] sm:$0xff]
        %v786 = vld [vmem:[#allocation8 + $0x50] sm:$0xff]
        %v787 = vld [vmem:[#allocation8 + $0x58] sm:$0xff]
        %v788 = vld [vmem:[#allocation8 + $0x60] sm:$0xff]
        %v789 = vld [vmem:[#allocation8 + $0x68] sm:$0xff]
        %v790 = vld [vmem:[#allocation8 + $0x70] sm:$0xff]
        %v791 = vld [vmem:[#allocation8 + $0x78] sm:$0xff]
        %v792 = vld [vmem:[#allocation8 + $0x80] sm:$0xff]
        %v793 = vld [vmem:[#allocation8 + $0x88] sm:$0xff]
        %v794 = vld [vmem:[#allocation8 + $0x90] sm:$0xff]
        %v795 = vld [vmem:[#allocation8 + $0x98] sm:$0xff]
        %v796 = vld [vmem:[#allocation8 + $0xa0] sm:$0xff]
        %v797 = vld [vmem:[#allocation8 + $0xa8] sm:$0xff]
        %v798 = vld [vmem:[#allocation8 + $0xb0] sm:$0xff]
        %v799 = vld [vmem:[#allocation8 + $0xb8] sm:$0xff]
        %v800 = vld [vmem:[#allocation8 + $0xc0] sm:$0xff]
        %v801 = vld [vmem:[#allocation8 + $0xc8] sm:$0xff]
        %v802 = vld [vmem:[#allocation8 + $0xd0] sm:$0xff]
        %v803 = vld [vmem:[#allocation8 + $0xd8] sm:$0xff]
        %v804 = vld [vmem:[#allocation8 + $0xe0] sm:$0xff]
        %v805 = vld [vmem:[#allocation8 + $0xe8] sm:$0xff]
        %v806 = vld [vmem:[#allocation8 + $0xf0] sm:$0xff]
        %v807 = vld [vmem:[#allocation8 + $0xf8] sm:$0xff]
        %v808 = vld [vmem:[#allocation8 + $0x100] sm:$0xff]
        %v809 = vld [vmem:[#allocation8 + $0x108] sm:$0xff]
        %v810 = vld [vmem:[#allocation8 + $0x110] sm:$0xff]
        %v811 = vld [vmem:[#allocation8 + $0x118] sm:$0xff]
        %v812 = vld [vmem:[#allocation8 + $0x120] sm:$0xff]
        %v813 = vld [vmem:[#allocation8 + $0x128] sm:$0xff]
        %v814 = vld [vmem:[#allocation8 + $0x130] sm:$0xff]
        %v815 = vld [vmem:[#allocation8 + $0x138] sm:$0xff]
        %v816 = vld [vmem:[#allocation8 + $0x140] sm:$0xff]
        %v817 = vld [vmem:[#allocation8 + $0x148] sm:$0xff]
        %v818 = vld [vmem:[#allocation8 + $0x150] sm:$0xff]
        %v819 = vld [vmem:[#allocation8 + $0x158] sm:$0xff]
        %v820 = vld [vmem:[#allocation8 + $0x160] sm:$0xff]
        %v821 = vld [vmem:[#allocation8 + $0x168] sm:$0xff]
        %v822 = vld [vmem:[#allocation8 + $0x170] sm:$0xff]
        %v823 = vld [vmem:[#allocation8 + $0x178] sm:$0xff]
        %v824 = vld [vmem:[#allocation8 + $0x180] sm:$0xff]
        %v825 = vld [vmem:[#allocation8 + $0x188] sm:$0xff]
        %v826 = vld [vmem:[#allocation8 + $0x190] sm:$0xff]
        %v827 = vld [vmem:[#allocation8 + $0x198] sm:$0xff]
        %v828 = vld [vmem:[#allocation8 + $0x1a0] sm:$0xff]
        %v829 = vld [vmem:[#allocation8 + $0x1a8] sm:$0xff]
        %v830 = vld [vmem:[#allocation8 + $0x1b0] sm:$0xff]
        %v831 = vld [vmem:[#allocation8 + $0x1b8] sm:$0xff]
        %v832 = vld [vmem:[#allocation8 + $0x1c0] sm:$0xff]
        %v833 = vld [vmem:[#allocation8 + $0x1c8] sm:$0xff]
        %v834 = vld [vmem:[#allocation8 + $0x1d0] sm:$0xff]
        %v835 = vld [vmem:[#allocation8 + $0x1d8] sm:$0xff]
        %v836 = vld [vmem:[#allocation8 + $0x1e0] sm:$0xff]
        %v837 = vld [vmem:[#allocation8 + $0x1e8] sm:$0xff]
        %v838 = vld [vmem:[#allocation8 + $0x1f0] sm:$0xff]
        %v839 = vld [vmem:[#allocation8 + $0x1f8] sm:$0xff]
        %v840 = vld [vmem:[#allocation8 + $0x200] sm:$0xff]
        %v841 = vld [vmem:[#allocation8 + $0x208] sm:$0xff]
        %v842 = vld [vmem:[#allocation8 + $0x210] sm:$0xff]
        %v843 = vld [vmem:[#allocation8 + $0x218] sm:$0xff]
        %v844 = vld [vmem:[#allocation8 + $0x220] sm:$0xff]
        %v845 = vld [vmem:[#allocation8 + $0x228] sm:$0xff]
        %v846 = vld [vmem:[#allocation8 + $0x230] sm:$0xff]
        %v847 = vld [vmem:[#allocation8 + $0x238] sm:$0xff]
        %v848 = vld [vmem:[#allocation8 + $0x240] sm:$0xff]
        %v849 = vld [vmem:[#allocation8 + $0x248] sm:$0xff]
        %v850 = vld [vmem:[#allocation8 + $0x250] sm:$0xff]
        %v851 = vld [vmem:[#allocation8 + $0x258] sm:$0xff]
        %v852 = vld [vmem:[#allocation8 + $0x260] sm:$0xff]
        %v853 = vld [vmem:[#allocation8 + $0x268] sm:$0xff]
        %v854 = vld [vmem:[#allocation8 + $0x270] sm:$0xff]
        %v855 = vld [vmem:[#allocation8 + $0x278] sm:$0xff]
        %v856 = vld [vmem:[#allocation8 + $0x280] sm:$0xff]
        %v857 = vld [vmem:[#allocation8 + $0x288] sm:$0xff]
        %v858 = vld [vmem:[#allocation8 + $0x290] sm:$0xff]
        %v859 = vld [vmem:[#allocation8 + $0x298] sm:$0xff]
        %v860 = vld [vmem:[#allocation8 + $0x2a0] sm:$0xff]
        %v861 = vld [vmem:[#allocation8 + $0x2a8] sm:$0xff]
        %v862 = vld [vmem:[#allocation8 + $0x2b0] sm:$0xff]
        %v863 = vld [vmem:[#allocation8 + $0x2b8] sm:$0xff]
        %v864 = vld [vmem:[#allocation8 + $0x2c0] sm:$0xff]
        %v865 = vld [vmem:[#allocation8 + $0x2c8] sm:$0xff]
        %v866 = vld [vmem:[#allocation8 + $0x2d0] sm:$0xff]
        %v867 = vld [vmem:[#allocation8 + $0x2d8] sm:$0xff]
        %v868 = vld [vmem:[#allocation8 + $0x2e0] sm:$0xff]
        %v869 = vld [vmem:[#allocation8 + $0x2e8] sm:$0xff]
        %v870 = vld [vmem:[#allocation8 + $0x2f0] sm:$0xff]
        %v871 = vld [vmem:[#allocation8 + $0x2f8] sm:$0xff]
        %v872 = vld [vmem:[#allocation8 + $0x300] sm:$0xff]
        %v873 = vld [vmem:[#allocation8 + $0x308] sm:$0xff]
        %v874 = vld [vmem:[#allocation8 + $0x310] sm:$0xff]
        %v875 = vld [vmem:[#allocation8 + $0x318] sm:$0xff]
        %v876 = vld [vmem:[#allocation8 + $0x320] sm:$0xff]
        %v877 = vld [vmem:[#allocation8 + $0x328] sm:$0xff]
        %v878 = vld [vmem:[#allocation8 + $0x330] sm:$0xff]
        %v879 = vld [vmem:[#allocation8 + $0x338] sm:$0xff]
        %v880 = vld [vmem:[#allocation8 + $0x340] sm:$0xff]
        %v881 = vld [vmem:[#allocation8 + $0x348] sm:$0xff]
        %v882 = vld [vmem:[#allocation8 + $0x350] sm:$0xff]
        %v883 = vld [vmem:[#allocation8 + $0x358] sm:$0xff]
        %v884 = vld [vmem:[#allocation8 + $0x360] sm:$0xff]
        %v885 = vld [vmem:[#allocation8 + $0x368] sm:$0xff]
        %v886 = vld [vmem:[#allocation8 + $0x370] sm:$0xff]
        %v887 = vld [vmem:[#allocation8 + $0x378] sm:$0xff]
        %v888 = vld [vmem:[#allocation8 + $0x380] sm:$0xff]
        %v889 = vld [vmem:[#allocation8 + $0x388] sm:$0xff]
        %v890 = vld [vmem:[#allocation8 + $0x390] sm:$0xff]
        %v891 = vld [vmem:[#allocation8 + $0x398] sm:$0xff]
        %v892 = vld [vmem:[#allocation8 + $0x3a0] sm:$0xff]
        %v893 = vld [vmem:[#allocation8 + $0x3a8] sm:$0xff]
        %v894 = vld [vmem:[#allocation8 + $0x3b0] sm:$0xff]
        %v895 = vld [vmem:[#allocation8 + $0x3b8] sm:$0xff]
        %v896 = vld [vmem:[#allocation8 + $0x3c0] sm:$0xff]
        %v897 = vld [vmem:[#allocation8 + $0x3c8] sm:$0xff]
        %v898 = vld [vmem:[#allocation8 + $0x3d0] sm:$0xff]
        %v899 = vld [vmem:[#allocation8 + $0x3d8] sm:$0xff]
        %v900 = vld [vmem:[#allocation8 + $0x3e0] sm:$0xff]
        %v901 = vld [vmem:[#allocation8 + $0x3e8] sm:$0xff]
        %v902 = vld [vmem:[#allocation8 + $0x3f0] sm:$0xff]
        %v903 = vld [vmem:[#allocation8 + $0x3f8] sm:$0xff]
        %v904 = vld [vmem:[#allocation8 + $0x400] sm:$0xff]
        %v905 = vld [vmem:[#allocation8 + $0x408] sm:$0xff]
        %v906 = vld [vmem:[#allocation8 + $0x410] sm:$0xff]
        %v907 = vld [vmem:[#allocation8 + $0x418] sm:$0xff]
        %v908 = vld [vmem:[#allocation8 + $0x420] sm:$0xff]
        %v909 = vld [vmem:[#allocation8 + $0x428] sm:$0xff]
        %v910 = vld [vmem:[#allocation8 + $0x430] sm:$0xff]
        %v911 = vld [vmem:[#allocation8 + $0x438] sm:$0xff]
        %v912 = vld [vmem:[#allocation8 + $0x440] sm:$0xff]
        %v913 = vld [vmem:[#allocation8 + $0x448] sm:$0xff]
        %v914 = vld [vmem:[#allocation8 + $0x450] sm:$0xff]
        %v915 = vld [vmem:[#allocation8 + $0x458] sm:$0xff]
        %v916 = vld [vmem:[#allocation8 + $0x460] sm:$0xff]
        %v917 = vld [vmem:[#allocation8 + $0x468] sm:$0xff]
        %v918 = vld [vmem:[#allocation8 + $0x470] sm:$0xff]
        %v919 = vld [vmem:[#allocation8 + $0x478] sm:$0xff]
        %v920 = vld [vmem:[#allocation8 + $0x480] sm:$0xff]
        %v921 = vld [vmem:[#allocation8 + $0x488] sm:$0xff]
        %v922 = vld [vmem:[#allocation8 + $0x490] sm:$0xff]
        %v923 = vld [vmem:[#allocation8 + $0x498] sm:$0xff]
        %v924 = vld [vmem:[#allocation8 + $0x4a0] sm:$0xff]
        %v925 = vld [vmem:[#allocation8 + $0x4a8] sm:$0xff]
        %v926 = vld [vmem:[#allocation8 + $0x4b0] sm:$0xff]
        %v927 = vld [vmem:[#allocation8 + $0x4b8] sm:$0xff]
        %v928 = vld [vmem:[#allocation8 + $0x4c0] sm:$0xff]
        %v929 = vld [vmem:[#allocation8 + $0x4c8] sm:$0xff]
        %v930 = vld [vmem:[#allocation8 + $0x4d0] sm:$0xff]
        %v931 = vld [vmem:[#allocation8 + $0x4d8] sm:$0xff]
        %v932 = vld [vmem:[#allocation8 + $0x4e0] sm:$0xff]
        %v933 = vld [vmem:[#allocation8 + $0x4e8] sm:$0xff]
        %v934 = vld [vmem:[#allocation8 + $0x4f0] sm:$0xff]
        %v935 = vld [vmem:[#allocation8 + $0x4f8] sm:$0xff]
        %v936 = vld [vmem:[#allocation8 + $0x500] sm:$0xff]
        %v937 = vld [vmem:[#allocation8 + $0x508] sm:$0xff]
        %v938 = vld [vmem:[#allocation8 + $0x510] sm:$0xff]
        %v939 = vld [vmem:[#allocation8 + $0x518] sm:$0xff]
        %v940 = vld [vmem:[#allocation8 + $0x520] sm:$0xff]
        %v941 = vld [vmem:[#allocation8 + $0x528] sm:$0xff]
        %v942 = vld [vmem:[#allocation8 + $0x530] sm:$0xff]
        %v943 = vld [vmem:[#allocation8 + $0x538] sm:$0xff]
        %v944 = vld [vmem:[#allocation8 + $0x540] sm:$0xff]
        %v945 = vld [vmem:[#allocation8 + $0x548] sm:$0xff]
        %v946 = vld [vmem:[#allocation8 + $0x550] sm:$0xff]
        %v947 = vld [vmem:[#allocation8 + $0x558] sm:$0xff]
        %v948 = vld [vmem:[#allocation8 + $0x560] sm:$0xff]
        %v949 = vld [vmem:[#allocation8 + $0x568] sm:$0xff]
        %v950 = vld [vmem:[#allocation8 + $0x570] sm:$0xff]
        %v951 = vld [vmem:[#allocation8 + $0x578] sm:$0xff]
        %v952 = vld [vmem:[#allocation8 + $0x580] sm:$0xff]
        %v953 = vld [vmem:[#allocation8 + $0x588] sm:$0xff]
        %v954 = vld [vmem:[#allocation8 + $0x590] sm:$0xff]
        %v955 = vld [vmem:[#allocation8 + $0x598] sm:$0xff]
        %v956 = vld [vmem:[#allocation8 + $0x5a0] sm:$0xff]
        %v957 = vld [vmem:[#allocation8 + $0x5a8] sm:$0xff]
        %v958 = vld [vmem:[#allocation8 + $0x5b0] sm:$0xff]
        %v959 = vld [vmem:[#allocation8 + $0x5b8] sm:$0xff]
        %v960 = vld [vmem:[#allocation8 + $0x5c0] sm:$0xff]
        %v961 = vld [vmem:[#allocation8 + $0x5c8] sm:$0xff]
        %v962 = vld [vmem:[#allocation8 + $0x5d0] sm:$0xff]
        %v963 = vld [vmem:[#allocation8 + $0x5d8] sm:$0xff]
        %v964 = vld [vmem:[#allocation8 + $0x5e0] sm:$0xff]
        %v965 = vld [vmem:[#allocation8 + $0x5e8] sm:$0xff]
        %v966 = vld [vmem:[#allocation8 + $0x5f0] sm:$0xff]
        %v967 = vld [vmem:[#allocation8 + $0x5f8] sm:$0xff]
        %v968 = vld [vmem:[%s3] sm:$0xf]
        %v970 = vperm.slane %v968, 0
        %v971 = vperm.slane %v968, 1
        %v972 = vperm.slane %v968, 2
        %v973 = vperm.slane %v968, 3
        %v1026 = vunpack.c.l.b16 %v728
        %v1027 = vunpack.c.h.b16 %v728
        %v1028 = vunpack.c.l.b16 %v729
        %v1029 = vunpack.c.h.b16 %v729
        %v1030 = vunpack.c.l.b16 %v730
        %v1031 = vunpack.c.h.b16 %v730
        %v1032 = vunpack.c.l.b16 %v731
        %v1033 = vunpack.c.h.b16 %v731
        %v1034 = vunpack.c.l.b16 %v732
        %v1035 = vunpack.c.h.b16 %v732
        %v1036 = vunpack.c.l.b16 %v733
        %v1037 = vunpack.c.h.b16 %v733
        %v1038 = vunpack.c.l.b16 %v734
        %v1039 = vunpack.c.h.b16 %v734
        %v1040 = vunpack.c.l.b16 %v735
        %v1041 = vunpack.c.h.b16 %v735
        %v1042 = vunpack.c.l.b16 %v736
        %v1043 = vunpack.c.h.b16 %v736
        %v1044 = vunpack.c.l.b16 %v737
        %v1045 = vunpack.c.h.b16 %v737
        %v1046 = vunpack.c.l.b16 %v738
        %v1047 = vunpack.c.h.b16 %v738
        %v1048 = vunpack.c.l.b16 %v739
        %v1049 = vunpack.c.h.b16 %v739
        %v1050 = vunpack.c.l.b16 %v740
        %v1051 = vunpack.c.h.b16 %v740
        %v1052 = vunpack.c.l.b16 %v741
        %v1053 = vunpack.c.h.b16 %v741
        %v1054 = vunpack.c.l.b16 %v742
        %v1055 = vunpack.c.h.b16 %v742
        %v1056 = vunpack.c.l.b16 %v743
        %v1057 = vunpack.c.h.b16 %v743
        %v1058 = vunpack.c.l.b16 %v744
        %v1059 = vunpack.c.h.b16 %v744
        %v1060 = vunpack.c.l.b16 %v745
        %v1061 = vunpack.c.h.b16 %v745
        %v1062 = vunpack.c.l.b16 %v746
        %v1063 = vunpack.c.h.b16 %v746
        %v1064 = vunpack.c.l.b16 %v747
        %v1065 = vunpack.c.h.b16 %v747
        %v1066 = vunpack.c.l.b16 %v748
        %v1067 = vunpack.c.h.b16 %v748
        %v1068 = vunpack.c.l.b16 %v749
        %v1069 = vunpack.c.h.b16 %v749
        %v1070 = vunpack.c.l.b16 %v750
        %v1071 = vunpack.c.h.b16 %v750
        %v1072 = vunpack.c.l.b16 %v751
        %v1073 = vunpack.c.h.b16 %v751
        %v1074 = vunpack.c.l.b16 %v752
        %v1075 = vunpack.c.h.b16 %v752
        %v1076 = vunpack.c.l.b16 %v753
        %v1077 = vunpack.c.h.b16 %v753
        %v1078 = vunpack.c.l.b16 %v754
        %v1079 = vunpack.c.h.b16 %v754
        %v1080 = vunpack.c.l.b16 %v755
        %v1081 = vunpack.c.h.b16 %v755
        %v1082 = vunpack.c.l.b16 %v756
        %v1083 = vunpack.c.h.b16 %v756
        %v1084 = vunpack.c.l.b16 %v757
        %v1085 = vunpack.c.h.b16 %v757
        %v1086 = vunpack.c.l.b16 %v758
        %v1087 = vunpack.c.h.b16 %v758
        %v1088 = vunpack.c.l.b16 %v759
        %v1089 = vunpack.c.h.b16 %v759
        %v1090 = vunpack.c.l.b16 %v760
        %v1091 = vunpack.c.h.b16 %v760
        %v1092 = vunpack.c.l.b16 %v761
        %v1093 = vunpack.c.h.b16 %v761
        %v1094 = vunpack.c.l.b16 %v762
        %v1095 = vunpack.c.h.b16 %v762
        %v1096 = vunpack.c.l.b16 %v763
        %v1097 = vunpack.c.h.b16 %v763
        %v1098 = vunpack.c.l.b16 %v764
        %v1099 = vunpack.c.h.b16 %v764
        %v1100 = vunpack.c.l.b16 %v765
        %v1101 = vunpack.c.h.b16 %v765
        %v1102 = vunpack.c.l.b16 %v766
        %v1103 = vunpack.c.h.b16 %v766
        %v1104 = vunpack.c.l.b16 %v767
        %v1105 = vunpack.c.h.b16 %v767
        %v1106 = vunpack.c.l.b16 %v768
        %v1107 = vunpack.c.h.b16 %v768
        %v1108 = vunpack.c.l.b16 %v769
        %v1109 = vunpack.c.h.b16 %v769
        %v1110 = vunpack.c.l.b16 %v770
        %v1111 = vunpack.c.h.b16 %v770
        %v1112 = vunpack.c.l.b16 %v771
        %v1113 = vunpack.c.h.b16 %v771
        %v1114 = vunpack.c.l.b16 %v772
        %v1115 = vunpack.c.h.b16 %v772
        %v1116 = vunpack.c.l.b16 %v773
        %v1117 = vunpack.c.h.b16 %v773
        %v1118 = vunpack.c.l.b16 %v774
        %v1119 = vunpack.c.h.b16 %v774
        %v1120 = vunpack.c.l.b16 %v775
        %v1121 = vunpack.c.h.b16 %v775
        %v1122 = vpack.c.b16 %v1032, %v1026
        %v1123 = vpack.c.b16 %v1033, %v1027
        %v1124 = vpack.c.b16 %v1034, %v1028
        %v1125 = vpack.c.b16 %v1035, %v1029
        %v1126 = vpack.c.b16 %v1036, %v1030
        %v1127 = vpack.c.b16 %v1037, %v1031
        %v1128 = vpack.c.b16 %v1044, %v1038
        %v1129 = vpack.c.b16 %v1045, %v1039
        %v1130 = vpack.c.b16 %v1046, %v1040
        %v1131 = vpack.c.b16 %v1047, %v1041
        %v1132 = vpack.c.b16 %v1048, %v1042
        %v1133 = vpack.c.b16 %v1049, %v1043
        %v1134 = vpack.c.b16 %v1056, %v1050
        %v1135 = vpack.c.b16 %v1057, %v1051
        %v1136 = vpack.c.b16 %v1058, %v1052
        %v1137 = vpack.c.b16 %v1059, %v1053
        %v1138 = vpack.c.b16 %v1060, %v1054
        %v1139 = vpack.c.b16 %v1061, %v1055
        %v1140 = vpack.c.b16 %v1068, %v1062
        %v1141 = vpack.c.b16 %v1069, %v1063
        %v1142 = vpack.c.b16 %v1070, %v1064
        %v1143 = vpack.c.b16 %v1071, %v1065
        %v1144 = vpack.c.b16 %v1072, %v1066
        %v1145 = vpack.c.b16 %v1073, %v1067
        %v1146 = vpack.c.b16 %v1080, %v1074
        %v1147 = vpack.c.b16 %v1081, %v1075
        %v1148 = vpack.c.b16 %v1082, %v1076
        %v1149 = vpack.c.b16 %v1083, %v1077
        %v1150 = vpack.c.b16 %v1084, %v1078
        %v1151 = vpack.c.b16 %v1085, %v1079
        %v1152 = vpack.c.b16 %v1092, %v1086
        %v1153 = vpack.c.b16 %v1093, %v1087
        %v1154 = vpack.c.b16 %v1094, %v1088
        %v1155 = vpack.c.b16 %v1095, %v1089
        %v1156 = vpack.c.b16 %v1096, %v1090
        %v1157 = vpack.c.b16 %v1097, %v1091
        %v1158 = vpack.c.b16 %v1104, %v1098
        %v1159 = vpack.c.b16 %v1105, %v1099
        %v1160 = vpack.c.b16 %v1106, %v1100
        %v1161 = vpack.c.b16 %v1107, %v1101
        %v1162 = vpack.c.b16 %v1108, %v1102
        %v1163 = vpack.c.b16 %v1109, %v1103
        %v1164 = vpack.c.b16 %v1116, %v1110
        %v1165 = vpack.c.b16 %v1117, %v1111
        %v1166 = vpack.c.b16 %v1118, %v1112
        %v1167 = vpack.c.b16 %v1119, %v1113
        %v1168 = vpack.c.b16 %v1120, %v1114
        %v1169 = vpack.c.b16 %v1121, %v1115
        %v1410 = vunpack.c.l.b16 %v776
        %v1411 = vunpack.c.h.b16 %v776
        %v1412 = vunpack.c.l.b16 %v777
        %v1413 = vunpack.c.h.b16 %v777
        %v1414 = vunpack.c.l.b16 %v778
        %v1415 = vunpack.c.h.b16 %v778
        %v1416 = vunpack.c.l.b16 %v779
        %v1417 = vunpack.c.h.b16 %v779
        %v1418 = vunpack.c.l.b16 %v780
        %v1419 = vunpack.c.h.b16 %v780
        %v1420 = vunpack.c.l.b16 %v781
        %v1421 = vunpack.c.h.b16 %v781
        %v1422 = vunpack.c.l.b16 %v782
        %v1423 = vunpack.c.h.b16 %v782
        %v1424 = vunpack.c.l.b16 %v783
        %v1425 = vunpack.c.h.b16 %v783
        %v1426 = vunpack.c.l.b16 %v784
        %v1427 = vunpack.c.h.b16 %v784
        %v1428 = vunpack.c.l.b16 %v785
        %v1429 = vunpack.c.h.b16 %v785
        %v1430 = vunpack.c.l.b16 %v786
        %v1431 = vunpack.c.h.b16 %v786
        %v1432 = vunpack.c.l.b16 %v787
        %v1433 = vunpack.c.h.b16 %v787
        %v1434 = vunpack.c.l.b16 %v788
        %v1435 = vunpack.c.h.b16 %v788
        %v1436 = vunpack.c.l.b16 %v789
        %v1437 = vunpack.c.h.b16 %v789
        %v1438 = vunpack.c.l.b16 %v790
        %v1439 = vunpack.c.h.b16 %v790
        %v1440 = vunpack.c.l.b16 %v791
        %v1441 = vunpack.c.h.b16 %v791
        %v1442 = vunpack.c.l.b16 %v792
        %v1443 = vunpack.c.h.b16 %v792
        %v1444 = vunpack.c.l.b16 %v793
        %v1445 = vunpack.c.h.b16 %v793
        %v1446 = vunpack.c.l.b16 %v794
        %v1447 = vunpack.c.h.b16 %v794
        %v1448 = vunpack.c.l.b16 %v795
        %v1449 = vunpack.c.h.b16 %v795
        %v1450 = vunpack.c.l.b16 %v796
        %v1451 = vunpack.c.h.b16 %v796
        %v1452 = vunpack.c.l.b16 %v797
        %v1453 = vunpack.c.h.b16 %v797
        %v1454 = vunpack.c.l.b16 %v798
        %v1455 = vunpack.c.h.b16 %v798
        %v1456 = vunpack.c.l.b16 %v799
        %v1457 = vunpack.c.h.b16 %v799
        %v1458 = vunpack.c.l.b16 %v800
        %v1459 = vunpack.c.h.b16 %v800
        %v1460 = vunpack.c.l.b16 %v801
        %v1461 = vunpack.c.h.b16 %v801
        %v1462 = vunpack.c.l.b16 %v802
        %v1463 = vunpack.c.h.b16 %v802
        %v1464 = vunpack.c.l.b16 %v803
        %v1465 = vunpack.c.h.b16 %v803
        %v1466 = vunpack.c.l.b16 %v804
        %v1467 = vunpack.c.h.b16 %v804
        %v1468 = vunpack.c.l.b16 %v805
        %v1469 = vunpack.c.h.b16 %v805
        %v1470 = vunpack.c.l.b16 %v806
        %v1471 = vunpack.c.h.b16 %v806
        %v1472 = vunpack.c.l.b16 %v807
        %v1473 = vunpack.c.h.b16 %v807
        %v1474 = vunpack.c.l.b16 %v808
        %v1475 = vunpack.c.h.b16 %v808
        %v1476 = vunpack.c.l.b16 %v809
        %v1477 = vunpack.c.h.b16 %v809
        %v1478 = vunpack.c.l.b16 %v810
        %v1479 = vunpack.c.h.b16 %v810
        %v1480 = vunpack.c.l.b16 %v811
        %v1481 = vunpack.c.h.b16 %v811
        %v1482 = vunpack.c.l.b16 %v812
        %v1483 = vunpack.c.h.b16 %v812
        %v1484 = vunpack.c.l.b16 %v813
        %v1485 = vunpack.c.h.b16 %v813
        %v1486 = vunpack.c.l.b16 %v814
        %v1487 = vunpack.c.h.b16 %v814
        %v1488 = vunpack.c.l.b16 %v815
        %v1489 = vunpack.c.h.b16 %v815
        %v1490 = vunpack.c.l.b16 %v816
        %v1491 = vunpack.c.h.b16 %v816
        %v1492 = vunpack.c.l.b16 %v817
        %v1493 = vunpack.c.h.b16 %v817
        %v1494 = vunpack.c.l.b16 %v818
        %v1495 = vunpack.c.h.b16 %v818
        %v1496 = vunpack.c.l.b16 %v819
        %v1497 = vunpack.c.h.b16 %v819
        %v1498 = vunpack.c.l.b16 %v820
        %v1499 = vunpack.c.h.b16 %v820
        %v1500 = vunpack.c.l.b16 %v821
        %v1501 = vunpack.c.h.b16 %v821
        %v1502 = vunpack.c.l.b16 %v822
        %v1503 = vunpack.c.h.b16 %v822
        %v1504 = vunpack.c.l.b16 %v823
        %v1505 = vunpack.c.h.b16 %v823
        %v1506 = vunpack.c.l.b16 %v824
        %v1507 = vunpack.c.h.b16 %v824
        %v1508 = vunpack.c.l.b16 %v825
        %v1509 = vunpack.c.h.b16 %v825
        %v1510 = vunpack.c.l.b16 %v826
        %v1511 = vunpack.c.h.b16 %v826
        %v1512 = vunpack.c.l.b16 %v827
        %v1513 = vunpack.c.h.b16 %v827
        %v1514 = vunpack.c.l.b16 %v828
        %v1515 = vunpack.c.h.b16 %v828
        %v1516 = vunpack.c.l.b16 %v829
        %v1517 = vunpack.c.h.b16 %v829
        %v1518 = vunpack.c.l.b16 %v830
        %v1519 = vunpack.c.h.b16 %v830
        %v1520 = vunpack.c.l.b16 %v831
        %v1521 = vunpack.c.h.b16 %v831
        %v1522 = vunpack.c.l.b16 %v832
        %v1523 = vunpack.c.h.b16 %v832
        %v1524 = vunpack.c.l.b16 %v833
        %v1525 = vunpack.c.h.b16 %v833
        %v1526 = vunpack.c.l.b16 %v834
        %v1527 = vunpack.c.h.b16 %v834
        %v1528 = vunpack.c.l.b16 %v835
        %v1529 = vunpack.c.h.b16 %v835
        %v1530 = vunpack.c.l.b16 %v836
        %v1531 = vunpack.c.h.b16 %v836
        %v1532 = vunpack.c.l.b16 %v837
        %v1533 = vunpack.c.h.b16 %v837
        %v1534 = vunpack.c.l.b16 %v838
        %v1535 = vunpack.c.h.b16 %v838
        %v1536 = vunpack.c.l.b16 %v839
        %v1537 = vunpack.c.h.b16 %v839
        %v1538 = vunpack.c.l.b16 %v840
        %v1539 = vunpack.c.h.b16 %v840
        %v1540 = vunpack.c.l.b16 %v841
        %v1541 = vunpack.c.h.b16 %v841
        %v1542 = vunpack.c.l.b16 %v842
        %v1543 = vunpack.c.h.b16 %v842
        %v1544 = vunpack.c.l.b16 %v843
        %v1545 = vunpack.c.h.b16 %v843
        %v1546 = vunpack.c.l.b16 %v844
        %v1547 = vunpack.c.h.b16 %v844
        %v1548 = vunpack.c.l.b16 %v845
        %v1549 = vunpack.c.h.b16 %v845
        %v1550 = vunpack.c.l.b16 %v846
        %v1551 = vunpack.c.h.b16 %v846
        %v1552 = vunpack.c.l.b16 %v847
        %v1553 = vunpack.c.h.b16 %v847
        %v1554 = vunpack.c.l.b16 %v848
        %v1555 = vunpack.c.h.b16 %v848
        %v1556 = vunpack.c.l.b16 %v849
        %v1557 = vunpack.c.h.b16 %v849
        %v1558 = vunpack.c.l.b16 %v850
        %v1559 = vunpack.c.h.b16 %v850
        %v1560 = vunpack.c.l.b16 %v851
        %v1561 = vunpack.c.h.b16 %v851
        %v1562 = vunpack.c.l.b16 %v852
        %v1563 = vunpack.c.h.b16 %v852
        %v1564 = vunpack.c.l.b16 %v853
        %v1565 = vunpack.c.h.b16 %v853
        %v1566 = vunpack.c.l.b16 %v854
        %v1567 = vunpack.c.h.b16 %v854
        %v1568 = vunpack.c.l.b16 %v855
        %v1569 = vunpack.c.h.b16 %v855
        %v1570 = vunpack.c.l.b16 %v856
        %v1571 = vunpack.c.h.b16 %v856
        %v1572 = vunpack.c.l.b16 %v857
        %v1573 = vunpack.c.h.b16 %v857
        %v1574 = vunpack.c.l.b16 %v858
        %v1575 = vunpack.c.h.b16 %v858
        %v1576 = vunpack.c.l.b16 %v859
        %v1577 = vunpack.c.h.b16 %v859
        %v1578 = vunpack.c.l.b16 %v860
        %v1579 = vunpack.c.h.b16 %v860
        %v1580 = vunpack.c.l.b16 %v861
        %v1581 = vunpack.c.h.b16 %v861
        %v1582 = vunpack.c.l.b16 %v862
        %v1583 = vunpack.c.h.b16 %v862
        %v1584 = vunpack.c.l.b16 %v863
        %v1585 = vunpack.c.h.b16 %v863
        %v1586 = vunpack.c.l.b16 %v864
        %v1587 = vunpack.c.h.b16 %v864
        %v1588 = vunpack.c.l.b16 %v865
        %v1589 = vunpack.c.h.b16 %v865
        %v1590 = vunpack.c.l.b16 %v866
        %v1591 = vunpack.c.h.b16 %v866
        %v1592 = vunpack.c.l.b16 %v867
        %v1593 = vunpack.c.h.b16 %v867
        %v1594 = vunpack.c.l.b16 %v868
        %v1595 = vunpack.c.h.b16 %v868
        %v1596 = vunpack.c.l.b16 %v869
        %v1597 = vunpack.c.h.b16 %v869
        %v1598 = vunpack.c.l.b16 %v870
        %v1599 = vunpack.c.h.b16 %v870
        %v1600 = vunpack.c.l.b16 %v871
        %v1601 = vunpack.c.h.b16 %v871
        %v1602 = vunpack.c.l.b16 %v872
        %v1603 = vunpack.c.h.b16 %v872
        %v1604 = vunpack.c.l.b16 %v873
        %v1605 = vunpack.c.h.b16 %v873
        %v1606 = vunpack.c.l.b16 %v874
        %v1607 = vunpack.c.h.b16 %v874
        %v1608 = vunpack.c.l.b16 %v875
        %v1609 = vunpack.c.h.b16 %v875
        %v1610 = vunpack.c.l.b16 %v876
        %v1611 = vunpack.c.h.b16 %v876
        %v1612 = vunpack.c.l.b16 %v877
        %v1613 = vunpack.c.h.b16 %v877
        %v1614 = vunpack.c.l.b16 %v878
        %v1615 = vunpack.c.h.b16 %v878
        %v1616 = vunpack.c.l.b16 %v879
        %v1617 = vunpack.c.h.b16 %v879
        %v1618 = vunpack.c.l.b16 %v880
        %v1619 = vunpack.c.h.b16 %v880
        %v1620 = vunpack.c.l.b16 %v881
        %v1621 = vunpack.c.h.b16 %v881
        %v1622 = vunpack.c.l.b16 %v882
        %v1623 = vunpack.c.h.b16 %v882
        %v1624 = vunpack.c.l.b16 %v883
        %v1625 = vunpack.c.h.b16 %v883
        %v1626 = vunpack.c.l.b16 %v884
        %v1627 = vunpack.c.h.b16 %v884
        %v1628 = vunpack.c.l.b16 %v885
        %v1629 = vunpack.c.h.b16 %v885
        %v1630 = vunpack.c.l.b16 %v886
        %v1631 = vunpack.c.h.b16 %v886
        %v1632 = vunpack.c.l.b16 %v887
        %v1633 = vunpack.c.h.b16 %v887
        %v1634 = vunpack.c.l.b16 %v888
        %v1635 = vunpack.c.h.b16 %v888
        %v1636 = vunpack.c.l.b16 %v889
        %v1637 = vunpack.c.h.b16 %v889
        %v1638 = vunpack.c.l.b16 %v890
        %v1639 = vunpack.c.h.b16 %v890
        %v1640 = vunpack.c.l.b16 %v891
        %v1641 = vunpack.c.h.b16 %v891
        %v1642 = vunpack.c.l.b16 %v892
        %v1643 = vunpack.c.h.b16 %v892
        %v1644 = vunpack.c.l.b16 %v893
        %v1645 = vunpack.c.h.b16 %v893
        %v1646 = vunpack.c.l.b16 %v894
        %v1647 = vunpack.c.h.b16 %v894
        %v1648 = vunpack.c.l.b16 %v895
        %v1649 = vunpack.c.h.b16 %v895
        %v1650 = vunpack.c.l.b16 %v896
        %v1651 = vunpack.c.h.b16 %v896
        %v1652 = vunpack.c.l.b16 %v897
        %v1653 = vunpack.c.h.b16 %v897
        %v1654 = vunpack.c.l.b16 %v898
        %v1655 = vunpack.c.h.b16 %v898
        %v1656 = vunpack.c.l.b16 %v899
        %v1657 = vunpack.c.h.b16 %v899
        %v1658 = vunpack.c.l.b16 %v900
        %v1659 = vunpack.c.h.b16 %v900
        %v1660 = vunpack.c.l.b16 %v901
        %v1661 = vunpack.c.h.b16 %v901
        %v1662 = vunpack.c.l.b16 %v902
        %v1663 = vunpack.c.h.b16 %v902
        %v1664 = vunpack.c.l.b16 %v903
        %v1665 = vunpack.c.h.b16 %v903
        %v1666 = vunpack.c.l.b16 %v904
        %v1667 = vunpack.c.h.b16 %v904
        %v1668 = vunpack.c.l.b16 %v905
        %v1669 = vunpack.c.h.b16 %v905
        %v1670 = vunpack.c.l.b16 %v906
        %v1671 = vunpack.c.h.b16 %v906
        %v1672 = vunpack.c.l.b16 %v907
        %v1673 = vunpack.c.h.b16 %v907
        %v1674 = vunpack.c.l.b16 %v908
        %v1675 = vunpack.c.h.b16 %v908
        %v1676 = vunpack.c.l.b16 %v909
        %v1677 = vunpack.c.h.b16 %v909
        %v1678 = vunpack.c.l.b16 %v910
        %v1679 = vunpack.c.h.b16 %v910
        %v1680 = vunpack.c.l.b16 %v911
        %v1681 = vunpack.c.h.b16 %v911
        %v1682 = vunpack.c.l.b16 %v912
        %v1683 = vunpack.c.h.b16 %v912
        %v1684 = vunpack.c.l.b16 %v913
        %v1685 = vunpack.c.h.b16 %v913
        %v1686 = vunpack.c.l.b16 %v914
        %v1687 = vunpack.c.h.b16 %v914
        %v1688 = vunpack.c.l.b16 %v915
        %v1689 = vunpack.c.h.b16 %v915
        %v1690 = vunpack.c.l.b16 %v916
        %v1691 = vunpack.c.h.b16 %v916
        %v1692 = vunpack.c.l.b16 %v917
        %v1693 = vunpack.c.h.b16 %v917
        %v1694 = vunpack.c.l.b16 %v918
        %v1695 = vunpack.c.h.b16 %v918
        %v1696 = vunpack.c.l.b16 %v919
        %v1697 = vunpack.c.h.b16 %v919
        %v1698 = vunpack.c.l.b16 %v920
        %v1699 = vunpack.c.h.b16 %v920
        %v1700 = vunpack.c.l.b16 %v921
        %v1701 = vunpack.c.h.b16 %v921
        %v1702 = vunpack.c.l.b16 %v922
        %v1703 = vunpack.c.h.b16 %v922
        %v1704 = vunpack.c.l.b16 %v923
        %v1705 = vunpack.c.h.b16 %v923
        %v1706 = vunpack.c.l.b16 %v924
        %v1707 = vunpack.c.h.b16 %v924
        %v1708 = vunpack.c.l.b16 %v925
        %v1709 = vunpack.c.h.b16 %v925
        %v1710 = vunpack.c.l.b16 %v926
        %v1711 = vunpack.c.h.b16 %v926
        %v1712 = vunpack.c.l.b16 %v927
        %v1713 = vunpack.c.h.b16 %v927
        %v1714 = vunpack.c.l.b16 %v928
        %v1715 = vunpack.c.h.b16 %v928
        %v1716 = vunpack.c.l.b16 %v929
        %v1717 = vunpack.c.h.b16 %v929
        %v1718 = vunpack.c.l.b16 %v930
        %v1719 = vunpack.c.h.b16 %v930
        %v1720 = vunpack.c.l.b16 %v931
        %v1721 = vunpack.c.h.b16 %v931
        %v1722 = vunpack.c.l.b16 %v932
        %v1723 = vunpack.c.h.b16 %v932
        %v1724 = vunpack.c.l.b16 %v933
        %v1725 = vunpack.c.h.b16 %v933
        %v1726 = vunpack.c.l.b16 %v934
        %v1727 = vunpack.c.h.b16 %v934
        %v1728 = vunpack.c.l.b16 %v935
        %v1729 = vunpack.c.h.b16 %v935
        %v1730 = vunpack.c.l.b16 %v936
        %v1731 = vunpack.c.h.b16 %v936
        %v1732 = vunpack.c.l.b16 %v937
        %v1733 = vunpack.c.h.b16 %v937
        %v1734 = vunpack.c.l.b16 %v938
        %v1735 = vunpack.c.h.b16 %v938
        %v1736 = vunpack.c.l.b16 %v939
        %v1737 = vunpack.c.h.b16 %v939
        %v1738 = vunpack.c.l.b16 %v940
        %v1739 = vunpack.c.h.b16 %v940
        %v1740 = vunpack.c.l.b16 %v941
        %v1741 = vunpack.c.h.b16 %v941
        %v1742 = vunpack.c.l.b16 %v942
        %v1743 = vunpack.c.h.b16 %v942
        %v1744 = vunpack.c.l.b16 %v943
        %v1745 = vunpack.c.h.b16 %v943
        %v1746 = vunpack.c.l.b16 %v944
        %v1747 = vunpack.c.h.b16 %v944
        %v1748 = vunpack.c.l.b16 %v945
        %v1749 = vunpack.c.h.b16 %v945
        %v1750 = vunpack.c.l.b16 %v946
        %v1751 = vunpack.c.h.b16 %v946
        %v1752 = vunpack.c.l.b16 %v947
        %v1753 = vunpack.c.h.b16 %v947
        %v1754 = vunpack.c.l.b16 %v948
        %v1755 = vunpack.c.h.b16 %v948
        %v1756 = vunpack.c.l.b16 %v949
        %v1757 = vunpack.c.h.b16 %v949
        %v1758 = vunpack.c.l.b16 %v950
        %v1759 = vunpack.c.h.b16 %v950
        %v1760 = vunpack.c.l.b16 %v951
        %v1761 = vunpack.c.h.b16 %v951
        %v1762 = vunpack.c.l.b16 %v952
        %v1763 = vunpack.c.h.b16 %v952
        %v1764 = vunpack.c.l.b16 %v953
        %v1765 = vunpack.c.h.b16 %v953
        %v1766 = vunpack.c.l.b16 %v954
        %v1767 = vunpack.c.h.b16 %v954
        %v1768 = vunpack.c.l.b16 %v955
        %v1769 = vunpack.c.h.b16 %v955
        %v1770 = vunpack.c.l.b16 %v956
        %v1771 = vunpack.c.h.b16 %v956
        %v1772 = vunpack.c.l.b16 %v957
        %v1773 = vunpack.c.h.b16 %v957
        %v1774 = vunpack.c.l.b16 %v958
        %v1775 = vunpack.c.h.b16 %v958
        %v1776 = vunpack.c.l.b16 %v959
        %v1777 = vunpack.c.h.b16 %v959
        %v1778 = vunpack.c.l.b16 %v960
        %v1779 = vunpack.c.h.b16 %v960
        %v1780 = vunpack.c.l.b16 %v961
        %v1781 = vunpack.c.h.b16 %v961
        %v1782 = vunpack.c.l.b16 %v962
        %v1783 = vunpack.c.h.b16 %v962
        %v1784 = vunpack.c.l.b16 %v963
        %v1785 = vunpack.c.h.b16 %v963
        %v1786 = vunpack.c.l.b16 %v964
        %v1787 = vunpack.c.h.b16 %v964
        %v1788 = vunpack.c.l.b16 %v965
        %v1789 = vunpack.c.h.b16 %v965
        %v1790 = vunpack.c.l.b16 %v966
        %v1791 = vunpack.c.h.b16 %v966
        %v1792 = vunpack.c.l.b16 %v967
        %v1793 = vunpack.c.h.b16 %v967
        %v1794 = vpack.c.b16 %v1414, %v1410
        %v1795 = vpack.c.b16 %v1415, %v1411
        %v1796 = vpack.c.b16 %v1416, %v1412
        %v1797 = vpack.c.b16 %v1417, %v1413
        %v1798 = vpack.c.b16 %v1422, %v1418
        %v1799 = vpack.c.b16 %v1423, %v1419
        %v1800 = vpack.c.b16 %v1424, %v1420
        %v1801 = vpack.c.b16 %v1425, %v1421
        %v1802 = vpack.c.b16 %v1430, %v1426
        %v1803 = vpack.c.b16 %v1431, %v1427
        %v1804 = vpack.c.b16 %v1432, %v1428
        %v1805 = vpack.c.b16 %v1433, %v1429
        %v1806 = vpack.c.b16 %v1438, %v1434
        %v1807 = vpack.c.b16 %v1439, %v1435
        %v1808 = vpack.c.b16 %v1440, %v1436
        %v1809 = vpack.c.b16 %v1441, %v1437
        %v1810 = vpack.c.b16 %v1446, %v1442
        %v1811 = vpack.c.b16 %v1447, %v1443
        %v1812 = vpack.c.b16 %v1448, %v1444
        %v1813 = vpack.c.b16 %v1449, %v1445
        %v1814 = vpack.c.b16 %v1454, %v1450
        %v1815 = vpack.c.b16 %v1455, %v1451
        %v1816 = vpack.c.b16 %v1456, %v1452
        %v1817 = vpack.c.b16 %v1457, %v1453
        %v1818 = vpack.c.b16 %v1462, %v1458
        %v1819 = vpack.c.b16 %v1463, %v1459
        %v1820 = vpack.c.b16 %v1464, %v1460
        %v1821 = vpack.c.b16 %v1465, %v1461
        %v1822 = vpack.c.b16 %v1470, %v1466
        %v1823 = vpack.c.b16 %v1471, %v1467
        %v1824 = vpack.c.b16 %v1472, %v1468
        %v1825 = vpack.c.b16 %v1473, %v1469
        %v1826 = vpack.c.b16 %v1478, %v1474
        %v1827 = vpack.c.b16 %v1479, %v1475
        %v1828 = vpack.c.b16 %v1480, %v1476
        %v1829 = vpack.c.b16 %v1481, %v1477
        %v1830 = vpack.c.b16 %v1486, %v1482
        %v1831 = vpack.c.b16 %v1487, %v1483
        %v1832 = vpack.c.b16 %v1488, %v1484
        %v1833 = vpack.c.b16 %v1489, %v1485
        %v1834 = vpack.c.b16 %v1494, %v1490
        %v1835 = vpack.c.b16 %v1495, %v1491
        %v1836 = vpack.c.b16 %v1496, %v1492
        %v1837 = vpack.c.b16 %v1497, %v1493
        %v1838 = vpack.c.b16 %v1502, %v1498
        %v1839 = vpack.c.b16 %v1503, %v1499
        %v1840 = vpack.c.b16 %v1504, %v1500
        %v1841 = vpack.c.b16 %v1505, %v1501
        %v1842 = vpack.c.b16 %v1510, %v1506
        %v1843 = vpack.c.b16 %v1511, %v1507
        %v1844 = vpack.c.b16 %v1512, %v1508
        %v1845 = vpack.c.b16 %v1513, %v1509
        %v1846 = vpack.c.b16 %v1518, %v1514
        %v1847 = vpack.c.b16 %v1519, %v1515
        %v1848 = vpack.c.b16 %v1520, %v1516
        %v1849 = vpack.c.b16 %v1521, %v1517
        %v1850 = vpack.c.b16 %v1526, %v1522
        %v1851 = vpack.c.b16 %v1527, %v1523
        %v1852 = vpack.c.b16 %v1528, %v1524
        %v1853 = vpack.c.b16 %v1529, %v1525
        %v1854 = vpack.c.b16 %v1534, %v1530
        %v1855 = vpack.c.b16 %v1535, %v1531
        %v1856 = vpack.c.b16 %v1536, %v1532
        %v1857 = vpack.c.b16 %v1537, %v1533
        %v1858 = vpack.c.b16 %v1542, %v1538
        %v1859 = vpack.c.b16 %v1543, %v1539
        %v1860 = vpack.c.b16 %v1544, %v1540
        %v1861 = vpack.c.b16 %v1545, %v1541
        %v1862 = vpack.c.b16 %v1550, %v1546
        %v1863 = vpack.c.b16 %v1551, %v1547
        %v1864 = vpack.c.b16 %v1552, %v1548
        %v1865 = vpack.c.b16 %v1553, %v1549
        %v1866 = vpack.c.b16 %v1558, %v1554
        %v1867 = vpack.c.b16 %v1559, %v1555
        %v1868 = vpack.c.b16 %v1560, %v1556
        %v1869 = vpack.c.b16 %v1561, %v1557
        %v1870 = vpack.c.b16 %v1566, %v1562
        %v1871 = vpack.c.b16 %v1567, %v1563
        %v1872 = vpack.c.b16 %v1568, %v1564
        %v1873 = vpack.c.b16 %v1569, %v1565
        %v1874 = vpack.c.b16 %v1574, %v1570
        %v1875 = vpack.c.b16 %v1575, %v1571
        %v1876 = vpack.c.b16 %v1576, %v1572
        %v1877 = vpack.c.b16 %v1577, %v1573
        %v1878 = vpack.c.b16 %v1582, %v1578
        %v1879 = vpack.c.b16 %v1583, %v1579
        %v1880 = vpack.c.b16 %v1584, %v1580
        %v1881 = vpack.c.b16 %v1585, %v1581
        %v1882 = vpack.c.b16 %v1590, %v1586
        %v1883 = vpack.c.b16 %v1591, %v1587
        %v1884 = vpack.c.b16 %v1592, %v1588
        %v1885 = vpack.c.b16 %v1593, %v1589
        %v1886 = vpack.c.b16 %v1598, %v1594
        %v1887 = vpack.c.b16 %v1599, %v1595
        %v1888 = vpack.c.b16 %v1600, %v1596
        %v1889 = vpack.c.b16 %v1601, %v1597
        %v1890 = vpack.c.b16 %v1606, %v1602
        %v1891 = vpack.c.b16 %v1607, %v1603
        %v1892 = vpack.c.b16 %v1608, %v1604
        %v1893 = vpack.c.b16 %v1609, %v1605
        %v1894 = vpack.c.b16 %v1614, %v1610
        %v1895 = vpack.c.b16 %v1615, %v1611
        %v1896 = vpack.c.b16 %v1616, %v1612
        %v1897 = vpack.c.b16 %v1617, %v1613
        %v1898 = vpack.c.b16 %v1622, %v1618
        %v1899 = vpack.c.b16 %v1623, %v1619
        %v1900 = vpack.c.b16 %v1624, %v1620
        %v1901 = vpack.c.b16 %v1625, %v1621
        %v1902 = vpack.c.b16 %v1630, %v1626
        %v1903 = vpack.c.b16 %v1631, %v1627
        %v1904 = vpack.c.b16 %v1632, %v1628
        %v1905 = vpack.c.b16 %v1633, %v1629
        %v1906 = vpack.c.b16 %v1638, %v1634
        %v1907 = vpack.c.b16 %v1639, %v1635
        %v1908 = vpack.c.b16 %v1640, %v1636
        %v1909 = vpack.c.b16 %v1641, %v1637
        %v1910 = vpack.c.b16 %v1646, %v1642
        %v1911 = vpack.c.b16 %v1647, %v1643
        %v1912 = vpack.c.b16 %v1648, %v1644
        %v1913 = vpack.c.b16 %v1649, %v1645
        %v1914 = vpack.c.b16 %v1654, %v1650
        %v1915 = vpack.c.b16 %v1655, %v1651
        %v1916 = vpack.c.b16 %v1656, %v1652
        %v1917 = vpack.c.b16 %v1657, %v1653
        %v1918 = vpack.c.b16 %v1662, %v1658
        %v1919 = vpack.c.b16 %v1663, %v1659
        %v1920 = vpack.c.b16 %v1664, %v1660
        %v1921 = vpack.c.b16 %v1665, %v1661
        %v1922 = vpack.c.b16 %v1670, %v1666
        %v1923 = vpack.c.b16 %v1671, %v1667
        %v1924 = vpack.c.b16 %v1672, %v1668
        %v1925 = vpack.c.b16 %v1673, %v1669
        %v1926 = vpack.c.b16 %v1678, %v1674
        %v1927 = vpack.c.b16 %v1679, %v1675
        %v1928 = vpack.c.b16 %v1680, %v1676
        %v1929 = vpack.c.b16 %v1681, %v1677
        %v1930 = vpack.c.b16 %v1686, %v1682
        %v1931 = vpack.c.b16 %v1687, %v1683
        %v1932 = vpack.c.b16 %v1688, %v1684
        %v1933 = vpack.c.b16 %v1689, %v1685
        %v1934 = vpack.c.b16 %v1694, %v1690
        %v1935 = vpack.c.b16 %v1695, %v1691
        %v1936 = vpack.c.b16 %v1696, %v1692
        %v1937 = vpack.c.b16 %v1697, %v1693
        %v1938 = vpack.c.b16 %v1702, %v1698
        %v1939 = vpack.c.b16 %v1703, %v1699
        %v1940 = vpack.c.b16 %v1704, %v1700
        %v1941 = vpack.c.b16 %v1705, %v1701
        %v1942 = vpack.c.b16 %v1710, %v1706
        %v1943 = vpack.c.b16 %v1711, %v1707
        %v1944 = vpack.c.b16 %v1712, %v1708
        %v1945 = vpack.c.b16 %v1713, %v1709
        %v1946 = vpack.c.b16 %v1718, %v1714
        %v1947 = vpack.c.b16 %v1719, %v1715
        %v1948 = vpack.c.b16 %v1720, %v1716
        %v1949 = vpack.c.b16 %v1721, %v1717
        %v1950 = vpack.c.b16 %v1726, %v1722
        %v1951 = vpack.c.b16 %v1727, %v1723
        %v1952 = vpack.c.b16 %v1728, %v1724
        %v1953 = vpack.c.b16 %v1729, %v1725
        %v1954 = vpack.c.b16 %v1734, %v1730
        %v1955 = vpack.c.b16 %v1735, %v1731
        %v1956 = vpack.c.b16 %v1736, %v1732
        %v1957 = vpack.c.b16 %v1737, %v1733
        %v1958 = vpack.c.b16 %v1742, %v1738
        %v1959 = vpack.c.b16 %v1743, %v1739
        %v1960 = vpack.c.b16 %v1744, %v1740
        %v1961 = vpack.c.b16 %v1745, %v1741
        %v1962 = vpack.c.b16 %v1750, %v1746
        %v1963 = vpack.c.b16 %v1751, %v1747
        %v1964 = vpack.c.b16 %v1752, %v1748
        %v1965 = vpack.c.b16 %v1753, %v1749
        %v1966 = vpack.c.b16 %v1758, %v1754
        %v1967 = vpack.c.b16 %v1759, %v1755
        %v1968 = vpack.c.b16 %v1760, %v1756
        %v1969 = vpack.c.b16 %v1761, %v1757
        %v1970 = vpack.c.b16 %v1766, %v1762
        %v1971 = vpack.c.b16 %v1767, %v1763
        %v1972 = vpack.c.b16 %v1768, %v1764
        %v1973 = vpack.c.b16 %v1769, %v1765
        %v1974 = vpack.c.b16 %v1774, %v1770
        %v1975 = vpack.c.b16 %v1775, %v1771
        %v1976 = vpack.c.b16 %v1776, %v1772
        %v1977 = vpack.c.b16 %v1777, %v1773
        %v1978 = vpack.c.b16 %v1782, %v1778
        %v1979 = vpack.c.b16 %v1783, %v1779
        %v1980 = vpack.c.b16 %v1784, %v1780
        %v1981 = vpack.c.b16 %v1785, %v1781
        %v1982 = vpack.c.b16 %v1790, %v1786
        %v1983 = vpack.c.b16 %v1791, %v1787
        %v1984 = vpack.c.b16 %v1792, %v1788
        %v1985 = vpack.c.b16 %v1793, %v1789
        %2178 = vmatpush.bf16.msra.mxu0 %v1822
        %2179 = vmatpush.bf16.msra.mxu0 %v1818
        %2180 = vmatpush.bf16.msra.mxu0 %v1814
        %2181 = vmatpush.bf16.msra.mxu0 %v1810
        %2182 = vmatpush.bf16.msra.mxu0 %v1806
        %2183 = vmatpush.bf16.msra.mxu0 %v1802
        %2184 = vmatpush.bf16.msra.mxu0 %v1798
        %2185 = vmatpush.bf16.msra.mxu0 %v1794
        %2186 = vmatmul.bf16.gmra.mxu0 %v1122
        %v2187 = vpop.f32.mrf.mxu0
        %v2188 = vadd.f32 %v970, %v2187
        %v2189 = vpop.f32.mrf.mxu0
        %v2190 = vadd.f32 %v970, %v2189
        %2191 = vmatmul.bf16.gmra.mxu0 %v1128
        %v2192 = vpop.f32.mrf.mxu0
        %v2193 = vadd.f32 %v970, %v2192
        %v2194 = vpop.f32.mrf.mxu0
        %v2195 = vadd.f32 %v970, %v2194
        %2196 = vmatmul.bf16.gmra.mxu0 %v1134
        %v2197 = vpop.f32.mrf.mxu0
        %v2198 = vadd.f32 %v970, %v2197
        %v2199 = vpop.f32.mrf.mxu0
        %v2200 = vadd.f32 %v970, %v2199
        %2201 = vmatmul.bf16.gmra.mxu0 %v1140
        %v2202 = vpop.f32.mrf.mxu0
        %v2203 = vadd.f32 %v970, %v2202
        %v2204 = vpop.f32.mrf.mxu0
        %v2205 = vadd.f32 %v970, %v2204
        %2206 = vmatmul.bf16.gmra.mxu0 %v1146
        %v2207 = vpop.f32.mrf.mxu0
        %v2208 = vadd.f32 %v970, %v2207
        %v2209 = vpop.f32.mrf.mxu0
        %v2210 = vadd.f32 %v970, %v2209
        %2211 = vmatmul.bf16.gmra.mxu0 %v1152
        %v2212 = vpop.f32.mrf.mxu0
        %v2213 = vadd.f32 %v970, %v2212
        %v2214 = vpop.f32.mrf.mxu0
        %v2215 = vadd.f32 %v970, %v2214
        %2216 = vmatmul.bf16.gmra.mxu0 %v1158
        %v2217 = vpop.f32.mrf.mxu0
        %v2218 = vadd.f32 %v970, %v2217
        %v2219 = vpop.f32.mrf.mxu0
        %v2220 = vadd.f32 %v970, %v2219
        %2221 = vmatmul.bf16.gmra.mxu0 %v1164
        %v2222 = vpop.f32.mrf.mxu0
        %v2223 = vadd.f32 %v970, %v2222
        %v2224 = vpop.f32.mrf.mxu0
        %v2225 = vadd.f32 %v970, %v2224
        %2226 = vdwg.mxu0
        %2227 = vmatpush.bf16.msra.mxu0 %v1854
        %2228 = vmatpush.bf16.msra.mxu0 %v1850
        %2229 = vmatpush.bf16.msra.mxu0 %v1846
        %2230 = vmatpush.bf16.msra.mxu0 %v1842
        %2231 = vmatpush.bf16.msra.mxu0 %v1838
        %2232 = vmatpush.bf16.msra.mxu0 %v1834
        %2233 = vmatpush.bf16.msra.mxu0 %v1830
        %2234 = vmatpush.bf16.msra.mxu0 %v1826
        %2235 = vmatmul.bf16.gmra.mxu0 %v1123
        %v2236 = vpop.f32.mrf.mxu0
        %v2237 = vadd.f32 %v2188, %v2236
        %v2238 = vpop.f32.mrf.mxu0
        %v2239 = vadd.f32 %v2190, %v2238
        %2240 = vmatmul.bf16.gmra.mxu0 %v1129
        %v2241 = vpop.f32.mrf.mxu0
        %v2242 = vadd.f32 %v2193, %v2241
        %v2243 = vpop.f32.mrf.mxu0
        %v2244 = vadd.f32 %v2195, %v2243
        %2245 = vmatmul.bf16.gmra.mxu0 %v1135
        %v2246 = vpop.f32.mrf.mxu0
        %v2247 = vadd.f32 %v2198, %v2246
        %v2248 = vpop.f32.mrf.mxu0
        %v2249 = vadd.f32 %v2200, %v2248
        %2250 = vmatmul.bf16.gmra.mxu0 %v1141
        %v2251 = vpop.f32.mrf.mxu0
        %v2252 = vadd.f32 %v2203, %v2251
        %v2253 = vpop.f32.mrf.mxu0
        %v2254 = vadd.f32 %v2205, %v2253
        %2255 = vmatmul.bf16.gmra.mxu0 %v1147
        %v2256 = vpop.f32.mrf.mxu0
        %v2257 = vadd.f32 %v2208, %v2256
        %v2258 = vpop.f32.mrf.mxu0
        %v2259 = vadd.f32 %v2210, %v2258
        %2260 = vmatmul.bf16.gmra.mxu0 %v1153
        %v2261 = vpop.f32.mrf.mxu0
        %v2262 = vadd.f32 %v2213, %v2261
        %v2263 = vpop.f32.mrf.mxu0
        %v2264 = vadd.f32 %v2215, %v2263
        %2265 = vmatmul.bf16.gmra.mxu0 %v1159
        %v2266 = vpop.f32.mrf.mxu0
        %v2267 = vadd.f32 %v2218, %v2266
        %v2268 = vpop.f32.mrf.mxu0
        %v2269 = vadd.f32 %v2220, %v2268
        %2270 = vmatmul.bf16.gmra.mxu0 %v1165
        %v2271 = vpop.f32.mrf.mxu0
        %v2272 = vadd.f32 %v2223, %v2271
        %v2273 = vpop.f32.mrf.mxu0
        %v2274 = vadd.f32 %v2225, %v2273
        %2275 = vdwg.mxu0
        %2276 = vmatpush.bf16.msra.mxu0 %v1886
        %2277 = vmatpush.bf16.msra.mxu0 %v1882
        %2278 = vmatpush.bf16.msra.mxu0 %v1878
        %2279 = vmatpush.bf16.msra.mxu0 %v1874
        %2280 = vmatpush.bf16.msra.mxu0 %v1870
        %2281 = vmatpush.bf16.msra.mxu0 %v1866
        %2282 = vmatpush.bf16.msra.mxu0 %v1862
        %2283 = vmatpush.bf16.msra.mxu0 %v1858
        %2284 = vmatmul.bf16.gmra.mxu0 %v1124
        %v2285 = vpop.f32.mrf.mxu0
        %v2286 = vadd.f32 %v2237, %v2285
        %v2287 = vpop.f32.mrf.mxu0
        %v2288 = vadd.f32 %v2239, %v2287
        %2289 = vmatmul.bf16.gmra.mxu0 %v1130
        %v2290 = vpop.f32.mrf.mxu0
        %v2291 = vadd.f32 %v2242, %v2290
        %v2292 = vpop.f32.mrf.mxu0
        %v2293 = vadd.f32 %v2244, %v2292
        %2294 = vmatmul.bf16.gmra.mxu0 %v1136
        %v2295 = vpop.f32.mrf.mxu0
        %v2296 = vadd.f32 %v2247, %v2295
        %v2297 = vpop.f32.mrf.mxu0
        %v2298 = vadd.f32 %v2249, %v2297
        %2299 = vmatmul.bf16.gmra.mxu0 %v1142
        %v2300 = vpop.f32.mrf.mxu0
        %v2301 = vadd.f32 %v2252, %v2300
        %v2302 = vpop.f32.mrf.mxu0
        %v2303 = vadd.f32 %v2254, %v2302
        %2304 = vmatmul.bf16.gmra.mxu0 %v1148
        %v2305 = vpop.f32.mrf.mxu0
        %v2306 = vadd.f32 %v2257, %v2305
        %v2307 = vpop.f32.mrf.mxu0
        %v2308 = vadd.f32 %v2259, %v2307
        %2309 = vmatmul.bf16.gmra.mxu0 %v1154
        %v2310 = vpop.f32.mrf.mxu0
        %v2311 = vadd.f32 %v2262, %v2310
        %v2312 = vpop.f32.mrf.mxu0
        %v2313 = vadd.f32 %v2264, %v2312
        %2314 = vmatmul.bf16.gmra.mxu0 %v1160
        %v2315 = vpop.f32.mrf.mxu0
        %v2316 = vadd.f32 %v2267, %v2315
        %v2317 = vpop.f32.mrf.mxu0
        %v2318 = vadd.f32 %v2269, %v2317
        %2319 = vmatmul.bf16.gmra.mxu0 %v1166
        %v2320 = vpop.f32.mrf.mxu0
        %v2321 = vadd.f32 %v2272, %v2320
        %v2322 = vpop.f32.mrf.mxu0
        %v2323 = vadd.f32 %v2274, %v2322
        %2324 = vdwg.mxu0
        %2325 = vmatpush.bf16.msra.mxu0 %v1918
        %2326 = vmatpush.bf16.msra.mxu0 %v1914
        %2327 = vmatpush.bf16.msra.mxu0 %v1910
        %2328 = vmatpush.bf16.msra.mxu0 %v1906
        %2329 = vmatpush.bf16.msra.mxu0 %v1902
        %2330 = vmatpush.bf16.msra.mxu0 %v1898
        %2331 = vmatpush.bf16.msra.mxu0 %v1894
        %2332 = vmatpush.bf16.msra.mxu0 %v1890
        %2333 = vmatmul.bf16.gmra.mxu0 %v1125
        %v2334 = vpop.f32.mrf.mxu0
        %v2335 = vadd.f32 %v2286, %v2334
        %v2336 = vpop.f32.mrf.mxu0
        %v2337 = vadd.f32 %v2288, %v2336
        %2338 = vmatmul.bf16.gmra.mxu0 %v1131
        %v2339 = vpop.f32.mrf.mxu0
        %v2340 = vadd.f32 %v2291, %v2339
        %v2341 = vpop.f32.mrf.mxu0
        %v2342 = vadd.f32 %v2293, %v2341
        %2343 = vmatmul.bf16.gmra.mxu0 %v1137
        %v2344 = vpop.f32.mrf.mxu0
        %v2345 = vadd.f32 %v2296, %v2344
        %v2346 = vpop.f32.mrf.mxu0
        %v2347 = vadd.f32 %v2298, %v2346
        %2348 = vmatmul.bf16.gmra.mxu0 %v1143
        %v2349 = vpop.f32.mrf.mxu0
        %v2350 = vadd.f32 %v2301, %v2349
        %v2351 = vpop.f32.mrf.mxu0
        %v2352 = vadd.f32 %v2303, %v2351
        %2353 = vmatmul.bf16.gmra.mxu0 %v1149
        %v2354 = vpop.f32.mrf.mxu0
        %v2355 = vadd.f32 %v2306, %v2354
        %v2356 = vpop.f32.mrf.mxu0
        %v2357 = vadd.f32 %v2308, %v2356
        %2358 = vmatmul.bf16.gmra.mxu0 %v1155
        %v2359 = vpop.f32.mrf.mxu0
        %v2360 = vadd.f32 %v2311, %v2359
        %v2361 = vpop.f32.mrf.mxu0
        %v2362 = vadd.f32 %v2313, %v2361
        %2363 = vmatmul.bf16.gmra.mxu0 %v1161
        %v2364 = vpop.f32.mrf.mxu0
        %v2365 = vadd.f32 %v2316, %v2364
        %v2366 = vpop.f32.mrf.mxu0
        %v2367 = vadd.f32 %v2318, %v2366
        %2368 = vmatmul.bf16.gmra.mxu0 %v1167
        %v2369 = vpop.f32.mrf.mxu0
        %v2370 = vadd.f32 %v2321, %v2369
        %v2371 = vpop.f32.mrf.mxu0
        %v2372 = vadd.f32 %v2323, %v2371
        %2373 = vdwg.mxu0
        %2374 = vmatpush.bf16.msra.mxu0 %v1950
        %2375 = vmatpush.bf16.msra.mxu0 %v1946
        %2376 = vmatpush.bf16.msra.mxu0 %v1942
        %2377 = vmatpush.bf16.msra.mxu0 %v1938
        %2378 = vmatpush.bf16.msra.mxu0 %v1934
        %2379 = vmatpush.bf16.msra.mxu0 %v1930
        %2380 = vmatpush.bf16.msra.mxu0 %v1926
        %2381 = vmatpush.bf16.msra.mxu0 %v1922
        %2382 = vmatmul.bf16.gmra.mxu0 %v1126
        %v2383 = vpop.f32.mrf.mxu0
        %v2384 = vadd.f32 %v2335, %v2383
        %v2385 = vpop.f32.mrf.mxu0
        %v2386 = vadd.f32 %v2337, %v2385
        %2387 = vmatmul.bf16.gmra.mxu0 %v1132
        %v2388 = vpop.f32.mrf.mxu0
        %v2389 = vadd.f32 %v2340, %v2388
        %v2390 = vpop.f32.mrf.mxu0
        %v2391 = vadd.f32 %v2342, %v2390
        %2392 = vmatmul.bf16.gmra.mxu0 %v1138
        %v2393 = vpop.f32.mrf.mxu0
        %v2394 = vadd.f32 %v2345, %v2393
        %v2395 = vpop.f32.mrf.mxu0
        %v2396 = vadd.f32 %v2347, %v2395
        %2397 = vmatmul.bf16.gmra.mxu0 %v1144
        %v2398 = vpop.f32.mrf.mxu0
        %v2399 = vadd.f32 %v2350, %v2398
        %v2400 = vpop.f32.mrf.mxu0
        %v2401 = vadd.f32 %v2352, %v2400
        %2402 = vmatmul.bf16.gmra.mxu0 %v1150
        %v2403 = vpop.f32.mrf.mxu0
        %v2404 = vadd.f32 %v2355, %v2403
        %v2405 = vpop.f32.mrf.mxu0
        %v2406 = vadd.f32 %v2357, %v2405
        %2407 = vmatmul.bf16.gmra.mxu0 %v1156
        %v2408 = vpop.f32.mrf.mxu0
        %v2409 = vadd.f32 %v2360, %v2408
        %v2410 = vpop.f32.mrf.mxu0
        %v2411 = vadd.f32 %v2362, %v2410
        %2412 = vmatmul.bf16.gmra.mxu0 %v1162
        %v2413 = vpop.f32.mrf.mxu0
        %v2414 = vadd.f32 %v2365, %v2413
        %v2415 = vpop.f32.mrf.mxu0
        %v2416 = vadd.f32 %v2367, %v2415
        %2417 = vmatmul.bf16.gmra.mxu0 %v1168
        %v2418 = vpop.f32.mrf.mxu0
        %v2419 = vadd.f32 %v2370, %v2418
        %v2420 = vpop.f32.mrf.mxu0
        %v2421 = vadd.f32 %v2372, %v2420
        %2422 = vdwg.mxu0
        %2423 = vmatpush.bf16.msra.mxu0 %v1982
        %2424 = vmatpush.bf16.msra.mxu0 %v1978
        %2425 = vmatpush.bf16.msra.mxu0 %v1974
        %2426 = vmatpush.bf16.msra.mxu0 %v1970
        %2427 = vmatpush.bf16.msra.mxu0 %v1966
        %2428 = vmatpush.bf16.msra.mxu0 %v1962
        %2429 = vmatpush.bf16.msra.mxu0 %v1958
        %2430 = vmatpush.bf16.msra.mxu0 %v1954
        %2431 = vmatmul.bf16.gmra.mxu0 %v1127
        %v2432 = vpop.f32.mrf.mxu0
        %v2433 = vadd.f32 %v2384, %v2432
        %v2434 = vpop.f32.mrf.mxu0
        %v2435 = vadd.f32 %v2386, %v2434
        %2436 = vmatmul.bf16.gmra.mxu0 %v1133
        %v2437 = vpop.f32.mrf.mxu0
        %v2438 = vadd.f32 %v2389, %v2437
        %v2439 = vpop.f32.mrf.mxu0
        %v2440 = vadd.f32 %v2391, %v2439
        %2441 = vmatmul.bf16.gmra.mxu0 %v1139
        %v2442 = vpop.f32.mrf.mxu0
        %v2443 = vadd.f32 %v2394, %v2442
        %v2444 = vpop.f32.mrf.mxu0
        %v2445 = vadd.f32 %v2396, %v2444
        %2446 = vmatmul.bf16.gmra.mxu0 %v1145
        %v2447 = vpop.f32.mrf.mxu0
        %v2448 = vadd.f32 %v2399, %v2447
        %v2449 = vpop.f32.mrf.mxu0
        %v2450 = vadd.f32 %v2401, %v2449
        %2451 = vmatmul.bf16.gmra.mxu0 %v1151
        %v2452 = vpop.f32.mrf.mxu0
        %v2453 = vadd.f32 %v2404, %v2452
        %v2454 = vpop.f32.mrf.mxu0
        %v2455 = vadd.f32 %v2406, %v2454
        %2456 = vmatmul.bf16.gmra.mxu0 %v1157
        %v2457 = vpop.f32.mrf.mxu0
        %v2458 = vadd.f32 %v2409, %v2457
        %v2459 = vpop.f32.mrf.mxu0
        %v2460 = vadd.f32 %v2411, %v2459
        %2461 = vmatmul.bf16.gmra.mxu0 %v1163
        %v2462 = vpop.f32.mrf.mxu0
        %v2463 = vadd.f32 %v2414, %v2462
        %v2464 = vpop.f32.mrf.mxu0
        %v2465 = vadd.f32 %v2416, %v2464
        %2466 = vmatmul.bf16.gmra.mxu0 %v1169
        %v2467 = vpop.f32.mrf.mxu0
        %v2468 = vadd.f32 %v2419, %v2467
        %v2469 = vpop.f32.mrf.mxu0
        %v2470 = vadd.f32 %v2421, %v2469
        %2471 = vdwg.mxu0
        %2472 = vmatpush.bf16.msra.mxu0 %v1823
        %2473 = vmatpush.bf16.msra.mxu0 %v1819
        %2474 = vmatpush.bf16.msra.mxu0 %v1815
        %2475 = vmatpush.bf16.msra.mxu0 %v1811
        %2476 = vmatpush.bf16.msra.mxu0 %v1807
        %2477 = vmatpush.bf16.msra.mxu0 %v1803
        %2478 = vmatpush.bf16.msra.mxu0 %v1799
        %2479 = vmatpush.bf16.msra.mxu0 %v1795
        %2480 = vmatmul.bf16.gmra.mxu0 %v1122
        %v2481 = vpop.f32.mrf.mxu0
        %v2482 = vadd.f32 %v971, %v2481
        %v2483 = vpop.f32.mrf.mxu0
        %v2484 = vadd.f32 %v971, %v2483
        %2485 = vmatmul.bf16.gmra.mxu0 %v1128
        %v2486 = vpop.f32.mrf.mxu0
        %v2487 = vadd.f32 %v971, %v2486
        %v2488 = vpop.f32.mrf.mxu0
        %v2489 = vadd.f32 %v971, %v2488
        %2490 = vmatmul.bf16.gmra.mxu0 %v1134
        %v2491 = vpop.f32.mrf.mxu0
        %v2492 = vadd.f32 %v971, %v2491
        %v2493 = vpop.f32.mrf.mxu0
        %v2494 = vadd.f32 %v971, %v2493
        %2495 = vmatmul.bf16.gmra.mxu0 %v1140
        %v2496 = vpop.f32.mrf.mxu0
        %v2497 = vadd.f32 %v971, %v2496
        %v2498 = vpop.f32.mrf.mxu0
        %v2499 = vadd.f32 %v971, %v2498
        %2500 = vmatmul.bf16.gmra.mxu0 %v1146
        %v2501 = vpop.f32.mrf.mxu0
        %v2502 = vadd.f32 %v971, %v2501
        %v2503 = vpop.f32.mrf.mxu0
        %v2504 = vadd.f32 %v971, %v2503
        %2505 = vmatmul.bf16.gmra.mxu0 %v1152
        %v2506 = vpop.f32.mrf.mxu0
        %v2507 = vadd.f32 %v971, %v2506
        %v2508 = vpop.f32.mrf.mxu0
        %v2509 = vadd.f32 %v971, %v2508
        %2510 = vmatmul.bf16.gmra.mxu0 %v1158
        %v2511 = vpop.f32.mrf.mxu0
        %v2512 = vadd.f32 %v971, %v2511
        %v2513 = vpop.f32.mrf.mxu0
        %v2514 = vadd.f32 %v971, %v2513
        %2515 = vmatmul.bf16.gmra.mxu0 %v1164
        %v2516 = vpop.f32.mrf.mxu0
        %v2517 = vadd.f32 %v971, %v2516
        %v2518 = vpop.f32.mrf.mxu0
        %v2519 = vadd.f32 %v971, %v2518
        %2520 = vdwg.mxu0
        %2521 = vmatpush.bf16.msra.mxu0 %v1855
        %2522 = vmatpush.bf16.msra.mxu0 %v1851
        %2523 = vmatpush.bf16.msra.mxu0 %v1847
        %2524 = vmatpush.bf16.msra.mxu0 %v1843
        %2525 = vmatpush.bf16.msra.mxu0 %v1839
        %2526 = vmatpush.bf16.msra.mxu0 %v1835
        %2527 = vmatpush.bf16.msra.mxu0 %v1831
        %2528 = vmatpush.bf16.msra.mxu0 %v1827
        %2529 = vmatmul.bf16.gmra.mxu0 %v1123
        %v2530 = vpop.f32.mrf.mxu0
        %v2531 = vadd.f32 %v2482, %v2530
        %v2532 = vpop.f32.mrf.mxu0
        %v2533 = vadd.f32 %v2484, %v2532
        %2534 = vmatmul.bf16.gmra.mxu0 %v1129
        %v2535 = vpop.f32.mrf.mxu0
        %v2536 = vadd.f32 %v2487, %v2535
        %v2537 = vpop.f32.mrf.mxu0
        %v2538 = vadd.f32 %v2489, %v2537
        %2539 = vmatmul.bf16.gmra.mxu0 %v1135
        %v2540 = vpop.f32.mrf.mxu0
        %v2541 = vadd.f32 %v2492, %v2540
        %v2542 = vpop.f32.mrf.mxu0
        %v2543 = vadd.f32 %v2494, %v2542
        %2544 = vmatmul.bf16.gmra.mxu0 %v1141
        %v2545 = vpop.f32.mrf.mxu0
        %v2546 = vadd.f32 %v2497, %v2545
        %v2547 = vpop.f32.mrf.mxu0
        %v2548 = vadd.f32 %v2499, %v2547
        %2549 = vmatmul.bf16.gmra.mxu0 %v1147
        %v2550 = vpop.f32.mrf.mxu0
        %v2551 = vadd.f32 %v2502, %v2550
        %v2552 = vpop.f32.mrf.mxu0
        %v2553 = vadd.f32 %v2504, %v2552
        %2554 = vmatmul.bf16.gmra.mxu0 %v1153
        %v2555 = vpop.f32.mrf.mxu0
        %v2556 = vadd.f32 %v2507, %v2555
        %v2557 = vpop.f32.mrf.mxu0
        %v2558 = vadd.f32 %v2509, %v2557
        %2559 = vmatmul.bf16.gmra.mxu0 %v1159
        %v2560 = vpop.f32.mrf.mxu0
        %v2561 = vadd.f32 %v2512, %v2560
        %v2562 = vpop.f32.mrf.mxu0
        %v2563 = vadd.f32 %v2514, %v2562
        %2564 = vmatmul.bf16.gmra.mxu0 %v1165
        %v2565 = vpop.f32.mrf.mxu0
        %v2566 = vadd.f32 %v2517, %v2565
        %v2567 = vpop.f32.mrf.mxu0
        %v2568 = vadd.f32 %v2519, %v2567
        %2569 = vdwg.mxu0
        %2570 = vmatpush.bf16.msra.mxu0 %v1887
        %2571 = vmatpush.bf16.msra.mxu0 %v1883
        %2572 = vmatpush.bf16.msra.mxu0 %v1879
        %2573 = vmatpush.bf16.msra.mxu0 %v1875
        %2574 = vmatpush.bf16.msra.mxu0 %v1871
        %2575 = vmatpush.bf16.msra.mxu0 %v1867
        %2576 = vmatpush.bf16.msra.mxu0 %v1863
        %2577 = vmatpush.bf16.msra.mxu0 %v1859
        %2578 = vmatmul.bf16.gmra.mxu0 %v1124
        %v2579 = vpop.f32.mrf.mxu0
        %v2580 = vadd.f32 %v2531, %v2579
        %v2581 = vpop.f32.mrf.mxu0
        %v2582 = vadd.f32 %v2533, %v2581
        %2583 = vmatmul.bf16.gmra.mxu0 %v1130
        %v2584 = vpop.f32.mrf.mxu0
        %v2585 = vadd.f32 %v2536, %v2584
        %v2586 = vpop.f32.mrf.mxu0
        %v2587 = vadd.f32 %v2538, %v2586
        %2588 = vmatmul.bf16.gmra.mxu0 %v1136
        %v2589 = vpop.f32.mrf.mxu0
        %v2590 = vadd.f32 %v2541, %v2589
        %v2591 = vpop.f32.mrf.mxu0
        %v2592 = vadd.f32 %v2543, %v2591
        %2593 = vmatmul.bf16.gmra.mxu0 %v1142
        %v2594 = vpop.f32.mrf.mxu0
        %v2595 = vadd.f32 %v2546, %v2594
        %v2596 = vpop.f32.mrf.mxu0
        %v2597 = vadd.f32 %v2548, %v2596
        %2598 = vmatmul.bf16.gmra.mxu0 %v1148
        %v2599 = vpop.f32.mrf.mxu0
        %v2600 = vadd.f32 %v2551, %v2599
        %v2601 = vpop.f32.mrf.mxu0
        %v2602 = vadd.f32 %v2553, %v2601
        %2603 = vmatmul.bf16.gmra.mxu0 %v1154
        %v2604 = vpop.f32.mrf.mxu0
        %v2605 = vadd.f32 %v2556, %v2604
        %v2606 = vpop.f32.mrf.mxu0
        %v2607 = vadd.f32 %v2558, %v2606
        %2608 = vmatmul.bf16.gmra.mxu0 %v1160
        %v2609 = vpop.f32.mrf.mxu0
        %v2610 = vadd.f32 %v2561, %v2609
        %v2611 = vpop.f32.mrf.mxu0
        %v2612 = vadd.f32 %v2563, %v2611
        %2613 = vmatmul.bf16.gmra.mxu0 %v1166
        %v2614 = vpop.f32.mrf.mxu0
        %v2615 = vadd.f32 %v2566, %v2614
        %v2616 = vpop.f32.mrf.mxu0
        %v2617 = vadd.f32 %v2568, %v2616
        %2618 = vdwg.mxu0
        %2619 = vmatpush.bf16.msra.mxu0 %v1919
        %2620 = vmatpush.bf16.msra.mxu0 %v1915
        %2621 = vmatpush.bf16.msra.mxu0 %v1911
        %2622 = vmatpush.bf16.msra.mxu0 %v1907
        %2623 = vmatpush.bf16.msra.mxu0 %v1903
        %2624 = vmatpush.bf16.msra.mxu0 %v1899
        %2625 = vmatpush.bf16.msra.mxu0 %v1895
        %2626 = vmatpush.bf16.msra.mxu0 %v1891
        %2627 = vmatmul.bf16.gmra.mxu0 %v1125
        %v2628 = vpop.f32.mrf.mxu0
        %v2629 = vadd.f32 %v2580, %v2628
        %v2630 = vpop.f32.mrf.mxu0
        %v2631 = vadd.f32 %v2582, %v2630
        %2632 = vmatmul.bf16.gmra.mxu0 %v1131
        %v2633 = vpop.f32.mrf.mxu0
        %v2634 = vadd.f32 %v2585, %v2633
        %v2635 = vpop.f32.mrf.mxu0
        %v2636 = vadd.f32 %v2587, %v2635
        %2637 = vmatmul.bf16.gmra.mxu0 %v1137
        %v2638 = vpop.f32.mrf.mxu0
        %v2639 = vadd.f32 %v2590, %v2638
        %v2640 = vpop.f32.mrf.mxu0
        %v2641 = vadd.f32 %v2592, %v2640
        %2642 = vmatmul.bf16.gmra.mxu0 %v1143
        %v2643 = vpop.f32.mrf.mxu0
        %v2644 = vadd.f32 %v2595, %v2643
        %v2645 = vpop.f32.mrf.mxu0
        %v2646 = vadd.f32 %v2597, %v2645
        %2647 = vmatmul.bf16.gmra.mxu0 %v1149
        %v2648 = vpop.f32.mrf.mxu0
        %v2649 = vadd.f32 %v2600, %v2648
        %v2650 = vpop.f32.mrf.mxu0
        %v2651 = vadd.f32 %v2602, %v2650
        %2652 = vmatmul.bf16.gmra.mxu0 %v1155
        %v2653 = vpop.f32.mrf.mxu0
        %v2654 = vadd.f32 %v2605, %v2653
        %v2655 = vpop.f32.mrf.mxu0
        %v2656 = vadd.f32 %v2607, %v2655
        %2657 = vmatmul.bf16.gmra.mxu0 %v1161
        %v2658 = vpop.f32.mrf.mxu0
        %v2659 = vadd.f32 %v2610, %v2658
        %v2660 = vpop.f32.mrf.mxu0
        %v2661 = vadd.f32 %v2612, %v2660
        %2662 = vmatmul.bf16.gmra.mxu0 %v1167
        %v2663 = vpop.f32.mrf.mxu0
        %v2664 = vadd.f32 %v2615, %v2663
        %v2665 = vpop.f32.mrf.mxu0
        %v2666 = vadd.f32 %v2617, %v2665
        %2667 = vdwg.mxu0
        %2668 = vmatpush.bf16.msra.mxu0 %v1951
        %2669 = vmatpush.bf16.msra.mxu0 %v1947
        %2670 = vmatpush.bf16.msra.mxu0 %v1943
        %2671 = vmatpush.bf16.msra.mxu0 %v1939
        %2672 = vmatpush.bf16.msra.mxu0 %v1935
        %2673 = vmatpush.bf16.msra.mxu0 %v1931
        %2674 = vmatpush.bf16.msra.mxu0 %v1927
        %2675 = vmatpush.bf16.msra.mxu0 %v1923
        %2676 = vmatmul.bf16.gmra.mxu0 %v1126
        %v2677 = vpop.f32.mrf.mxu0
        %v2678 = vadd.f32 %v2629, %v2677
        %v2679 = vpop.f32.mrf.mxu0
        %v2680 = vadd.f32 %v2631, %v2679
        %2681 = vmatmul.bf16.gmra.mxu0 %v1132
        %v2682 = vpop.f32.mrf.mxu0
        %v2683 = vadd.f32 %v2634, %v2682
        %v2684 = vpop.f32.mrf.mxu0
        %v2685 = vadd.f32 %v2636, %v2684
        %2686 = vmatmul.bf16.gmra.mxu0 %v1138
        %v2687 = vpop.f32.mrf.mxu0
        %v2688 = vadd.f32 %v2639, %v2687
        %v2689 = vpop.f32.mrf.mxu0
        %v2690 = vadd.f32 %v2641, %v2689
        %2691 = vmatmul.bf16.gmra.mxu0 %v1144
        %v2692 = vpop.f32.mrf.mxu0
        %v2693 = vadd.f32 %v2644, %v2692
        %v2694 = vpop.f32.mrf.mxu0
        %v2695 = vadd.f32 %v2646, %v2694
        %2696 = vmatmul.bf16.gmra.mxu0 %v1150
        %v2697 = vpop.f32.mrf.mxu0
        %v2698 = vadd.f32 %v2649, %v2697
        %v2699 = vpop.f32.mrf.mxu0
        %v2700 = vadd.f32 %v2651, %v2699
        %2701 = vmatmul.bf16.gmra.mxu0 %v1156
        %v2702 = vpop.f32.mrf.mxu0
        %v2703 = vadd.f32 %v2654, %v2702
        %v2704 = vpop.f32.mrf.mxu0
        %v2705 = vadd.f32 %v2656, %v2704
        %2706 = vmatmul.bf16.gmra.mxu0 %v1162
        %v2707 = vpop.f32.mrf.mxu0
        %v2708 = vadd.f32 %v2659, %v2707
        %v2709 = vpop.f32.mrf.mxu0
        %v2710 = vadd.f32 %v2661, %v2709
        %2711 = vmatmul.bf16.gmra.mxu0 %v1168
        %v2712 = vpop.f32.mrf.mxu0
        %v2713 = vadd.f32 %v2664, %v2712
        %v2714 = vpop.f32.mrf.mxu0
        %v2715 = vadd.f32 %v2666, %v2714
        %2716 = vdwg.mxu0
        %2717 = vmatpush.bf16.msra.mxu0 %v1983
        %2718 = vmatpush.bf16.msra.mxu0 %v1979
        %2719 = vmatpush.bf16.msra.mxu0 %v1975
        %2720 = vmatpush.bf16.msra.mxu0 %v1971
        %2721 = vmatpush.bf16.msra.mxu0 %v1967
        %2722 = vmatpush.bf16.msra.mxu0 %v1963
        %2723 = vmatpush.bf16.msra.mxu0 %v1959
        %2724 = vmatpush.bf16.msra.mxu0 %v1955
        %2725 = vmatmul.bf16.gmra.mxu0 %v1127
        %v2726 = vpop.f32.mrf.mxu0
        %v2727 = vadd.f32 %v2678, %v2726
        %v2728 = vpop.f32.mrf.mxu0
        %v2729 = vadd.f32 %v2680, %v2728
        %2730 = vmatmul.bf16.gmra.mxu0 %v1133
        %v2731 = vpop.f32.mrf.mxu0
        %v2732 = vadd.f32 %v2683, %v2731
        %v2733 = vpop.f32.mrf.mxu0
        %v2734 = vadd.f32 %v2685, %v2733
        %2735 = vmatmul.bf16.gmra.mxu0 %v1139
        %v2736 = vpop.f32.mrf.mxu0
        %v2737 = vadd.f32 %v2688, %v2736
        %v2738 = vpop.f32.mrf.mxu0
        %v2739 = vadd.f32 %v2690, %v2738
        %2740 = vmatmul.bf16.gmra.mxu0 %v1145
        %v2741 = vpop.f32.mrf.mxu0
        %v2742 = vadd.f32 %v2693, %v2741
        %v2743 = vpop.f32.mrf.mxu0
        %v2744 = vadd.f32 %v2695, %v2743
        %2745 = vmatmul.bf16.gmra.mxu0 %v1151
        %v2746 = vpop.f32.mrf.mxu0
        %v2747 = vadd.f32 %v2698, %v2746
        %v2748 = vpop.f32.mrf.mxu0
        %v2749 = vadd.f32 %v2700, %v2748
        %2750 = vmatmul.bf16.gmra.mxu0 %v1157
        %v2751 = vpop.f32.mrf.mxu0
        %v2752 = vadd.f32 %v2703, %v2751
        %v2753 = vpop.f32.mrf.mxu0
        %v2754 = vadd.f32 %v2705, %v2753
        %2755 = vmatmul.bf16.gmra.mxu0 %v1163
        %v2756 = vpop.f32.mrf.mxu0
        %v2757 = vadd.f32 %v2708, %v2756
        %v2758 = vpop.f32.mrf.mxu0
        %v2759 = vadd.f32 %v2710, %v2758
        %2760 = vmatmul.bf16.gmra.mxu0 %v1169
        %v2761 = vpop.f32.mrf.mxu0
        %v2762 = vadd.f32 %v2713, %v2761
        %v2763 = vpop.f32.mrf.mxu0
        %v2764 = vadd.f32 %v2715, %v2763
        %2765 = vdwg.mxu0
        %2766 = vmatpush.bf16.msra.mxu0 %v1824
        %2767 = vmatpush.bf16.msra.mxu0 %v1820
        %2768 = vmatpush.bf16.msra.mxu0 %v1816
        %2769 = vmatpush.bf16.msra.mxu0 %v1812
        %2770 = vmatpush.bf16.msra.mxu0 %v1808
        %2771 = vmatpush.bf16.msra.mxu0 %v1804
        %2772 = vmatpush.bf16.msra.mxu0 %v1800
        %2773 = vmatpush.bf16.msra.mxu0 %v1796
        %2774 = vmatmul.bf16.gmra.mxu0 %v1122
        %v2775 = vpop.f32.mrf.mxu0
        %v2776 = vadd.f32 %v972, %v2775
        %v2777 = vpop.f32.mrf.mxu0
        %v2778 = vadd.f32 %v972, %v2777
        %2779 = vmatmul.bf16.gmra.mxu0 %v1128
        %v2780 = vpop.f32.mrf.mxu0
        %v2781 = vadd.f32 %v972, %v2780
        %v2782 = vpop.f32.mrf.mxu0
        %v2783 = vadd.f32 %v972, %v2782
        %2784 = vmatmul.bf16.gmra.mxu0 %v1134
        %v2785 = vpop.f32.mrf.mxu0
        %v2786 = vadd.f32 %v972, %v2785
        %v2787 = vpop.f32.mrf.mxu0
        %v2788 = vadd.f32 %v972, %v2787
        %2789 = vmatmul.bf16.gmra.mxu0 %v1140
        %v2790 = vpop.f32.mrf.mxu0
        %v2791 = vadd.f32 %v972, %v2790
        %v2792 = vpop.f32.mrf.mxu0
        %v2793 = vadd.f32 %v972, %v2792
        %2794 = vmatmul.bf16.gmra.mxu0 %v1146
        %v2795 = vpop.f32.mrf.mxu0
        %v2796 = vadd.f32 %v972, %v2795
        %v2797 = vpop.f32.mrf.mxu0
        %v2798 = vadd.f32 %v972, %v2797
        %2799 = vmatmul.bf16.gmra.mxu0 %v1152
        %v2800 = vpop.f32.mrf.mxu0
        %v2801 = vadd.f32 %v972, %v2800
        %v2802 = vpop.f32.mrf.mxu0
        %v2803 = vadd.f32 %v972, %v2802
        %2804 = vmatmul.bf16.gmra.mxu0 %v1158
        %v2805 = vpop.f32.mrf.mxu0
        %v2806 = vadd.f32 %v972, %v2805
        %v2807 = vpop.f32.mrf.mxu0
        %v2808 = vadd.f32 %v972, %v2807
        %2809 = vmatmul.bf16.gmra.mxu0 %v1164
        %v2810 = vpop.f32.mrf.mxu0
        %v2811 = vadd.f32 %v972, %v2810
        %v2812 = vpop.f32.mrf.mxu0
        %v2813 = vadd.f32 %v972, %v2812
        %2814 = vdwg.mxu0
        %2815 = vmatpush.bf16.msra.mxu0 %v1856
        %2816 = vmatpush.bf16.msra.mxu0 %v1852
        %2817 = vmatpush.bf16.msra.mxu0 %v1848
        %2818 = vmatpush.bf16.msra.mxu0 %v1844
        %2819 = vmatpush.bf16.msra.mxu0 %v1840
        %2820 = vmatpush.bf16.msra.mxu0 %v1836
        %2821 = vmatpush.bf16.msra.mxu0 %v1832
        %2822 = vmatpush.bf16.msra.mxu0 %v1828
        %2823 = vmatmul.bf16.gmra.mxu0 %v1123
        %v2824 = vpop.f32.mrf.mxu0
        %v2825 = vadd.f32 %v2776, %v2824
        %v2826 = vpop.f32.mrf.mxu0
        %v2827 = vadd.f32 %v2778, %v2826
        %2828 = vmatmul.bf16.gmra.mxu0 %v1129
        %v2829 = vpop.f32.mrf.mxu0
        %v2830 = vadd.f32 %v2781, %v2829
        %v2831 = vpop.f32.mrf.mxu0
        %v2832 = vadd.f32 %v2783, %v2831
        %2833 = vmatmul.bf16.gmra.mxu0 %v1135
        %v2834 = vpop.f32.mrf.mxu0
        %v2835 = vadd.f32 %v2786, %v2834
        %v2836 = vpop.f32.mrf.mxu0
        %v2837 = vadd.f32 %v2788, %v2836
        %2838 = vmatmul.bf16.gmra.mxu0 %v1141
        %v2839 = vpop.f32.mrf.mxu0
        %v2840 = vadd.f32 %v2791, %v2839
        %v2841 = vpop.f32.mrf.mxu0
        %v2842 = vadd.f32 %v2793, %v2841
        %2843 = vmatmul.bf16.gmra.mxu0 %v1147
        %v2844 = vpop.f32.mrf.mxu0
        %v2845 = vadd.f32 %v2796, %v2844
        %v2846 = vpop.f32.mrf.mxu0
        %v2847 = vadd.f32 %v2798, %v2846
        %2848 = vmatmul.bf16.gmra.mxu0 %v1153
        %v2849 = vpop.f32.mrf.mxu0
        %v2850 = vadd.f32 %v2801, %v2849
        %v2851 = vpop.f32.mrf.mxu0
        %v2852 = vadd.f32 %v2803, %v2851
        %2853 = vmatmul.bf16.gmra.mxu0 %v1159
        %v2854 = vpop.f32.mrf.mxu0
        %v2855 = vadd.f32 %v2806, %v2854
        %v2856 = vpop.f32.mrf.mxu0
        %v2857 = vadd.f32 %v2808, %v2856
        %2858 = vmatmul.bf16.gmra.mxu0 %v1165
        %v2859 = vpop.f32.mrf.mxu0
        %v2860 = vadd.f32 %v2811, %v2859
        %v2861 = vpop.f32.mrf.mxu0
        %v2862 = vadd.f32 %v2813, %v2861
        %2863 = vdwg.mxu0
        %2864 = vmatpush.bf16.msra.mxu0 %v1888
        %2865 = vmatpush.bf16.msra.mxu0 %v1884
        %2866 = vmatpush.bf16.msra.mxu0 %v1880
        %2867 = vmatpush.bf16.msra.mxu0 %v1876
        %2868 = vmatpush.bf16.msra.mxu0 %v1872
        %2869 = vmatpush.bf16.msra.mxu0 %v1868
        %2870 = vmatpush.bf16.msra.mxu0 %v1864
        %2871 = vmatpush.bf16.msra.mxu0 %v1860
        %2872 = vmatmul.bf16.gmra.mxu0 %v1124
        %v2873 = vpop.f32.mrf.mxu0
        %v2874 = vadd.f32 %v2825, %v2873
        %v2875 = vpop.f32.mrf.mxu0
        %v2876 = vadd.f32 %v2827, %v2875
        %2877 = vmatmul.bf16.gmra.mxu0 %v1130
        %v2878 = vpop.f32.mrf.mxu0
        %v2879 = vadd.f32 %v2830, %v2878
        %v2880 = vpop.f32.mrf.mxu0
        %v2881 = vadd.f32 %v2832, %v2880
        %2882 = vmatmul.bf16.gmra.mxu0 %v1136
        %v2883 = vpop.f32.mrf.mxu0
        %v2884 = vadd.f32 %v2835, %v2883
        %v2885 = vpop.f32.mrf.mxu0
        %v2886 = vadd.f32 %v2837, %v2885
        %2887 = vmatmul.bf16.gmra.mxu0 %v1142
        %v2888 = vpop.f32.mrf.mxu0
        %v2889 = vadd.f32 %v2840, %v2888
        %v2890 = vpop.f32.mrf.mxu0
        %v2891 = vadd.f32 %v2842, %v2890
        %2892 = vmatmul.bf16.gmra.mxu0 %v1148
        %v2893 = vpop.f32.mrf.mxu0
        %v2894 = vadd.f32 %v2845, %v2893
        %v2895 = vpop.f32.mrf.mxu0
        %v2896 = vadd.f32 %v2847, %v2895
        %2897 = vmatmul.bf16.gmra.mxu0 %v1154
        %v2898 = vpop.f32.mrf.mxu0
        %v2899 = vadd.f32 %v2850, %v2898
        %v2900 = vpop.f32.mrf.mxu0
        %v2901 = vadd.f32 %v2852, %v2900
        %2902 = vmatmul.bf16.gmra.mxu0 %v1160
        %v2903 = vpop.f32.mrf.mxu0
        %v2904 = vadd.f32 %v2855, %v2903
        %v2905 = vpop.f32.mrf.mxu0
        %v2906 = vadd.f32 %v2857, %v2905
        %2907 = vmatmul.bf16.gmra.mxu0 %v1166
        %v2908 = vpop.f32.mrf.mxu0
        %v2909 = vadd.f32 %v2860, %v2908
        %v2910 = vpop.f32.mrf.mxu0
        %v2911 = vadd.f32 %v2862, %v2910
        %2912 = vdwg.mxu0
        %2913 = vmatpush.bf16.msra.mxu0 %v1920
        %2914 = vmatpush.bf16.msra.mxu0 %v1916
        %2915 = vmatpush.bf16.msra.mxu0 %v1912
        %2916 = vmatpush.bf16.msra.mxu0 %v1908
        %2917 = vmatpush.bf16.msra.mxu0 %v1904
        %2918 = vmatpush.bf16.msra.mxu0 %v1900
        %2919 = vmatpush.bf16.msra.mxu0 %v1896
        %2920 = vmatpush.bf16.msra.mxu0 %v1892
        %2921 = vmatmul.bf16.gmra.mxu0 %v1125
        %v2922 = vpop.f32.mrf.mxu0
        %v2923 = vadd.f32 %v2874, %v2922
        %v2924 = vpop.f32.mrf.mxu0
        %v2925 = vadd.f32 %v2876, %v2924
        %2926 = vmatmul.bf16.gmra.mxu0 %v1131
        %v2927 = vpop.f32.mrf.mxu0
        %v2928 = vadd.f32 %v2879, %v2927
        %v2929 = vpop.f32.mrf.mxu0
        %v2930 = vadd.f32 %v2881, %v2929
        %2931 = vmatmul.bf16.gmra.mxu0 %v1137
        %v2932 = vpop.f32.mrf.mxu0
        %v2933 = vadd.f32 %v2884, %v2932
        %v2934 = vpop.f32.mrf.mxu0
        %v2935 = vadd.f32 %v2886, %v2934
        %2936 = vmatmul.bf16.gmra.mxu0 %v1143
        %v2937 = vpop.f32.mrf.mxu0
        %v2938 = vadd.f32 %v2889, %v2937
        %v2939 = vpop.f32.mrf.mxu0
        %v2940 = vadd.f32 %v2891, %v2939
        %2941 = vmatmul.bf16.gmra.mxu0 %v1149
        %v2942 = vpop.f32.mrf.mxu0
        %v2943 = vadd.f32 %v2894, %v2942
        %v2944 = vpop.f32.mrf.mxu0
        %v2945 = vadd.f32 %v2896, %v2944
        %2946 = vmatmul.bf16.gmra.mxu0 %v1155
        %v2947 = vpop.f32.mrf.mxu0
        %v2948 = vadd.f32 %v2899, %v2947
        %v2949 = vpop.f32.mrf.mxu0
        %v2950 = vadd.f32 %v2901, %v2949
        %2951 = vmatmul.bf16.gmra.mxu0 %v1161
        %v2952 = vpop.f32.mrf.mxu0
        %v2953 = vadd.f32 %v2904, %v2952
        %v2954 = vpop.f32.mrf.mxu0
        %v2955 = vadd.f32 %v2906, %v2954
        %2956 = vmatmul.bf16.gmra.mxu0 %v1167
        %v2957 = vpop.f32.mrf.mxu0
        %v2958 = vadd.f32 %v2909, %v2957
        %v2959 = vpop.f32.mrf.mxu0
        %v2960 = vadd.f32 %v2911, %v2959
        %2961 = vdwg.mxu0
        %2962 = vmatpush.bf16.msra.mxu0 %v1952
        %2963 = vmatpush.bf16.msra.mxu0 %v1948
        %2964 = vmatpush.bf16.msra.mxu0 %v1944
        %2965 = vmatpush.bf16.msra.mxu0 %v1940
        %2966 = vmatpush.bf16.msra.mxu0 %v1936
        %2967 = vmatpush.bf16.msra.mxu0 %v1932
        %2968 = vmatpush.bf16.msra.mxu0 %v1928
        %2969 = vmatpush.bf16.msra.mxu0 %v1924
        %2970 = vmatmul.bf16.gmra.mxu0 %v1126
        %v2971 = vpop.f32.mrf.mxu0
        %v2972 = vadd.f32 %v2923, %v2971
        %v2973 = vpop.f32.mrf.mxu0
        %v2974 = vadd.f32 %v2925, %v2973
        %2975 = vmatmul.bf16.gmra.mxu0 %v1132
        %v2976 = vpop.f32.mrf.mxu0
        %v2977 = vadd.f32 %v2928, %v2976
        %v2978 = vpop.f32.mrf.mxu0
        %v2979 = vadd.f32 %v2930, %v2978
        %2980 = vmatmul.bf16.gmra.mxu0 %v1138
        %v2981 = vpop.f32.mrf.mxu0
        %v2982 = vadd.f32 %v2933, %v2981
        %v2983 = vpop.f32.mrf.mxu0
        %v2984 = vadd.f32 %v2935, %v2983
        %2985 = vmatmul.bf16.gmra.mxu0 %v1144
        %v2986 = vpop.f32.mrf.mxu0
        %v2987 = vadd.f32 %v2938, %v2986
        %v2988 = vpop.f32.mrf.mxu0
        %v2989 = vadd.f32 %v2940, %v2988
        %2990 = vmatmul.bf16.gmra.mxu0 %v1150
        %v2991 = vpop.f32.mrf.mxu0
        %v2992 = vadd.f32 %v2943, %v2991
        %v2993 = vpop.f32.mrf.mxu0
        %v2994 = vadd.f32 %v2945, %v2993
        %2995 = vmatmul.bf16.gmra.mxu0 %v1156
        %v2996 = vpop.f32.mrf.mxu0
        %v2997 = vadd.f32 %v2948, %v2996
        %v2998 = vpop.f32.mrf.mxu0
        %v2999 = vadd.f32 %v2950, %v2998
        %3000 = vmatmul.bf16.gmra.mxu0 %v1162
        %v3001 = vpop.f32.mrf.mxu0
        %v3002 = vadd.f32 %v2953, %v3001
        %v3003 = vpop.f32.mrf.mxu0
        %v3004 = vadd.f32 %v2955, %v3003
        %3005 = vmatmul.bf16.gmra.mxu0 %v1168
        %v3006 = vpop.f32.mrf.mxu0
        %v3007 = vadd.f32 %v2958, %v3006
        %v3008 = vpop.f32.mrf.mxu0
        %v3009 = vadd.f32 %v2960, %v3008
        %3010 = vdwg.mxu0
        %3011 = vmatpush.bf16.msra.mxu0 %v1984
        %3012 = vmatpush.bf16.msra.mxu0 %v1980
        %3013 = vmatpush.bf16.msra.mxu0 %v1976
        %3014 = vmatpush.bf16.msra.mxu0 %v1972
        %3015 = vmatpush.bf16.msra.mxu0 %v1968
        %3016 = vmatpush.bf16.msra.mxu0 %v1964
        %3017 = vmatpush.bf16.msra.mxu0 %v1960
        %3018 = vmatpush.bf16.msra.mxu0 %v1956
        %3019 = vmatmul.bf16.gmra.mxu0 %v1127
        %v3020 = vpop.f32.mrf.mxu0
        %v3021 = vadd.f32 %v2972, %v3020
        %v3022 = vpop.f32.mrf.mxu0
        %v3023 = vadd.f32 %v2974, %v3022
        %3024 = vmatmul.bf16.gmra.mxu0 %v1133
        %v3025 = vpop.f32.mrf.mxu0
        %v3026 = vadd.f32 %v2977, %v3025
        %v3027 = vpop.f32.mrf.mxu0
        %v3028 = vadd.f32 %v2979, %v3027
        %3029 = vmatmul.bf16.gmra.mxu0 %v1139
        %v3030 = vpop.f32.mrf.mxu0
        %v3031 = vadd.f32 %v2982, %v3030
        %v3032 = vpop.f32.mrf.mxu0
        %v3033 = vadd.f32 %v2984, %v3032
        %3034 = vmatmul.bf16.gmra.mxu0 %v1145
        %v3035 = vpop.f32.mrf.mxu0
        %v3036 = vadd.f32 %v2987, %v3035
        %v3037 = vpop.f32.mrf.mxu0
        %v3038 = vadd.f32 %v2989, %v3037
        %3039 = vmatmul.bf16.gmra.mxu0 %v1151
        %v3040 = vpop.f32.mrf.mxu0
        %v3041 = vadd.f32 %v2992, %v3040
        %v3042 = vpop.f32.mrf.mxu0
        %v3043 = vadd.f32 %v2994, %v3042
        %3044 = vmatmul.bf16.gmra.mxu0 %v1157
        %v3045 = vpop.f32.mrf.mxu0
        %v3046 = vadd.f32 %v2997, %v3045
        %v3047 = vpop.f32.mrf.mxu0
        %v3048 = vadd.f32 %v2999, %v3047
        %3049 = vmatmul.bf16.gmra.mxu0 %v1163
        %v3050 = vpop.f32.mrf.mxu0
        %v3051 = vadd.f32 %v3002, %v3050
        %v3052 = vpop.f32.mrf.mxu0
        %v3053 = vadd.f32 %v3004, %v3052
        %3054 = vmatmul.bf16.gmra.mxu0 %v1169
        %v3055 = vpop.f32.mrf.mxu0
        %v3056 = vadd.f32 %v3007, %v3055
        %v3057 = vpop.f32.mrf.mxu0
        %v3058 = vadd.f32 %v3009, %v3057
        %3059 = vdwg.mxu0
        %3060 = vmatpush.bf16.msra.mxu0 %v1825
        %3061 = vmatpush.bf16.msra.mxu0 %v1821
        %3062 = vmatpush.bf16.msra.mxu0 %v1817
        %3063 = vmatpush.bf16.msra.mxu0 %v1813
        %3064 = vmatpush.bf16.msra.mxu0 %v1809
        %3065 = vmatpush.bf16.msra.mxu0 %v1805
        %3066 = vmatpush.bf16.msra.mxu0 %v1801
        %3067 = vmatpush.bf16.msra.mxu0 %v1797
        %3068 = vmatmul.bf16.gmra.mxu0 %v1122
        %v3069 = vpop.f32.mrf.mxu0
        %v3070 = vadd.f32 %v973, %v3069
        %v3071 = vpop.f32.mrf.mxu0
        %v3072 = vadd.f32 %v973, %v3071
        %3073 = vmatmul.bf16.gmra.mxu0 %v1128
        %v3074 = vpop.f32.mrf.mxu0
        %v3075 = vadd.f32 %v973, %v3074
        %v3076 = vpop.f32.mrf.mxu0
        %v3077 = vadd.f32 %v973, %v3076
        %3078 = vmatmul.bf16.gmra.mxu0 %v1134
        %v3079 = vpop.f32.mrf.mxu0
        %v3080 = vadd.f32 %v973, %v3079
        %v3081 = vpop.f32.mrf.mxu0
        %v3082 = vadd.f32 %v973, %v3081
        %3083 = vmatmul.bf16.gmra.mxu0 %v1140
        %v3084 = vpop.f32.mrf.mxu0
        %v3085 = vadd.f32 %v973, %v3084
        %v3086 = vpop.f32.mrf.mxu0
        %v3087 = vadd.f32 %v973, %v3086
        %3088 = vmatmul.bf16.gmra.mxu0 %v1146
        %v3089 = vpop.f32.mrf.mxu0
        %v3090 = vadd.f32 %v973, %v3089
        %v3091 = vpop.f32.mrf.mxu0
        %v3092 = vadd.f32 %v973, %v3091
        %3093 = vmatmul.bf16.gmra.mxu0 %v1152
        %v3094 = vpop.f32.mrf.mxu0
        %v3095 = vadd.f32 %v973, %v3094
        %v3096 = vpop.f32.mrf.mxu0
        %v3097 = vadd.f32 %v973, %v3096
        %3098 = vmatmul.bf16.gmra.mxu0 %v1158
        %v3099 = vpop.f32.mrf.mxu0
        %v3100 = vadd.f32 %v973, %v3099
        %v3101 = vpop.f32.mrf.mxu0
        %v3102 = vadd.f32 %v973, %v3101
        %3103 = vmatmul.bf16.gmra.mxu0 %v1164
        %v3104 = vpop.f32.mrf.mxu0
        %v3105 = vadd.f32 %v973, %v3104
        %v3106 = vpop.f32.mrf.mxu0
        %v3107 = vadd.f32 %v973, %v3106
        %3108 = vdwg.mxu0
        %3109 = vmatpush.bf16.msra.mxu0 %v1857
        %3110 = vmatpush.bf16.msra.mxu0 %v1853
        %3111 = vmatpush.bf16.msra.mxu0 %v1849
        %3112 = vmatpush.bf16.msra.mxu0 %v1845
        %3113 = vmatpush.bf16.msra.mxu0 %v1841
        %3114 = vmatpush.bf16.msra.mxu0 %v1837
        %3115 = vmatpush.bf16.msra.mxu0 %v1833
        %3116 = vmatpush.bf16.msra.mxu0 %v1829
        %3117 = vmatmul.bf16.gmra.mxu0 %v1123
        %v3118 = vpop.f32.mrf.mxu0
        %v3119 = vadd.f32 %v3070, %v3118
        %v3120 = vpop.f32.mrf.mxu0
        %v3121 = vadd.f32 %v3072, %v3120
        %3122 = vmatmul.bf16.gmra.mxu0 %v1129
        %v3123 = vpop.f32.mrf.mxu0
        %v3124 = vadd.f32 %v3075, %v3123
        %v3125 = vpop.f32.mrf.mxu0
        %v3126 = vadd.f32 %v3077, %v3125
        %3127 = vmatmul.bf16.gmra.mxu0 %v1135
        %v3128 = vpop.f32.mrf.mxu0
        %v3129 = vadd.f32 %v3080, %v3128
        %v3130 = vpop.f32.mrf.mxu0
        %v3131 = vadd.f32 %v3082, %v3130
        %3132 = vmatmul.bf16.gmra.mxu0 %v1141
        %v3133 = vpop.f32.mrf.mxu0
        %v3134 = vadd.f32 %v3085, %v3133
        %v3135 = vpop.f32.mrf.mxu0
        %v3136 = vadd.f32 %v3087, %v3135
        %3137 = vmatmul.bf16.gmra.mxu0 %v1147
        %v3138 = vpop.f32.mrf.mxu0
        %v3139 = vadd.f32 %v3090, %v3138
        %v3140 = vpop.f32.mrf.mxu0
        %v3141 = vadd.f32 %v3092, %v3140
        %3142 = vmatmul.bf16.gmra.mxu0 %v1153
        %v3143 = vpop.f32.mrf.mxu0
        %v3144 = vadd.f32 %v3095, %v3143
        %v3145 = vpop.f32.mrf.mxu0
        %v3146 = vadd.f32 %v3097, %v3145
        %3147 = vmatmul.bf16.gmra.mxu0 %v1159
        %v3148 = vpop.f32.mrf.mxu0
        %v3149 = vadd.f32 %v3100, %v3148
        %v3150 = vpop.f32.mrf.mxu0
        %v3151 = vadd.f32 %v3102, %v3150
        %3152 = vmatmul.bf16.gmra.mxu0 %v1165
        %v3153 = vpop.f32.mrf.mxu0
        %v3154 = vadd.f32 %v3105, %v3153
        %v3155 = vpop.f32.mrf.mxu0
        %v3156 = vadd.f32 %v3107, %v3155
        %3157 = vdwg.mxu0
        %3158 = vmatpush.bf16.msra.mxu0 %v1889
        %3159 = vmatpush.bf16.msra.mxu0 %v1885
        %3160 = vmatpush.bf16.msra.mxu0 %v1881
        %3161 = vmatpush.bf16.msra.mxu0 %v1877
        %3162 = vmatpush.bf16.msra.mxu0 %v1873
        %3163 = vmatpush.bf16.msra.mxu0 %v1869
        %3164 = vmatpush.bf16.msra.mxu0 %v1865
        %3165 = vmatpush.bf16.msra.mxu0 %v1861
        %3166 = vmatmul.bf16.gmra.mxu0 %v1124
        %v3167 = vpop.f32.mrf.mxu0
        %v3168 = vadd.f32 %v3119, %v3167
        %v3169 = vpop.f32.mrf.mxu0
        %v3170 = vadd.f32 %v3121, %v3169
        %3171 = vmatmul.bf16.gmra.mxu0 %v1130
        %v3172 = vpop.f32.mrf.mxu0
        %v3173 = vadd.f32 %v3124, %v3172
        %v3174 = vpop.f32.mrf.mxu0
        %v3175 = vadd.f32 %v3126, %v3174
        %3176 = vmatmul.bf16.gmra.mxu0 %v1136
        %v3177 = vpop.f32.mrf.mxu0
        %v3178 = vadd.f32 %v3129, %v3177
        %v3179 = vpop.f32.mrf.mxu0
        %v3180 = vadd.f32 %v3131, %v3179
        %3181 = vmatmul.bf16.gmra.mxu0 %v1142
        %v3182 = vpop.f32.mrf.mxu0
        %v3183 = vadd.f32 %v3134, %v3182
        %v3184 = vpop.f32.mrf.mxu0
        %v3185 = vadd.f32 %v3136, %v3184
        %3186 = vmatmul.bf16.gmra.mxu0 %v1148
        %v3187 = vpop.f32.mrf.mxu0
        %v3188 = vadd.f32 %v3139, %v3187
        %v3189 = vpop.f32.mrf.mxu0
        %v3190 = vadd.f32 %v3141, %v3189
        %3191 = vmatmul.bf16.gmra.mxu0 %v1154
        %v3192 = vpop.f32.mrf.mxu0
        %v3193 = vadd.f32 %v3144, %v3192
        %v3194 = vpop.f32.mrf.mxu0
        %v3195 = vadd.f32 %v3146, %v3194
        %3196 = vmatmul.bf16.gmra.mxu0 %v1160
        %v3197 = vpop.f32.mrf.mxu0
        %v3198 = vadd.f32 %v3149, %v3197
        %v3199 = vpop.f32.mrf.mxu0
        %v3200 = vadd.f32 %v3151, %v3199
        %3201 = vmatmul.bf16.gmra.mxu0 %v1166
        %v3202 = vpop.f32.mrf.mxu0
        %v3203 = vadd.f32 %v3154, %v3202
        %v3204 = vpop.f32.mrf.mxu0
        %v3205 = vadd.f32 %v3156, %v3204
        %3206 = vdwg.mxu0
        %3207 = vmatpush.bf16.msra.mxu0 %v1921
        %3208 = vmatpush.bf16.msra.mxu0 %v1917
        %3209 = vmatpush.bf16.msra.mxu0 %v1913
        %3210 = vmatpush.bf16.msra.mxu0 %v1909
        %3211 = vmatpush.bf16.msra.mxu0 %v1905
        %3212 = vmatpush.bf16.msra.mxu0 %v1901
        %3213 = vmatpush.bf16.msra.mxu0 %v1897
        %3214 = vmatpush.bf16.msra.mxu0 %v1893
        %3215 = vmatmul.bf16.gmra.mxu0 %v1125
        %v3216 = vpop.f32.mrf.mxu0
        %v3217 = vadd.f32 %v3168, %v3216
        %v3218 = vpop.f32.mrf.mxu0
        %v3219 = vadd.f32 %v3170, %v3218
        %3220 = vmatmul.bf16.gmra.mxu0 %v1131
        %v3221 = vpop.f32.mrf.mxu0
        %v3222 = vadd.f32 %v3173, %v3221
        %v3223 = vpop.f32.mrf.mxu0
        %v3224 = vadd.f32 %v3175, %v3223
        %3225 = vmatmul.bf16.gmra.mxu0 %v1137
        %v3226 = vpop.f32.mrf.mxu0
        %v3227 = vadd.f32 %v3178, %v3226
        %v3228 = vpop.f32.mrf.mxu0
        %v3229 = vadd.f32 %v3180, %v3228
        %3230 = vmatmul.bf16.gmra.mxu0 %v1143
        %v3231 = vpop.f32.mrf.mxu0
        %v3232 = vadd.f32 %v3183, %v3231
        %v3233 = vpop.f32.mrf.mxu0
        %v3234 = vadd.f32 %v3185, %v3233
        %3235 = vmatmul.bf16.gmra.mxu0 %v1149
        %v3236 = vpop.f32.mrf.mxu0
        %v3237 = vadd.f32 %v3188, %v3236
        %v3238 = vpop.f32.mrf.mxu0
        %v3239 = vadd.f32 %v3190, %v3238
        %3240 = vmatmul.bf16.gmra.mxu0 %v1155
        %v3241 = vpop.f32.mrf.mxu0
        %v3242 = vadd.f32 %v3193, %v3241
        %v3243 = vpop.f32.mrf.mxu0
        %v3244 = vadd.f32 %v3195, %v3243
        %3245 = vmatmul.bf16.gmra.mxu0 %v1161
        %v3246 = vpop.f32.mrf.mxu0
        %v3247 = vadd.f32 %v3198, %v3246
        %v3248 = vpop.f32.mrf.mxu0
        %v3249 = vadd.f32 %v3200, %v3248
        %3250 = vmatmul.bf16.gmra.mxu0 %v1167
        %v3251 = vpop.f32.mrf.mxu0
        %v3252 = vadd.f32 %v3203, %v3251
        %v3253 = vpop.f32.mrf.mxu0
        %v3254 = vadd.f32 %v3205, %v3253
        %3255 = vdwg.mxu0
        %3256 = vmatpush.bf16.msra.mxu0 %v1953
        %3257 = vmatpush.bf16.msra.mxu0 %v1949
        %3258 = vmatpush.bf16.msra.mxu0 %v1945
        %3259 = vmatpush.bf16.msra.mxu0 %v1941
        %3260 = vmatpush.bf16.msra.mxu0 %v1937
        %3261 = vmatpush.bf16.msra.mxu0 %v1933
        %3262 = vmatpush.bf16.msra.mxu0 %v1929
        %3263 = vmatpush.bf16.msra.mxu0 %v1925
        %3264 = vmatmul.bf16.gmra.mxu0 %v1126
        %v3265 = vpop.f32.mrf.mxu0
        %v3266 = vadd.f32 %v3217, %v3265
        %v3267 = vpop.f32.mrf.mxu0
        %v3268 = vadd.f32 %v3219, %v3267
        %3269 = vmatmul.bf16.gmra.mxu0 %v1132
        %v3270 = vpop.f32.mrf.mxu0
        %v3271 = vadd.f32 %v3222, %v3270
        %v3272 = vpop.f32.mrf.mxu0
        %v3273 = vadd.f32 %v3224, %v3272
        %3274 = vmatmul.bf16.gmra.mxu0 %v1138
        %v3275 = vpop.f32.mrf.mxu0
        %v3276 = vadd.f32 %v3227, %v3275
        %v3277 = vpop.f32.mrf.mxu0
        %v3278 = vadd.f32 %v3229, %v3277
        %3279 = vmatmul.bf16.gmra.mxu0 %v1144
        %v3280 = vpop.f32.mrf.mxu0
        %v3281 = vadd.f32 %v3232, %v3280
        %v3282 = vpop.f32.mrf.mxu0
        %v3283 = vadd.f32 %v3234, %v3282
        %3284 = vmatmul.bf16.gmra.mxu0 %v1150
        %v3285 = vpop.f32.mrf.mxu0
        %v3286 = vadd.f32 %v3237, %v3285
        %v3287 = vpop.f32.mrf.mxu0
        %v3288 = vadd.f32 %v3239, %v3287
        %3289 = vmatmul.bf16.gmra.mxu0 %v1156
        %v3290 = vpop.f32.mrf.mxu0
        %v3291 = vadd.f32 %v3242, %v3290
        %v3292 = vpop.f32.mrf.mxu0
        %v3293 = vadd.f32 %v3244, %v3292
        %3294 = vmatmul.bf16.gmra.mxu0 %v1162
        %v3295 = vpop.f32.mrf.mxu0
        %v3296 = vadd.f32 %v3247, %v3295
        %v3297 = vpop.f32.mrf.mxu0
        %v3298 = vadd.f32 %v3249, %v3297
        %3299 = vmatmul.bf16.gmra.mxu0 %v1168
        %v3300 = vpop.f32.mrf.mxu0
        %v3301 = vadd.f32 %v3252, %v3300
        %v3302 = vpop.f32.mrf.mxu0
        %v3303 = vadd.f32 %v3254, %v3302
        %3304 = vdwg.mxu0
        %3305 = vmatpush.bf16.msra.mxu0 %v1985
        %3306 = vmatpush.bf16.msra.mxu0 %v1981
        %3307 = vmatpush.bf16.msra.mxu0 %v1977
        %3308 = vmatpush.bf16.msra.mxu0 %v1973
        %3309 = vmatpush.bf16.msra.mxu0 %v1969
        %3310 = vmatpush.bf16.msra.mxu0 %v1965
        %3311 = vmatpush.bf16.msra.mxu0 %v1961
        %3312 = vmatpush.bf16.msra.mxu0 %v1957
        %3313 = vmatmul.bf16.gmra.mxu0 %v1127
        %v3314 = vpop.f32.mrf.mxu0
        %v3315 = vadd.f32 %v3266, %v3314
        %v3316 = vpop.f32.mrf.mxu0
        %v3317 = vadd.f32 %v3268, %v3316
        %3318 = vmatmul.bf16.gmra.mxu0 %v1133
        %v3319 = vpop.f32.mrf.mxu0
        %v3320 = vadd.f32 %v3271, %v3319
        %v3321 = vpop.f32.mrf.mxu0
        %v3322 = vadd.f32 %v3273, %v3321
        %3323 = vmatmul.bf16.gmra.mxu0 %v1139
        %v3324 = vpop.f32.mrf.mxu0
        %v3325 = vadd.f32 %v3276, %v3324
        %v3326 = vpop.f32.mrf.mxu0
        %v3327 = vadd.f32 %v3278, %v3326
        %3328 = vmatmul.bf16.gmra.mxu0 %v1145
        %v3329 = vpop.f32.mrf.mxu0
        %v3330 = vadd.f32 %v3281, %v3329
        %v3331 = vpop.f32.mrf.mxu0
        %v3332 = vadd.f32 %v3283, %v3331
        %3333 = vmatmul.bf16.gmra.mxu0 %v1151
        %v3334 = vpop.f32.mrf.mxu0
        %v3335 = vadd.f32 %v3286, %v3334
        %v3336 = vpop.f32.mrf.mxu0
        %v3337 = vadd.f32 %v3288, %v3336
        %3338 = vmatmul.bf16.gmra.mxu0 %v1157
        %v3339 = vpop.f32.mrf.mxu0
        %v3340 = vadd.f32 %v3291, %v3339
        %v3341 = vpop.f32.mrf.mxu0
        %v3342 = vadd.f32 %v3293, %v3341
        %3343 = vmatmul.bf16.gmra.mxu0 %v1163
        %v3344 = vpop.f32.mrf.mxu0
        %v3345 = vadd.f32 %v3296, %v3344
        %v3346 = vpop.f32.mrf.mxu0
        %v3347 = vadd.f32 %v3298, %v3346
        %3348 = vmatmul.bf16.gmra.mxu0 %v1169
        %v3349 = vpop.f32.mrf.mxu0
        %v3350 = vadd.f32 %v3301, %v3349
        %v3351 = vpop.f32.mrf.mxu0
        %v3352 = vadd.f32 %v3303, %v3351
        %3353 = vdwg.mxu0
        %v3354 = vmax.f32 %v2433, 0.0
        %v3355 = vmax.f32 %v2727, 0.0
        %v3356 = vmax.f32 %v3021, 0.0
        %v3357 = vmax.f32 %v3315, 0.0
        %v3358 = vmax.f32 %v2435, 0.0
        %v3359 = vmax.f32 %v2729, 0.0
        %v3360 = vmax.f32 %v3023, 0.0
        %v3361 = vmax.f32 %v3317, 0.0
        %v3362 = vmax.f32 %v2438, 0.0
        %v3363 = vmax.f32 %v2732, 0.0
        %v3364 = vmax.f32 %v3026, 0.0
        %v3365 = vmax.f32 %v3320, 0.0
        %v3366 = vmax.f32 %v2440, 0.0
        %v3367 = vmax.f32 %v2734, 0.0
        %v3368 = vmax.f32 %v3028, 0.0
        %v3369 = vmax.f32 %v3322, 0.0
        %v3370 = vmax.f32 %v2443, 0.0
        %v3371 = vmax.f32 %v2737, 0.0
        %v3372 = vmax.f32 %v3031, 0.0
        %v3373 = vmax.f32 %v3325, 0.0
        %v3374 = vmax.f32 %v2445, 0.0
        %v3375 = vmax.f32 %v2739, 0.0
        %v3376 = vmax.f32 %v3033, 0.0
        %v3377 = vmax.f32 %v3327, 0.0
        %v3378 = vmax.f32 %v2448, 0.0
        %v3379 = vmax.f32 %v2742, 0.0
        %v3380 = vmax.f32 %v3036, 0.0
        %v3381 = vmax.f32 %v3330, 0.0
        %v3382 = vmax.f32 %v2450, 0.0
        %v3383 = vmax.f32 %v2744, 0.0
        %v3384 = vmax.f32 %v3038, 0.0
        %v3385 = vmax.f32 %v3332, 0.0
        %v3386 = vmax.f32 %v2453, 0.0
        %v3387 = vmax.f32 %v2747, 0.0
        %v3388 = vmax.f32 %v3041, 0.0
        %v3389 = vmax.f32 %v3335, 0.0
        %v3390 = vmax.f32 %v2455, 0.0
        %v3391 = vmax.f32 %v2749, 0.0
        %v3392 = vmax.f32 %v3043, 0.0
        %v3393 = vmax.f32 %v3337, 0.0
        %v3394 = vmax.f32 %v2458, 0.0
        %v3395 = vmax.f32 %v2752, 0.0
        %v3396 = vmax.f32 %v3046, 0.0
        %v3397 = vmax.f32 %v3340, 0.0
        %v3398 = vmax.f32 %v2460, 0.0
        %v3399 = vmax.f32 %v2754, 0.0
        %v3400 = vmax.f32 %v3048, 0.0
        %v3401 = vmax.f32 %v3342, 0.0
        %v3402 = vmax.f32 %v2463, 0.0
        %v3403 = vmax.f32 %v2757, 0.0
        %v3404 = vmax.f32 %v3051, 0.0
        %v3405 = vmax.f32 %v3345, 0.0
        %v3406 = vmax.f32 %v2465, 0.0
        %v3407 = vmax.f32 %v2759, 0.0
        %v3408 = vmax.f32 %v3053, 0.0
        %v3409 = vmax.f32 %v3347, 0.0
        %v3410 = vmax.f32 %v2468, 0.0
        %v3411 = vmax.f32 %v2762, 0.0
        %v3412 = vmax.f32 %v3056, 0.0
        %v3413 = vmax.f32 %v3350, 0.0
        %v3414 = vmax.f32 %v2470, 0.0
        %v3415 = vmax.f32 %v2764, 0.0
        %v3416 = vmax.f32 %v3058, 0.0
        %v3417 = vmax.f32 %v3352, 0.0
        %v3418 = vpack.c.bf16 %v3358, %v3354
        %v3419 = vpack.c.bf16 %v3359, %v3355
        %v3420 = vpack.c.bf16 %v3360, %v3356
        %v3421 = vpack.c.bf16 %v3361, %v3357
        %v3422 = vpack.c.bf16 %v3366, %v3362
        %v3423 = vpack.c.bf16 %v3367, %v3363
        %v3424 = vpack.c.bf16 %v3368, %v3364
        %v3425 = vpack.c.bf16 %v3369, %v3365
        %v3426 = vpack.c.bf16 %v3374, %v3370
        %v3427 = vpack.c.bf16 %v3375, %v3371
        %v3428 = vpack.c.bf16 %v3376, %v3372
        %v3429 = vpack.c.bf16 %v3377, %v3373
        %v3430 = vpack.c.bf16 %v3382, %v3378
        %v3431 = vpack.c.bf16 %v3383, %v3379
        %v3432 = vpack.c.bf16 %v3384, %v3380
        %v3433 = vpack.c.bf16 %v3385, %v3381
        %v3434 = vpack.c.bf16 %v3390, %v3386
        %v3435 = vpack.c.bf16 %v3391, %v3387
        %v3436 = vpack.c.bf16 %v3392, %v3388
        %v3437 = vpack.c.bf16 %v3393, %v3389
        %v3438 = vpack.c.bf16 %v3398, %v3394
        %v3439 = vpack.c.bf16 %v3399, %v3395
        %v3440 = vpack.c.bf16 %v3400, %v3396
        %v3441 = vpack.c.bf16 %v3401, %v3397
        %v3442 = vpack.c.bf16 %v3406, %v3402
        %v3443 = vpack.c.bf16 %v3407, %v3403
        %v3444 = vpack.c.bf16 %v3408, %v3404
        %v3445 = vpack.c.bf16 %v3409, %v3405
        %v3446 = vpack.c.bf16 %v3414, %v3410
        %v3447 = vpack.c.bf16 %v3415, %v3411
        %v3448 = vpack.c.bf16 %v3416, %v3412
        %v3449 = vpack.c.bf16 %v3417, %v3413
        %v3450 = vld [vmem:[#allocation9] sm:$0xff]
        %v3451 = vld [vmem:[#allocation9 + $0x8] sm:$0xff]
        %v3452 = vld [vmem:[#allocation9 + $0x10] sm:$0xff]
        %v3453 = vld [vmem:[#allocation9 + $0x18] sm:$0xff]
        %v3454 = vld [vmem:[#allocation9 + $0x20] sm:$0xff]
        %v3455 = vld [vmem:[#allocation9 + $0x28] sm:$0xff]
        %v3456 = vld [vmem:[#allocation9 + $0x30] sm:$0xff]
        %v3457 = vld [vmem:[#allocation9 + $0x38] sm:$0xff]
        %v3458 = vld [vmem:[#allocation9 + $0x40] sm:$0xff]
        %v3459 = vld [vmem:[#allocation9 + $0x48] sm:$0xff]
        %v3460 = vld [vmem:[#allocation9 + $0x50] sm:$0xff]
        %v3461 = vld [vmem:[#allocation9 + $0x58] sm:$0xff]
        %v3462 = vld [vmem:[#allocation9 + $0x60] sm:$0xff]
        %v3463 = vld [vmem:[#allocation9 + $0x68] sm:$0xff]
        %v3464 = vld [vmem:[#allocation9 + $0x70] sm:$0xff]
        %v3465 = vld [vmem:[#allocation9 + $0x78] sm:$0xff]
        %v3466 = vld [vmem:[#allocation9 + $0x80] sm:$0xff]
        %v3467 = vld [vmem:[#allocation9 + $0x88] sm:$0xff]
        %v3468 = vld [vmem:[#allocation9 + $0x90] sm:$0xff]
        %v3469 = vld [vmem:[#allocation9 + $0x98] sm:$0xff]
        %v3470 = vld [vmem:[#allocation9 + $0xa0] sm:$0xff]
        %v3471 = vld [vmem:[#allocation9 + $0xa8] sm:$0xff]
        %v3472 = vld [vmem:[#allocation9 + $0xb0] sm:$0xff]
        %v3473 = vld [vmem:[#allocation9 + $0xb8] sm:$0xff]
        %v3474 = vld [vmem:[#allocation9 + $0xc0] sm:$0xff]
        %v3475 = vld [vmem:[#allocation9 + $0xc8] sm:$0xff]
        %v3476 = vld [vmem:[#allocation9 + $0xd0] sm:$0xff]
        %v3477 = vld [vmem:[#allocation9 + $0xd8] sm:$0xff]
        %v3478 = vld [vmem:[#allocation9 + $0xe0] sm:$0xff]
        %v3479 = vld [vmem:[#allocation9 + $0xe8] sm:$0xff]
        %v3480 = vld [vmem:[#allocation9 + $0xf0] sm:$0xff]
        %v3481 = vld [vmem:[#allocation9 + $0xf8] sm:$0xff]
        %v3482 = vld [vmem:[#allocation9 + $0x100] sm:$0xff]
        %v3483 = vld [vmem:[#allocation9 + $0x108] sm:$0xff]
        %v3484 = vld [vmem:[#allocation9 + $0x110] sm:$0xff]
        %v3485 = vld [vmem:[#allocation9 + $0x118] sm:$0xff]
        %v3486 = vld [vmem:[#allocation9 + $0x120] sm:$0xff]
        %v3487 = vld [vmem:[#allocation9 + $0x128] sm:$0xff]
        %v3488 = vld [vmem:[#allocation9 + $0x130] sm:$0xff]
        %v3489 = vld [vmem:[#allocation9 + $0x138] sm:$0xff]
        %v3490 = vld [vmem:[#allocation9 + $0x140] sm:$0xff]
        %v3491 = vld [vmem:[#allocation9 + $0x148] sm:$0xff]
        %v3492 = vld [vmem:[#allocation9 + $0x150] sm:$0xff]
        %v3493 = vld [vmem:[#allocation9 + $0x158] sm:$0xff]
        %v3494 = vld [vmem:[#allocation9 + $0x160] sm:$0xff]
        %v3495 = vld [vmem:[#allocation9 + $0x168] sm:$0xff]
        %v3496 = vld [vmem:[#allocation9 + $0x170] sm:$0xff]
        %v3497 = vld [vmem:[#allocation9 + $0x178] sm:$0xff]
        %v3498 = vld [vmem:[#allocation9 + $0x180] sm:$0xff]
        %v3499 = vld [vmem:[#allocation9 + $0x188] sm:$0xff]
        %v3500 = vld [vmem:[#allocation9 + $0x190] sm:$0xff]
        %v3501 = vld [vmem:[#allocation9 + $0x198] sm:$0xff]
        %v3502 = vld [vmem:[#allocation9 + $0x1a0] sm:$0xff]
        %v3503 = vld [vmem:[#allocation9 + $0x1a8] sm:$0xff]
        %v3504 = vld [vmem:[#allocation9 + $0x1b0] sm:$0xff]
        %v3505 = vld [vmem:[#allocation9 + $0x1b8] sm:$0xff]
        %v3506 = vld [vmem:[#allocation9 + $0x1c0] sm:$0xff]
        %v3507 = vld [vmem:[#allocation9 + $0x1c8] sm:$0xff]
        %v3508 = vld [vmem:[#allocation9 + $0x1d0] sm:$0xff]
        %v3509 = vld [vmem:[#allocation9 + $0x1d8] sm:$0xff]
        %v3510 = vld [vmem:[#allocation9 + $0x1e0] sm:$0xff]
        %v3511 = vld [vmem:[#allocation9 + $0x1e8] sm:$0xff]
        %v3512 = vld [vmem:[#allocation9 + $0x1f0] sm:$0xff]
        %v3513 = vld [vmem:[#allocation9 + $0x1f8] sm:$0xff]
        %v3514 = vld [vmem:[%s5] sm:$0x3]
        %v3516 = vperm.slane %v3514, 0
        %v3517 = vperm.slane %v3514, 1
        %v3584 = vunpack.c.l.b16 %v3450
        %v3585 = vunpack.c.h.b16 %v3450
        %v3586 = vunpack.c.l.b16 %v3451
        %v3587 = vunpack.c.h.b16 %v3451
        %v3588 = vunpack.c.l.b16 %v3452
        %v3589 = vunpack.c.h.b16 %v3452
        %v3590 = vunpack.c.l.b16 %v3453
        %v3591 = vunpack.c.h.b16 %v3453
        %v3592 = vunpack.c.l.b16 %v3454
        %v3593 = vunpack.c.h.b16 %v3454
        %v3594 = vunpack.c.l.b16 %v3455
        %v3595 = vunpack.c.h.b16 %v3455
        %v3596 = vunpack.c.l.b16 %v3456
        %v3597 = vunpack.c.h.b16 %v3456
        %v3598 = vunpack.c.l.b16 %v3457
        %v3599 = vunpack.c.h.b16 %v3457
        %v3600 = vunpack.c.l.b16 %v3458
        %v3601 = vunpack.c.h.b16 %v3458
        %v3602 = vunpack.c.l.b16 %v3459
        %v3603 = vunpack.c.h.b16 %v3459
        %v3604 = vunpack.c.l.b16 %v3460
        %v3605 = vunpack.c.h.b16 %v3460
        %v3606 = vunpack.c.l.b16 %v3461
        %v3607 = vunpack.c.h.b16 %v3461
        %v3608 = vunpack.c.l.b16 %v3462
        %v3609 = vunpack.c.h.b16 %v3462
        %v3610 = vunpack.c.l.b16 %v3463
        %v3611 = vunpack.c.h.b16 %v3463
        %v3612 = vunpack.c.l.b16 %v3464
        %v3613 = vunpack.c.h.b16 %v3464
        %v3614 = vunpack.c.l.b16 %v3465
        %v3615 = vunpack.c.h.b16 %v3465
        %v3616 = vunpack.c.l.b16 %v3466
        %v3617 = vunpack.c.h.b16 %v3466
        %v3618 = vunpack.c.l.b16 %v3467
        %v3619 = vunpack.c.h.b16 %v3467
        %v3620 = vunpack.c.l.b16 %v3468
        %v3621 = vunpack.c.h.b16 %v3468
        %v3622 = vunpack.c.l.b16 %v3469
        %v3623 = vunpack.c.h.b16 %v3469
        %v3624 = vunpack.c.l.b16 %v3470
        %v3625 = vunpack.c.h.b16 %v3470
        %v3626 = vunpack.c.l.b16 %v3471
        %v3627 = vunpack.c.h.b16 %v3471
        %v3628 = vunpack.c.l.b16 %v3472
        %v3629 = vunpack.c.h.b16 %v3472
        %v3630 = vunpack.c.l.b16 %v3473
        %v3631 = vunpack.c.h.b16 %v3473
        %v3632 = vunpack.c.l.b16 %v3474
        %v3633 = vunpack.c.h.b16 %v3474
        %v3634 = vunpack.c.l.b16 %v3475
        %v3635 = vunpack.c.h.b16 %v3475
        %v3636 = vunpack.c.l.b16 %v3476
        %v3637 = vunpack.c.h.b16 %v3476
        %v3638 = vunpack.c.l.b16 %v3477
        %v3639 = vunpack.c.h.b16 %v3477
        %v3640 = vunpack.c.l.b16 %v3478
        %v3641 = vunpack.c.h.b16 %v3478
        %v3642 = vunpack.c.l.b16 %v3479
        %v3643 = vunpack.c.h.b16 %v3479
        %v3644 = vunpack.c.l.b16 %v3480
        %v3645 = vunpack.c.h.b16 %v3480
        %v3646 = vunpack.c.l.b16 %v3481
        %v3647 = vunpack.c.h.b16 %v3481
        %v3648 = vunpack.c.l.b16 %v3482
        %v3649 = vunpack.c.h.b16 %v3482
        %v3650 = vunpack.c.l.b16 %v3483
        %v3651 = vunpack.c.h.b16 %v3483
        %v3652 = vunpack.c.l.b16 %v3484
        %v3653 = vunpack.c.h.b16 %v3484
        %v3654 = vunpack.c.l.b16 %v3485
        %v3655 = vunpack.c.h.b16 %v3485
        %v3656 = vunpack.c.l.b16 %v3486
        %v3657 = vunpack.c.h.b16 %v3486
        %v3658 = vunpack.c.l.b16 %v3487
        %v3659 = vunpack.c.h.b16 %v3487
        %v3660 = vunpack.c.l.b16 %v3488
        %v3661 = vunpack.c.h.b16 %v3488
        %v3662 = vunpack.c.l.b16 %v3489
        %v3663 = vunpack.c.h.b16 %v3489
        %v3664 = vunpack.c.l.b16 %v3490
        %v3665 = vunpack.c.h.b16 %v3490
        %v3666 = vunpack.c.l.b16 %v3491
        %v3667 = vunpack.c.h.b16 %v3491
        %v3668 = vunpack.c.l.b16 %v3492
        %v3669 = vunpack.c.h.b16 %v3492
        %v3670 = vunpack.c.l.b16 %v3493
        %v3671 = vunpack.c.h.b16 %v3493
        %v3672 = vunpack.c.l.b16 %v3494
        %v3673 = vunpack.c.h.b16 %v3494
        %v3674 = vunpack.c.l.b16 %v3495
        %v3675 = vunpack.c.h.b16 %v3495
        %v3676 = vunpack.c.l.b16 %v3496
        %v3677 = vunpack.c.h.b16 %v3496
        %v3678 = vunpack.c.l.b16 %v3497
        %v3679 = vunpack.c.h.b16 %v3497
        %v3680 = vunpack.c.l.b16 %v3498
        %v3681 = vunpack.c.h.b16 %v3498
        %v3682 = vunpack.c.l.b16 %v3499
        %v3683 = vunpack.c.h.b16 %v3499
        %v3684 = vunpack.c.l.b16 %v3500
        %v3685 = vunpack.c.h.b16 %v3500
        %v3686 = vunpack.c.l.b16 %v3501
        %v3687 = vunpack.c.h.b16 %v3501
        %v3688 = vunpack.c.l.b16 %v3502
        %v3689 = vunpack.c.h.b16 %v3502
        %v3690 = vunpack.c.l.b16 %v3503
        %v3691 = vunpack.c.h.b16 %v3503
        %v3692 = vunpack.c.l.b16 %v3504
        %v3693 = vunpack.c.h.b16 %v3504
        %v3694 = vunpack.c.l.b16 %v3505
        %v3695 = vunpack.c.h.b16 %v3505
        %v3696 = vunpack.c.l.b16 %v3506
        %v3697 = vunpack.c.h.b16 %v3506
        %v3698 = vunpack.c.l.b16 %v3507
        %v3699 = vunpack.c.h.b16 %v3507
        %v3700 = vunpack.c.l.b16 %v3508
        %v3701 = vunpack.c.h.b16 %v3508
        %v3702 = vunpack.c.l.b16 %v3509
        %v3703 = vunpack.c.h.b16 %v3509
        %v3704 = vunpack.c.l.b16 %v3510
        %v3705 = vunpack.c.h.b16 %v3510
        %v3706 = vunpack.c.l.b16 %v3511
        %v3707 = vunpack.c.h.b16 %v3511
        %v3708 = vunpack.c.l.b16 %v3512
        %v3709 = vunpack.c.h.b16 %v3512
        %v3710 = vunpack.c.l.b16 %v3513
        %v3711 = vunpack.c.h.b16 %v3513
        %v3712 = vpack.c.b16 %v3586, %v3584
        %v3713 = vpack.c.b16 %v3587, %v3585
        %v3714 = vpack.c.b16 %v3590, %v3588
        %v3715 = vpack.c.b16 %v3591, %v3589
        %v3716 = vpack.c.b16 %v3594, %v3592
        %v3717 = vpack.c.b16 %v3595, %v3593
        %v3718 = vpack.c.b16 %v3598, %v3596
        %v3719 = vpack.c.b16 %v3599, %v3597
        %v3720 = vpack.c.b16 %v3602, %v3600
        %v3721 = vpack.c.b16 %v3603, %v3601
        %v3722 = vpack.c.b16 %v3606, %v3604
        %v3723 = vpack.c.b16 %v3607, %v3605
        %v3724 = vpack.c.b16 %v3610, %v3608
        %v3725 = vpack.c.b16 %v3611, %v3609
        %v3726 = vpack.c.b16 %v3614, %v3612
        %v3727 = vpack.c.b16 %v3615, %v3613
        %v3728 = vpack.c.b16 %v3618, %v3616
        %v3729 = vpack.c.b16 %v3619, %v3617
        %v3730 = vpack.c.b16 %v3622, %v3620
        %v3731 = vpack.c.b16 %v3623, %v3621
        %v3732 = vpack.c.b16 %v3626, %v3624
        %v3733 = vpack.c.b16 %v3627, %v3625
        %v3734 = vpack.c.b16 %v3630, %v3628
        %v3735 = vpack.c.b16 %v3631, %v3629
        %v3736 = vpack.c.b16 %v3634, %v3632
        %v3737 = vpack.c.b16 %v3635, %v3633
        %v3738 = vpack.c.b16 %v3638, %v3636
        %v3739 = vpack.c.b16 %v3639, %v3637
        %v3740 = vpack.c.b16 %v3642, %v3640
        %v3741 = vpack.c.b16 %v3643, %v3641
        %v3742 = vpack.c.b16 %v3646, %v3644
        %v3743 = vpack.c.b16 %v3647, %v3645
        %v3744 = vpack.c.b16 %v3650, %v3648
        %v3745 = vpack.c.b16 %v3651, %v3649
        %v3746 = vpack.c.b16 %v3654, %v3652
        %v3747 = vpack.c.b16 %v3655, %v3653
        %v3748 = vpack.c.b16 %v3658, %v3656
        %v3749 = vpack.c.b16 %v3659, %v3657
        %v3750 = vpack.c.b16 %v3662, %v3660
        %v3751 = vpack.c.b16 %v3663, %v3661
        %v3752 = vpack.c.b16 %v3666, %v3664
        %v3753 = vpack.c.b16 %v3667, %v3665
        %v3754 = vpack.c.b16 %v3670, %v3668
        %v3755 = vpack.c.b16 %v3671, %v3669
        %v3756 = vpack.c.b16 %v3674, %v3672
        %v3757 = vpack.c.b16 %v3675, %v3673
        %v3758 = vpack.c.b16 %v3678, %v3676
        %v3759 = vpack.c.b16 %v3679, %v3677
        %v3760 = vpack.c.b16 %v3682, %v3680
        %v3761 = vpack.c.b16 %v3683, %v3681
        %v3762 = vpack.c.b16 %v3686, %v3684
        %v3763 = vpack.c.b16 %v3687, %v3685
        %v3764 = vpack.c.b16 %v3690, %v3688
        %v3765 = vpack.c.b16 %v3691, %v3689
        %v3766 = vpack.c.b16 %v3694, %v3692
        %v3767 = vpack.c.b16 %v3695, %v3693
        %v3768 = vpack.c.b16 %v3698, %v3696
        %v3769 = vpack.c.b16 %v3699, %v3697
        %v3770 = vpack.c.b16 %v3702, %v3700
        %v3771 = vpack.c.b16 %v3703, %v3701
        %v3772 = vpack.c.b16 %v3706, %v3704
        %v3773 = vpack.c.b16 %v3707, %v3705
        %v3774 = vpack.c.b16 %v3710, %v3708
        %v3775 = vpack.c.b16 %v3711, %v3709
        %3840 = vmatpush.bf16.msra.mxu0 %v3726
        %3841 = vmatpush.bf16.msra.mxu0 %v3724
        %3842 = vmatpush.bf16.msra.mxu0 %v3722
        %3843 = vmatpush.bf16.msra.mxu0 %v3720
        %3844 = vmatpush.bf16.msra.mxu0 %v3718
        %3845 = vmatpush.bf16.msra.mxu0 %v3716
        %3846 = vmatpush.bf16.msra.mxu0 %v3714
        %3847 = vmatpush.bf16.msra.mxu0 %v3712
        %3848 = vmatmul.bf16.gmra.mxu0 %v3418
        %v3849 = vpop.f32.mrf.mxu0
        %v3850 = vadd.f32 %v3516, %v3849
        %v3851 = vpop.f32.mrf.mxu0
        %v3852 = vadd.f32 %v3516, %v3851
        %3853 = vmatmul.bf16.gmra.mxu0 %v3422
        %v3854 = vpop.f32.mrf.mxu0
        %v3855 = vadd.f32 %v3516, %v3854
        %v3856 = vpop.f32.mrf.mxu0
        %v3857 = vadd.f32 %v3516, %v3856
        %3858 = vmatmul.bf16.gmra.mxu0 %v3426
        %v3859 = vpop.f32.mrf.mxu0
        %v3860 = vadd.f32 %v3516, %v3859
        %v3861 = vpop.f32.mrf.mxu0
        %v3862 = vadd.f32 %v3516, %v3861
        %3863 = vmatmul.bf16.gmra.mxu0 %v3430
        %v3864 = vpop.f32.mrf.mxu0
        %v3865 = vadd.f32 %v3516, %v3864
        %v3866 = vpop.f32.mrf.mxu0
        %v3867 = vadd.f32 %v3516, %v3866
        %3868 = vmatmul.bf16.gmra.mxu0 %v3434
        %v3869 = vpop.f32.mrf.mxu0
        %v3870 = vadd.f32 %v3516, %v3869
        %v3871 = vpop.f32.mrf.mxu0
        %v3872 = vadd.f32 %v3516, %v3871
        %3873 = vmatmul.bf16.gmra.mxu0 %v3438
        %v3874 = vpop.f32.mrf.mxu0
        %v3875 = vadd.f32 %v3516, %v3874
        %v3876 = vpop.f32.mrf.mxu0
        %v3877 = vadd.f32 %v3516, %v3876
        %3878 = vmatmul.bf16.gmra.mxu0 %v3442
        %v3879 = vpop.f32.mrf.mxu0
        %v3880 = vadd.f32 %v3516, %v3879
        %v3881 = vpop.f32.mrf.mxu0
        %v3882 = vadd.f32 %v3516, %v3881
        %3883 = vmatmul.bf16.gmra.mxu0 %v3446
        %v3884 = vpop.f32.mrf.mxu0
        %v3885 = vadd.f32 %v3516, %v3884
        %v3886 = vpop.f32.mrf.mxu0
        %v3887 = vadd.f32 %v3516, %v3886
        %3888 = vdwg.mxu0
        %3889 = vmatpush.bf16.msra.mxu0 %v3742
        %3890 = vmatpush.bf16.msra.mxu0 %v3740
        %3891 = vmatpush.bf16.msra.mxu0 %v3738
        %3892 = vmatpush.bf16.msra.mxu0 %v3736
        %3893 = vmatpush.bf16.msra.mxu0 %v3734
        %3894 = vmatpush.bf16.msra.mxu0 %v3732
        %3895 = vmatpush.bf16.msra.mxu0 %v3730
        %3896 = vmatpush.bf16.msra.mxu0 %v3728
        %3897 = vmatmul.bf16.gmra.mxu0 %v3419
        %v3898 = vpop.f32.mrf.mxu0
        %v3899 = vadd.f32 %v3850, %v3898
        %v3900 = vpop.f32.mrf.mxu0
        %v3901 = vadd.f32 %v3852, %v3900
        %3902 = vmatmul.bf16.gmra.mxu0 %v3423
        %v3903 = vpop.f32.mrf.mxu0
        %v3904 = vadd.f32 %v3855, %v3903
        %v3905 = vpop.f32.mrf.mxu0
        %v3906 = vadd.f32 %v3857, %v3905
        %3907 = vmatmul.bf16.gmra.mxu0 %v3427
        %v3908 = vpop.f32.mrf.mxu0
        %v3909 = vadd.f32 %v3860, %v3908
        %v3910 = vpop.f32.mrf.mxu0
        %v3911 = vadd.f32 %v3862, %v3910
        %3912 = vmatmul.bf16.gmra.mxu0 %v3431
        %v3913 = vpop.f32.mrf.mxu0
        %v3914 = vadd.f32 %v3865, %v3913
        %v3915 = vpop.f32.mrf.mxu0
        %v3916 = vadd.f32 %v3867, %v3915
        %3917 = vmatmul.bf16.gmra.mxu0 %v3435
        %v3918 = vpop.f32.mrf.mxu0
        %v3919 = vadd.f32 %v3870, %v3918
        %v3920 = vpop.f32.mrf.mxu0
        %v3921 = vadd.f32 %v3872, %v3920
        %3922 = vmatmul.bf16.gmra.mxu0 %v3439
        %v3923 = vpop.f32.mrf.mxu0
        %v3924 = vadd.f32 %v3875, %v3923
        %v3925 = vpop.f32.mrf.mxu0
        %v3926 = vadd.f32 %v3877, %v3925
        %3927 = vmatmul.bf16.gmra.mxu0 %v3443
        %v3928 = vpop.f32.mrf.mxu0
        %v3929 = vadd.f32 %v3880, %v3928
        %v3930 = vpop.f32.mrf.mxu0
        %v3931 = vadd.f32 %v3882, %v3930
        %3932 = vmatmul.bf16.gmra.mxu0 %v3447
        %v3933 = vpop.f32.mrf.mxu0
        %v3934 = vadd.f32 %v3885, %v3933
        %v3935 = vpop.f32.mrf.mxu0
        %v3936 = vadd.f32 %v3887, %v3935
        %3937 = vdwg.mxu0
        %3938 = vmatpush.bf16.msra.mxu0 %v3758
        %3939 = vmatpush.bf16.msra.mxu0 %v3756
        %3940 = vmatpush.bf16.msra.mxu0 %v3754
        %3941 = vmatpush.bf16.msra.mxu0 %v3752
        %3942 = vmatpush.bf16.msra.mxu0 %v3750
        %3943 = vmatpush.bf16.msra.mxu0 %v3748
        %3944 = vmatpush.bf16.msra.mxu0 %v3746
        %3945 = vmatpush.bf16.msra.mxu0 %v3744
        %3946 = vmatmul.bf16.gmra.mxu0 %v3420
        %v3947 = vpop.f32.mrf.mxu0
        %v3948 = vadd.f32 %v3899, %v3947
        %v3949 = vpop.f32.mrf.mxu0
        %v3950 = vadd.f32 %v3901, %v3949
        %3951 = vmatmul.bf16.gmra.mxu0 %v3424
        %v3952 = vpop.f32.mrf.mxu0
        %v3953 = vadd.f32 %v3904, %v3952
        %v3954 = vpop.f32.mrf.mxu0
        %v3955 = vadd.f32 %v3906, %v3954
        %3956 = vmatmul.bf16.gmra.mxu0 %v3428
        %v3957 = vpop.f32.mrf.mxu0
        %v3958 = vadd.f32 %v3909, %v3957
        %v3959 = vpop.f32.mrf.mxu0
        %v3960 = vadd.f32 %v3911, %v3959
        %3961 = vmatmul.bf16.gmra.mxu0 %v3432
        %v3962 = vpop.f32.mrf.mxu0
        %v3963 = vadd.f32 %v3914, %v3962
        %v3964 = vpop.f32.mrf.mxu0
        %v3965 = vadd.f32 %v3916, %v3964
        %3966 = vmatmul.bf16.gmra.mxu0 %v3436
        %v3967 = vpop.f32.mrf.mxu0
        %v3968 = vadd.f32 %v3919, %v3967
        %v3969 = vpop.f32.mrf.mxu0
        %v3970 = vadd.f32 %v3921, %v3969
        %3971 = vmatmul.bf16.gmra.mxu0 %v3440
        %v3972 = vpop.f32.mrf.mxu0
        %v3973 = vadd.f32 %v3924, %v3972
        %v3974 = vpop.f32.mrf.mxu0
        %v3975 = vadd.f32 %v3926, %v3974
        %3976 = vmatmul.bf16.gmra.mxu0 %v3444
        %v3977 = vpop.f32.mrf.mxu0
        %v3978 = vadd.f32 %v3929, %v3977
        %v3979 = vpop.f32.mrf.mxu0
        %v3980 = vadd.f32 %v3931, %v3979
        %3981 = vmatmul.bf16.gmra.mxu0 %v3448
        %v3982 = vpop.f32.mrf.mxu0
        %v3983 = vadd.f32 %v3934, %v3982
        %v3984 = vpop.f32.mrf.mxu0
        %v3985 = vadd.f32 %v3936, %v3984
        %3986 = vdwg.mxu0
        %3987 = vmatpush.bf16.msra.mxu0 %v3774
        %3988 = vmatpush.bf16.msra.mxu0 %v3772
        %3989 = vmatpush.bf16.msra.mxu0 %v3770
        %3990 = vmatpush.bf16.msra.mxu0 %v3768
        %3991 = vmatpush.bf16.msra.mxu0 %v3766
        %3992 = vmatpush.bf16.msra.mxu0 %v3764
        %3993 = vmatpush.bf16.msra.mxu0 %v3762
        %3994 = vmatpush.bf16.msra.mxu0 %v3760
        %3995 = vmatmul.bf16.gmra.mxu0 %v3421
        %v3996 = vpop.f32.mrf.mxu0
        %v3997 = vadd.f32 %v3948, %v3996
        %v3998 = vpop.f32.mrf.mxu0
        %v3999 = vadd.f32 %v3950, %v3998
        %4000 = vmatmul.bf16.gmra.mxu0 %v3425
        %v4001 = vpop.f32.mrf.mxu0
        %v4002 = vadd.f32 %v3953, %v4001
        %v4003 = vpop.f32.mrf.mxu0
        %v4004 = vadd.f32 %v3955, %v4003
        %4005 = vmatmul.bf16.gmra.mxu0 %v3429
        %v4006 = vpop.f32.mrf.mxu0
        %v4007 = vadd.f32 %v3958, %v4006
        %v4008 = vpop.f32.mrf.mxu0
        %v4009 = vadd.f32 %v3960, %v4008
        %4010 = vmatmul.bf16.gmra.mxu0 %v3433
        %v4011 = vpop.f32.mrf.mxu0
        %v4012 = vadd.f32 %v3963, %v4011
        %v4013 = vpop.f32.mrf.mxu0
        %v4014 = vadd.f32 %v3965, %v4013
        %4015 = vmatmul.bf16.gmra.mxu0 %v3437
        %v4016 = vpop.f32.mrf.mxu0
        %v4017 = vadd.f32 %v3968, %v4016
        %v4018 = vpop.f32.mrf.mxu0
        %v4019 = vadd.f32 %v3970, %v4018
        %4020 = vmatmul.bf16.gmra.mxu0 %v3441
        %v4021 = vpop.f32.mrf.mxu0
        %v4022 = vadd.f32 %v3973, %v4021
        %v4023 = vpop.f32.mrf.mxu0
        %v4024 = vadd.f32 %v3975, %v4023
        %4025 = vmatmul.bf16.gmra.mxu0 %v3445
        %v4026 = vpop.f32.mrf.mxu0
        %v4027 = vadd.f32 %v3978, %v4026
        %v4028 = vpop.f32.mrf.mxu0
        %v4029 = vadd.f32 %v3980, %v4028
        %4030 = vmatmul.bf16.gmra.mxu0 %v3449
        %v4031 = vpop.f32.mrf.mxu0
        %v4032 = vadd.f32 %v3983, %v4031
        %v4033 = vpop.f32.mrf.mxu0
        %v4034 = vadd.f32 %v3985, %v4033
        %4035 = vdwg.mxu0
        %4036 = vmatpush.bf16.msra.mxu0 %v3727
        %4037 = vmatpush.bf16.msra.mxu0 %v3725
        %4038 = vmatpush.bf16.msra.mxu0 %v3723
        %4039 = vmatpush.bf16.msra.mxu0 %v3721
        %4040 = vmatpush.bf16.msra.mxu0 %v3719
        %4041 = vmatpush.bf16.msra.mxu0 %v3717
        %4042 = vmatpush.bf16.msra.mxu0 %v3715
        %4043 = vmatpush.bf16.msra.mxu0 %v3713
        %4044 = vmatmul.bf16.gmra.mxu0 %v3418
        %v4045 = vpop.f32.mrf.mxu0
        %v4046 = vadd.f32 %v3517, %v4045
        %v4047 = vpop.f32.mrf.mxu0
        %v4048 = vadd.f32 %v3517, %v4047
        %4049 = vmatmul.bf16.gmra.mxu0 %v3422
        %v4050 = vpop.f32.mrf.mxu0
        %v4051 = vadd.f32 %v3517, %v4050
        %v4052 = vpop.f32.mrf.mxu0
        %v4053 = vadd.f32 %v3517, %v4052
        %4054 = vmatmul.bf16.gmra.mxu0 %v3426
        %v4055 = vpop.f32.mrf.mxu0
        %v4056 = vadd.f32 %v3517, %v4055
        %v4057 = vpop.f32.mrf.mxu0
        %v4058 = vadd.f32 %v3517, %v4057
        %4059 = vmatmul.bf16.gmra.mxu0 %v3430
        %v4060 = vpop.f32.mrf.mxu0
        %v4061 = vadd.f32 %v3517, %v4060
        %v4062 = vpop.f32.mrf.mxu0
        %v4063 = vadd.f32 %v3517, %v4062
        %4064 = vmatmul.bf16.gmra.mxu0 %v3434
        %v4065 = vpop.f32.mrf.mxu0
        %v4066 = vadd.f32 %v3517, %v4065
        %v4067 = vpop.f32.mrf.mxu0
        %v4068 = vadd.f32 %v3517, %v4067
        %4069 = vmatmul.bf16.gmra.mxu0 %v3438
        %v4070 = vpop.f32.mrf.mxu0
        %v4071 = vadd.f32 %v3517, %v4070
        %v4072 = vpop.f32.mrf.mxu0
        %v4073 = vadd.f32 %v3517, %v4072
        %4074 = vmatmul.bf16.gmra.mxu0 %v3442
        %v4075 = vpop.f32.mrf.mxu0
        %v4076 = vadd.f32 %v3517, %v4075
        %v4077 = vpop.f32.mrf.mxu0
        %v4078 = vadd.f32 %v3517, %v4077
        %4079 = vmatmul.bf16.gmra.mxu0 %v3446
        %v4080 = vpop.f32.mrf.mxu0
        %v4081 = vadd.f32 %v3517, %v4080
        %v4082 = vpop.f32.mrf.mxu0
        %v4083 = vadd.f32 %v3517, %v4082
        %4084 = vdwg.mxu0
        %4085 = vmatpush.bf16.msra.mxu0 %v3743
        %4086 = vmatpush.bf16.msra.mxu0 %v3741
        %4087 = vmatpush.bf16.msra.mxu0 %v3739
        %4088 = vmatpush.bf16.msra.mxu0 %v3737
        %4089 = vmatpush.bf16.msra.mxu0 %v3735
        %4090 = vmatpush.bf16.msra.mxu0 %v3733
        %4091 = vmatpush.bf16.msra.mxu0 %v3731
        %4092 = vmatpush.bf16.msra.mxu0 %v3729
        %4093 = vmatmul.bf16.gmra.mxu0 %v3419
        %v4094 = vpop.f32.mrf.mxu0
        %v4095 = vadd.f32 %v4046, %v4094
        %v4096 = vpop.f32.mrf.mxu0
        %v4097 = vadd.f32 %v4048, %v4096
        %4098 = vmatmul.bf16.gmra.mxu0 %v3423
        %v4099 = vpop.f32.mrf.mxu0
        %v4100 = vadd.f32 %v4051, %v4099
        %v4101 = vpop.f32.mrf.mxu0
        %v4102 = vadd.f32 %v4053, %v4101
        %4103 = vmatmul.bf16.gmra.mxu0 %v3427
        %v4104 = vpop.f32.mrf.mxu0
        %v4105 = vadd.f32 %v4056, %v4104
        %v4106 = vpop.f32.mrf.mxu0
        %v4107 = vadd.f32 %v4058, %v4106
        %4108 = vmatmul.bf16.gmra.mxu0 %v3431
        %v4109 = vpop.f32.mrf.mxu0
        %v4110 = vadd.f32 %v4061, %v4109
        %v4111 = vpop.f32.mrf.mxu0
        %v4112 = vadd.f32 %v4063, %v4111
        %4113 = vmatmul.bf16.gmra.mxu0 %v3435
        %v4114 = vpop.f32.mrf.mxu0
        %v4115 = vadd.f32 %v4066, %v4114
        %v4116 = vpop.f32.mrf.mxu0
        %v4117 = vadd.f32 %v4068, %v4116
        %4118 = vmatmul.bf16.gmra.mxu0 %v3439
        %v4119 = vpop.f32.mrf.mxu0
        %v4120 = vadd.f32 %v4071, %v4119
        %v4121 = vpop.f32.mrf.mxu0
        %v4122 = vadd.f32 %v4073, %v4121
        %4123 = vmatmul.bf16.gmra.mxu0 %v3443
        %v4124 = vpop.f32.mrf.mxu0
        %v4125 = vadd.f32 %v4076, %v4124
        %v4126 = vpop.f32.mrf.mxu0
        %v4127 = vadd.f32 %v4078, %v4126
        %4128 = vmatmul.bf16.gmra.mxu0 %v3447
        %v4129 = vpop.f32.mrf.mxu0
        %v4130 = vadd.f32 %v4081, %v4129
        %v4131 = vpop.f32.mrf.mxu0
        %v4132 = vadd.f32 %v4083, %v4131
        %4133 = vdwg.mxu0
        %4134 = vmatpush.bf16.msra.mxu0 %v3759
        %4135 = vmatpush.bf16.msra.mxu0 %v3757
        %4136 = vmatpush.bf16.msra.mxu0 %v3755
        %4137 = vmatpush.bf16.msra.mxu0 %v3753
        %4138 = vmatpush.bf16.msra.mxu0 %v3751
        %4139 = vmatpush.bf16.msra.mxu0 %v3749
        %4140 = vmatpush.bf16.msra.mxu0 %v3747
        %4141 = vmatpush.bf16.msra.mxu0 %v3745
        %4142 = vmatmul.bf16.gmra.mxu0 %v3420
        %v4143 = vpop.f32.mrf.mxu0
        %v4144 = vadd.f32 %v4095, %v4143
        %v4145 = vpop.f32.mrf.mxu0
        %v4146 = vadd.f32 %v4097, %v4145
        %4147 = vmatmul.bf16.gmra.mxu0 %v3424
        %v4148 = vpop.f32.mrf.mxu0
        %v4149 = vadd.f32 %v4100, %v4148
        %v4150 = vpop.f32.mrf.mxu0
        %v4151 = vadd.f32 %v4102, %v4150
        %4152 = vmatmul.bf16.gmra.mxu0 %v3428
        %v4153 = vpop.f32.mrf.mxu0
        %v4154 = vadd.f32 %v4105, %v4153
        %v4155 = vpop.f32.mrf.mxu0
        %v4156 = vadd.f32 %v4107, %v4155
        %4157 = vmatmul.bf16.gmra.mxu0 %v3432
        %v4158 = vpop.f32.mrf.mxu0
        %v4159 = vadd.f32 %v4110, %v4158
        %v4160 = vpop.f32.mrf.mxu0
        %v4161 = vadd.f32 %v4112, %v4160
        %4162 = vmatmul.bf16.gmra.mxu0 %v3436
        %v4163 = vpop.f32.mrf.mxu0
        %v4164 = vadd.f32 %v4115, %v4163
        %v4165 = vpop.f32.mrf.mxu0
        %v4166 = vadd.f32 %v4117, %v4165
        %4167 = vmatmul.bf16.gmra.mxu0 %v3440
        %v4168 = vpop.f32.mrf.mxu0
        %v4169 = vadd.f32 %v4120, %v4168
        %v4170 = vpop.f32.mrf.mxu0
        %v4171 = vadd.f32 %v4122, %v4170
        %4172 = vmatmul.bf16.gmra.mxu0 %v3444
        %v4173 = vpop.f32.mrf.mxu0
        %v4174 = vadd.f32 %v4125, %v4173
        %v4175 = vpop.f32.mrf.mxu0
        %v4176 = vadd.f32 %v4127, %v4175
        %4177 = vmatmul.bf16.gmra.mxu0 %v3448
        %v4178 = vpop.f32.mrf.mxu0
        %v4179 = vadd.f32 %v4130, %v4178
        %v4180 = vpop.f32.mrf.mxu0
        %v4181 = vadd.f32 %v4132, %v4180
        %4182 = vdwg.mxu0
        %4183 = vmatpush.bf16.msra.mxu0 %v3775
        %4184 = vmatpush.bf16.msra.mxu0 %v3773
        %4185 = vmatpush.bf16.msra.mxu0 %v3771
        %4186 = vmatpush.bf16.msra.mxu0 %v3769
        %4187 = vmatpush.bf16.msra.mxu0 %v3767
        %4188 = vmatpush.bf16.msra.mxu0 %v3765
        %4189 = vmatpush.bf16.msra.mxu0 %v3763
        %4190 = vmatpush.bf16.msra.mxu0 %v3761
        %4191 = vmatmul.bf16.gmra.mxu0 %v3421
        %v4192 = vpop.f32.mrf.mxu0
        %v4193 = vadd.f32 %v4144, %v4192
        %v4194 = vpop.f32.mrf.mxu0
        %v4195 = vadd.f32 %v4146, %v4194
        %4196 = vmatmul.bf16.gmra.mxu0 %v3425
        %v4197 = vpop.f32.mrf.mxu0
        %v4198 = vadd.f32 %v4149, %v4197
        %v4199 = vpop.f32.mrf.mxu0
        %v4200 = vadd.f32 %v4151, %v4199
        %4201 = vmatmul.bf16.gmra.mxu0 %v3429
        %v4202 = vpop.f32.mrf.mxu0
        %v4203 = vadd.f32 %v4154, %v4202
        %v4204 = vpop.f32.mrf.mxu0
        %v4205 = vadd.f32 %v4156, %v4204
        %4206 = vmatmul.bf16.gmra.mxu0 %v3433
        %v4207 = vpop.f32.mrf.mxu0
        %v4208 = vadd.f32 %v4159, %v4207
        %v4209 = vpop.f32.mrf.mxu0
        %v4210 = vadd.f32 %v4161, %v4209
        %4211 = vmatmul.bf16.gmra.mxu0 %v3437
        %v4212 = vpop.f32.mrf.mxu0
        %v4213 = vadd.f32 %v4164, %v4212
        %v4214 = vpop.f32.mrf.mxu0
        %v4215 = vadd.f32 %v4166, %v4214
        %4216 = vmatmul.bf16.gmra.mxu0 %v3441
        %v4217 = vpop.f32.mrf.mxu0
        %v4218 = vadd.f32 %v4169, %v4217
        %v4219 = vpop.f32.mrf.mxu0
        %v4220 = vadd.f32 %v4171, %v4219
        %4221 = vmatmul.bf16.gmra.mxu0 %v3445
        %v4222 = vpop.f32.mrf.mxu0
        %v4223 = vadd.f32 %v4174, %v4222
        %v4224 = vpop.f32.mrf.mxu0
        %v4225 = vadd.f32 %v4176, %v4224
        %4226 = vmatmul.bf16.gmra.mxu0 %v3449
        %v4227 = vpop.f32.mrf.mxu0
        %v4228 = vadd.f32 %v4179, %v4227
        %v4229 = vpop.f32.mrf.mxu0
        %v4230 = vadd.f32 %v4181, %v4229
        %4231 = vdwg.mxu0
        %v4232 = vmax.f32 %v3997, 0.0
        %v4233 = vmax.f32 %v4193, 0.0
        %v4234 = vmax.f32 %v3999, 0.0
        %v4235 = vmax.f32 %v4195, 0.0
        %v4236 = vmax.f32 %v4002, 0.0
        %v4237 = vmax.f32 %v4198, 0.0
        %v4238 = vmax.f32 %v4004, 0.0
        %v4239 = vmax.f32 %v4200, 0.0
        %v4240 = vmax.f32 %v4007, 0.0
        %v4241 = vmax.f32 %v4203, 0.0
        %v4242 = vmax.f32 %v4009, 0.0
        %v4243 = vmax.f32 %v4205, 0.0
        %v4244 = vmax.f32 %v4012, 0.0
        %v4245 = vmax.f32 %v4208, 0.0
        %v4246 = vmax.f32 %v4014, 0.0
        %v4247 = vmax.f32 %v4210, 0.0
        %v4248 = vmax.f32 %v4017, 0.0
        %v4249 = vmax.f32 %v4213, 0.0
        %v4250 = vmax.f32 %v4019, 0.0
        %v4251 = vmax.f32 %v4215, 0.0
        %v4252 = vmax.f32 %v4022, 0.0
        %v4253 = vmax.f32 %v4218, 0.0
        %v4254 = vmax.f32 %v4024, 0.0
        %v4255 = vmax.f32 %v4220, 0.0
        %v4256 = vmax.f32 %v4027, 0.0
        %v4257 = vmax.f32 %v4223, 0.0
        %v4258 = vmax.f32 %v4029, 0.0
        %v4259 = vmax.f32 %v4225, 0.0
        %v4260 = vmax.f32 %v4032, 0.0
        %v4261 = vmax.f32 %v4228, 0.0
        %v4262 = vmax.f32 %v4034, 0.0
        %v4263 = vmax.f32 %v4230, 0.0
        %v4264 = vpack.c.bf16 %v4234, %v4232
        %v4265 = vpack.c.bf16 %v4235, %v4233
        %v4266 = vpack.c.bf16 %v4238, %v4236
        %v4267 = vpack.c.bf16 %v4239, %v4237
        %v4268 = vpack.c.bf16 %v4242, %v4240
        %v4269 = vpack.c.bf16 %v4243, %v4241
        %v4270 = vpack.c.bf16 %v4246, %v4244
        %v4271 = vpack.c.bf16 %v4247, %v4245
        %v4272 = vpack.c.bf16 %v4250, %v4248
        %v4273 = vpack.c.bf16 %v4251, %v4249
        %v4274 = vpack.c.bf16 %v4254, %v4252
        %v4275 = vpack.c.bf16 %v4255, %v4253
        %v4276 = vpack.c.bf16 %v4258, %v4256
        %v4277 = vpack.c.bf16 %v4259, %v4257
        %v4278 = vpack.c.bf16 %v4262, %v4260
        %v4279 = vpack.c.bf16 %v4263, %v4261
        %v4280 = vld [vmem:[#allocation11] sm:$0xf]
        %v4281 = vld [vmem:[#allocation11 + $0x4] sm:$0xf]
        %v4282 = vld [vmem:[#allocation11 + $0x8] sm:$0xf]
        %v4283 = vld [vmem:[#allocation11 + $0xc] sm:$0xf]
        %v4284 = vld [vmem:[#allocation11 + $0x10] sm:$0xf]
        %v4285 = vld [vmem:[#allocation11 + $0x14] sm:$0xf]
        %v4286 = vld [vmem:[#allocation11 + $0x18] sm:$0xf]
        %v4287 = vld [vmem:[#allocation11 + $0x1c] sm:$0xf]
        %v4288 = vld [vmem:[#allocation11 + $0x20] sm:$0xf]
        %v4289 = vld [vmem:[#allocation11 + $0x24] sm:$0xf]
        %v4290 = vld [vmem:[#allocation11 + $0x28] sm:$0xf]
        %v4291 = vld [vmem:[#allocation11 + $0x2c] sm:$0xf]
        %v4292 = vld [vmem:[#allocation11 + $0x30] sm:$0xf]
        %v4293 = vld [vmem:[#allocation11 + $0x34] sm:$0xf]
        %v4294 = vld [vmem:[#allocation11 + $0x38] sm:$0xf]
        %v4295 = vld [vmem:[#allocation11 + $0x3c] sm:$0xf]
        %v4296 = vld [vmem:[#allocation11 + $0x40] sm:$0xf]
        %v4297 = vld [vmem:[#allocation11 + $0x44] sm:$0xf]
        %v4298 = vld [vmem:[#allocation11 + $0x48] sm:$0xf]
        %v4299 = vld [vmem:[#allocation11 + $0x4c] sm:$0xf]
        %v4300 = vld [vmem:[#allocation11 + $0x50] sm:$0xf]
        %v4301 = vld [vmem:[#allocation11 + $0x54] sm:$0xf]
        %v4302 = vld [vmem:[#allocation11 + $0x58] sm:$0xf]
        %v4303 = vld [vmem:[#allocation11 + $0x5c] sm:$0xf]
        %v4304 = vld [vmem:[#allocation11 + $0x60] sm:$0xf]
        %v4305 = vld [vmem:[#allocation11 + $0x64] sm:$0xf]
        %v4306 = vld [vmem:[#allocation11 + $0x68] sm:$0xf]
        %v4307 = vld [vmem:[#allocation11 + $0x6c] sm:$0xf]
        %v4308 = vld [vmem:[#allocation11 + $0x70] sm:$0xf]
        %v4309 = vld [vmem:[#allocation11 + $0x74] sm:$0xf]
        %v4310 = vld [vmem:[#allocation11 + $0x78] sm:$0xf]
        %v4311 = vld [vmem:[#allocation11 + $0x7c] sm:$0xf]
        %v4312 = vld [vmem:[%s7] sm:$0x1]
        %v4314 = vperm.slane %v4312, 0
        %v4348 = vunpack.c.l.b16 %v4280
        %v4349 = vunpack.c.l.b16 %v4281
        %v4350 = vunpack.c.l.b16 %v4282
        %v4351 = vunpack.c.l.b16 %v4283
        %v4352 = vunpack.c.l.b16 %v4284
        %v4353 = vunpack.c.l.b16 %v4285
        %v4354 = vunpack.c.l.b16 %v4286
        %v4355 = vunpack.c.l.b16 %v4287
        %v4356 = vunpack.c.l.b16 %v4288
        %v4357 = vunpack.c.l.b16 %v4289
        %v4358 = vunpack.c.l.b16 %v4290
        %v4359 = vunpack.c.l.b16 %v4291
        %v4360 = vunpack.c.l.b16 %v4292
        %v4361 = vunpack.c.l.b16 %v4293
        %v4362 = vunpack.c.l.b16 %v4294
        %v4363 = vunpack.c.l.b16 %v4295
        %v4364 = vunpack.c.l.b16 %v4296
        %v4365 = vunpack.c.l.b16 %v4297
        %v4366 = vunpack.c.l.b16 %v4298
        %v4367 = vunpack.c.l.b16 %v4299
        %v4368 = vunpack.c.l.b16 %v4300
        %v4369 = vunpack.c.l.b16 %v4301
        %v4370 = vunpack.c.l.b16 %v4302
        %v4371 = vunpack.c.l.b16 %v4303
        %v4372 = vunpack.c.l.b16 %v4304
        %v4373 = vunpack.c.l.b16 %v4305
        %v4374 = vunpack.c.l.b16 %v4306
        %v4375 = vunpack.c.l.b16 %v4307
        %v4376 = vunpack.c.l.b16 %v4308
        %v4377 = vunpack.c.l.b16 %v4309
        %v4378 = vunpack.c.l.b16 %v4310
        %v4379 = vunpack.c.l.b16 %v4311
        %v4380 = vpack.c.b16 %v4349, %v4348
        %v4381 = vpack.c.b16 %v4351, %v4350
        %v4382 = vpack.c.b16 %v4353, %v4352
        %v4383 = vpack.c.b16 %v4355, %v4354
        %v4384 = vpack.c.b16 %v4357, %v4356
        %v4385 = vpack.c.b16 %v4359, %v4358
        %v4386 = vpack.c.b16 %v4361, %v4360
        %v4387 = vpack.c.b16 %v4363, %v4362
        %v4388 = vpack.c.b16 %v4365, %v4364
        %v4389 = vpack.c.b16 %v4367, %v4366
        %v4390 = vpack.c.b16 %v4369, %v4368
        %v4391 = vpack.c.b16 %v4371, %v4370
        %v4392 = vpack.c.b16 %v4373, %v4372
        %v4393 = vpack.c.b16 %v4375, %v4374
        %v4394 = vpack.c.b16 %v4377, %v4376
        %v4395 = vpack.c.b16 %v4379, %v4378
        %4412 = vmatpush.bf16.msra.mxu0 %v4387
        %4413 = vmatpush.bf16.msra.mxu0 %v4386
        %4414 = vmatpush.bf16.msra.mxu0 %v4385
        %4415 = vmatpush.bf16.msra.mxu0 %v4384
        %4416 = vmatpush.bf16.msra.mxu0 %v4383
        %4417 = vmatpush.bf16.msra.mxu0 %v4382
        %4418 = vmatpush.bf16.msra.mxu0 %v4381
        %4419 = vmatpush.bf16.msra.mxu0 %v4380
        %4420 = vmatmul.bf16.gmra.mxu0 %v4264
        %v4421 = vpop.f32.mrf.mxu0
        %v4422 = vadd.f32 %v4314, %v4421
        %v4423 = vpop.f32.mrf.mxu0
        %v4424 = vadd.f32 %v4314, %v4423
        %4425 = vmatmul.bf16.gmra.mxu0 %v4266
        %v4426 = vpop.f32.mrf.mxu0
        %v4427 = vadd.f32 %v4314, %v4426
        %v4428 = vpop.f32.mrf.mxu0
        %v4429 = vadd.f32 %v4314, %v4428
        %4430 = vmatmul.bf16.gmra.mxu0 %v4268
        %v4431 = vpop.f32.mrf.mxu0
        %v4432 = vadd.f32 %v4314, %v4431
        %v4433 = vpop.f32.mrf.mxu0
        %v4434 = vadd.f32 %v4314, %v4433
        %4435 = vmatmul.bf16.gmra.mxu0 %v4270
        %v4436 = vpop.f32.mrf.mxu0
        %v4437 = vadd.f32 %v4314, %v4436
        %v4438 = vpop.f32.mrf.mxu0
        %v4439 = vadd.f32 %v4314, %v4438
        %4440 = vmatmul.bf16.gmra.mxu0 %v4272
        %v4441 = vpop.f32.mrf.mxu0
        %v4442 = vadd.f32 %v4314, %v4441
        %v4443 = vpop.f32.mrf.mxu0
        %v4444 = vadd.f32 %v4314, %v4443
        %4445 = vmatmul.bf16.gmra.mxu0 %v4274
        %v4446 = vpop.f32.mrf.mxu0
        %v4447 = vadd.f32 %v4314, %v4446
        %v4448 = vpop.f32.mrf.mxu0
        %v4449 = vadd.f32 %v4314, %v4448
        %4450 = vmatmul.bf16.gmra.mxu0 %v4276
        %v4451 = vpop.f32.mrf.mxu0
        %v4452 = vadd.f32 %v4314, %v4451
        %v4453 = vpop.f32.mrf.mxu0
        %v4454 = vadd.f32 %v4314, %v4453
        %4455 = vmatmul.bf16.gmra.mxu0 %v4278
        %v4456 = vpop.f32.mrf.mxu0
        %v4457 = vadd.f32 %v4314, %v4456
        %v4458 = vpop.f32.mrf.mxu0
        %v4459 = vadd.f32 %v4314, %v4458
        %4460 = vdwg.mxu0
        %4461 = vmatpush.bf16.msra.mxu0 %v4395
        %4462 = vmatpush.bf16.msra.mxu0 %v4394
        %4463 = vmatpush.bf16.msra.mxu0 %v4393
        %4464 = vmatpush.bf16.msra.mxu0 %v4392
        %4465 = vmatpush.bf16.msra.mxu0 %v4391
        %4466 = vmatpush.bf16.msra.mxu0 %v4390
        %4467 = vmatpush.bf16.msra.mxu0 %v4389
        %4468 = vmatpush.bf16.msra.mxu0 %v4388
        %4469 = vmatmul.bf16.gmra.mxu0 %v4265
        %v4470 = vpop.f32.mrf.mxu0
        %v4471 = vadd.f32 %v4422, %v4470
        %v4472 = vpop.f32.mrf.mxu0
        %v4473 = vadd.f32 %v4424, %v4472
        %4474 = vmatmul.bf16.gmra.mxu0 %v4267
        %v4475 = vpop.f32.mrf.mxu0
        %v4476 = vadd.f32 %v4427, %v4475
        %v4477 = vpop.f32.mrf.mxu0
        %v4478 = vadd.f32 %v4429, %v4477
        %4479 = vmatmul.bf16.gmra.mxu0 %v4269
        %v4480 = vpop.f32.mrf.mxu0
        %v4481 = vadd.f32 %v4432, %v4480
        %v4482 = vpop.f32.mrf.mxu0
        %v4483 = vadd.f32 %v4434, %v4482
        %4484 = vmatmul.bf16.gmra.mxu0 %v4271
        %v4485 = vpop.f32.mrf.mxu0
        %v4486 = vadd.f32 %v4437, %v4485
        %v4487 = vpop.f32.mrf.mxu0
        %v4488 = vadd.f32 %v4439, %v4487
        %4489 = vmatmul.bf16.gmra.mxu0 %v4273
        %v4490 = vpop.f32.mrf.mxu0
        %v4491 = vadd.f32 %v4442, %v4490
        %v4492 = vpop.f32.mrf.mxu0
        %v4493 = vadd.f32 %v4444, %v4492
        %4494 = vmatmul.bf16.gmra.mxu0 %v4275
        %v4495 = vpop.f32.mrf.mxu0
        %v4496 = vadd.f32 %v4447, %v4495
        %v4497 = vpop.f32.mrf.mxu0
        %v4498 = vadd.f32 %v4449, %v4497
        %4499 = vmatmul.bf16.gmra.mxu0 %v4277
        %v4500 = vpop.f32.mrf.mxu0
        %v4501 = vadd.f32 %v4452, %v4500
        %v4502 = vpop.f32.mrf.mxu0
        %v4503 = vadd.f32 %v4454, %v4502
        %4504 = vmatmul.bf16.gmra.mxu0 %v4279
        %v4505 = vpop.f32.mrf.mxu0
        %v4506 = vadd.f32 %v4457, %v4505
        %v4507 = vpop.f32.mrf.mxu0
        %v4508 = vadd.f32 %v4459, %v4507
        %4509 = vdwg.mxu0
        %v4510 = vmax.f32 %v4471, 0.0
        %v4511 = vmax.f32 %v4473, 0.0
        %v4512 = vmax.f32 %v4476, 0.0
        %v4513 = vmax.f32 %v4478, 0.0
        %v4514 = vmax.f32 %v4481, 0.0
        %v4515 = vmax.f32 %v4483, 0.0
        %v4516 = vmax.f32 %v4486, 0.0
        %v4517 = vmax.f32 %v4488, 0.0
        %v4518 = vmax.f32 %v4491, 0.0
        %v4519 = vmax.f32 %v4493, 0.0
        %v4520 = vmax.f32 %v4496, 0.0
        %v4521 = vmax.f32 %v4498, 0.0
        %v4522 = vmax.f32 %v4501, 0.0
        %v4523 = vmax.f32 %v4503, 0.0
        %v4524 = vmax.f32 %v4506, 0.0
        %v4525 = vmax.f32 %v4508, 0.0
        %v4526 = vld [vmem:[%s8] sm:$0x1]
        %v4528 = vperm.slane %v4526, 0
        %v4530 = vmul.f32 %v4510, %v4528
        %v4531 = vmul.f32 %v4511, %v4528
        %v4532 = vmul.f32 %v4512, %v4528
        %v4533 = vmul.f32 %v4513, %v4528
        %v4534 = vmul.f32 %v4514, %v4528
        %v4535 = vmul.f32 %v4515, %v4528
        %v4536 = vmul.f32 %v4516, %v4528
        %v4537 = vmul.f32 %v4517, %v4528
        %v4538 = vmul.f32 %v4518, %v4528
        %v4539 = vmul.f32 %v4519, %v4528
        %v4540 = vmul.f32 %v4520, %v4528
        %v4541 = vmul.f32 %v4521, %v4528
        %v4542 = vmul.f32 %v4522, %v4528
        %v4543 = vmul.f32 %v4523, %v4528
        %v4544 = vmul.f32 %v4524, %v4528
        %v4545 = vmul.f32 %v4525, %v4528
        %4546 = vadd.xlane.f32.xlu0 %v4530
        %v4547 = vpop.xlane.xlu0 %4546
        %4548 = vadd.xlane.f32.xlu0 %v4531
        %v4549 = vpop.xlane.xlu0 %4548
        %4550 = vadd.xlane.f32.xlu0 %v4532
        %v4551 = vpop.xlane.xlu0 %4550
        %4552 = vadd.xlane.f32.xlu0 %v4533
        %v4553 = vpop.xlane.xlu0 %4552
        %4554 = vadd.xlane.f32.xlu0 %v4534
        %v4555 = vpop.xlane.xlu0 %4554
        %4556 = vadd.xlane.f32.xlu0 %v4535
        %v4557 = vpop.xlane.xlu0 %4556
        %4558 = vadd.xlane.f32.xlu0 %v4536
        %v4559 = vpop.xlane.xlu0 %4558
        %4560 = vadd.xlane.f32.xlu0 %v4537
        %v4561 = vpop.xlane.xlu0 %4560
        %4562 = vadd.xlane.f32.xlu0 %v4538
        %v4563 = vpop.xlane.xlu0 %4562
        %4564 = vadd.xlane.f32.xlu0 %v4539
        %v4565 = vpop.xlane.xlu0 %4564
        %4566 = vadd.xlane.f32.xlu0 %v4540
        %v4567 = vpop.xlane.xlu0 %4566
        %4568 = vadd.xlane.f32.xlu0 %v4541
        %v4569 = vpop.xlane.xlu0 %4568
        %4570 = vadd.xlane.f32.xlu0 %v4542
        %v4571 = vpop.xlane.xlu0 %4570
        %4572 = vadd.xlane.f32.xlu0 %v4543
        %v4573 = vpop.xlane.xlu0 %4572
        %4574 = vadd.xlane.f32.xlu0 %v4544
        %v4575 = vpop.xlane.xlu0 %4574
        %4576 = vadd.xlane.f32.xlu0 %v4545
        %v4577 = vpop.xlane.xlu0 %4576
        %v4578 = vld [vmem:[#allocation3] sm:$0x1]
        %v4580 = vperm.slane %v4578, 0
        %v4582 = vadd.f32 %v4547, %v4580
        %v4583 = vadd.f32 %v4549, %v4580
        %v4584 = vadd.f32 %v4551, %v4580
        %v4585 = vadd.f32 %v4553, %v4580
        %v4586 = vadd.f32 %v4555, %v4580
        %v4587 = vadd.f32 %v4557, %v4580
        %v4588 = vadd.f32 %v4559, %v4580
        %v4589 = vadd.f32 %v4561, %v4580
        %v4590 = vadd.f32 %v4563, %v4580
        %v4591 = vadd.f32 %v4565, %v4580
        %v4592 = vadd.f32 %v4567, %v4580
        %v4593 = vadd.f32 %v4569, %v4580
        %v4594 = vadd.f32 %v4571, %v4580
        %v4595 = vadd.f32 %v4573, %v4580
        %v4596 = vadd.f32 %v4575, %v4580
        %v4597 = vadd.f32 %v4577, %v4580
        %v4598 = vxor.u32 %v4582, 2147483648
        %v4599 = vxor.u32 %v4583, 2147483648
        %v4600 = vxor.u32 %v4584, 2147483648
        %v4601 = vxor.u32 %v4585, 2147483648
        %v4602 = vxor.u32 %v4586, 2147483648
        %v4603 = vxor.u32 %v4587, 2147483648
        %v4604 = vxor.u32 %v4588, 2147483648
        %v4605 = vxor.u32 %v4589, 2147483648
        %v4606 = vxor.u32 %v4590, 2147483648
        %v4607 = vxor.u32 %v4591, 2147483648
        %v4608 = vxor.u32 %v4592, 2147483648
        %v4609 = vxor.u32 %v4593, 2147483648
        %v4610 = vxor.u32 %v4594, 2147483648
        %v4611 = vxor.u32 %v4595, 2147483648
        %v4612 = vxor.u32 %v4596, 2147483648
        %v4613 = vxor.u32 %v4597, 2147483648
        %v4614 = vmul.f32 %v4598, 1.442695
        %v4615 = vpow.pop %v4614
        %v4616 = vmul.f32 %v4599, 1.442695
        %v4617 = vpow.pop %v4616
        %v4618 = vmul.f32 %v4600, 1.442695
        %v4619 = vpow.pop %v4618
        %v4620 = vmul.f32 %v4601, 1.442695
        %v4621 = vpow.pop %v4620
        %v4622 = vmul.f32 %v4602, 1.442695
        %v4623 = vpow.pop %v4622
        %v4624 = vmul.f32 %v4603, 1.442695
        %v4625 = vpow.pop %v4624
        %v4626 = vmul.f32 %v4604, 1.442695
        %v4627 = vpow.pop %v4626
        %v4628 = vmul.f32 %v4605, 1.442695
        %v4629 = vpow.pop %v4628
        %v4630 = vmul.f32 %v4606, 1.442695
        %v4631 = vpow.pop %v4630
        %v4632 = vmul.f32 %v4607, 1.442695
        %v4633 = vpow.pop %v4632
        %v4634 = vmul.f32 %v4608, 1.442695
        %v4635 = vpow.pop %v4634
        %v4636 = vmul.f32 %v4609, 1.442695
        %v4637 = vpow.pop %v4636
        %v4638 = vmul.f32 %v4610, 1.442695
        %v4639 = vpow.pop %v4638
        %v4640 = vmul.f32 %v4611, 1.442695
        %v4641 = vpow.pop %v4640
        %v4642 = vmul.f32 %v4612, 1.442695
        %v4643 = vpow.pop %v4642
        %v4644 = vmul.f32 %v4613, 1.442695
        %v4645 = vpow.pop %v4644
        %v4646 = vadd.f32 %v4615, 1.0
        %v4647 = vadd.f32 %v4617, 1.0
        %v4648 = vadd.f32 %v4619, 1.0
        %v4649 = vadd.f32 %v4621, 1.0
        %v4650 = vadd.f32 %v4623, 1.0
        %v4651 = vadd.f32 %v4625, 1.0
        %v4652 = vadd.f32 %v4627, 1.0
        %v4653 = vadd.f32 %v4629, 1.0
        %v4654 = vadd.f32 %v4631, 1.0
        %v4655 = vadd.f32 %v4633, 1.0
        %v4656 = vadd.f32 %v4635, 1.0
        %v4657 = vadd.f32 %v4637, 1.0
        %v4658 = vadd.f32 %v4639, 1.0
        %v4659 = vadd.f32 %v4641, 1.0
        %v4660 = vadd.f32 %v4643, 1.0
        %v4661 = vadd.f32 %v4645, 1.0
        %v4662 = vrcp.pop %v4646
        %v4663 = vmul.f32 %v4646, %v4662
        %v4664 = vsub.f32 1.0, %v4663
        %v4665 = vmul.f32 %v4662, %v4664
        %v4666 = vadd.f32 %v4662, %v4665
        %vm4667 = vweird.f32 %v4646
        %vm4668 = vweird.f32 %v4662
        %vm4669 = vmor %vm4667, %vm4668
        %v4670 = vsel %vm4669, %v4662, %v4666
        %v4671 = vand.u32 2147483647, %v4646
        %vm4672 = vcmp.eq.f32.partialorder %v4671, 8.507059e+37
        %v4673 = vand.u32 %v4646, 2147483648
        %v4674 = vor.u32 1.1754944e-38, %v4673
        %v4675 = vsel %vm4672, %v4674, %v4670
        %v4676 = vmul.f32 1.0, %v4675
        %v4677 = vrcp.pop %v4647
        %v4678 = vmul.f32 %v4647, %v4677
        %v4679 = vsub.f32 1.0, %v4678
        %v4680 = vmul.f32 %v4677, %v4679
        %v4681 = vadd.f32 %v4677, %v4680
        %vm4682 = vweird.f32 %v4647
        %vm4683 = vweird.f32 %v4677
        %vm4684 = vmor %vm4682, %vm4683
        %v4685 = vsel %vm4684, %v4677, %v4681
        %v4686 = vand.u32 2147483647, %v4647
        %vm4687 = vcmp.eq.f32.partialorder %v4686, 8.507059e+37
        %v4688 = vand.u32 %v4647, 2147483648
        %v4689 = vor.u32 1.1754944e-38, %v4688
        %v4690 = vsel %vm4687, %v4689, %v4685
        %v4691 = vmul.f32 1.0, %v4690
        %v4692 = vrcp.pop %v4648
        %v4693 = vmul.f32 %v4648, %v4692
        %v4694 = vsub.f32 1.0, %v4693
        %v4695 = vmul.f32 %v4692, %v4694
        %v4696 = vadd.f32 %v4692, %v4695
        %vm4697 = vweird.f32 %v4648
        %vm4698 = vweird.f32 %v4692
        %vm4699 = vmor %vm4697, %vm4698
        %v4700 = vsel %vm4699, %v4692, %v4696
        %v4701 = vand.u32 2147483647, %v4648
        %vm4702 = vcmp.eq.f32.partialorder %v4701, 8.507059e+37
        %v4703 = vand.u32 %v4648, 2147483648
        %v4704 = vor.u32 1.1754944e-38, %v4703
        %v4705 = vsel %vm4702, %v4704, %v4700
        %v4706 = vmul.f32 1.0, %v4705
        %v4707 = vrcp.pop %v4649
        %v4708 = vmul.f32 %v4649, %v4707
        %v4709 = vsub.f32 1.0, %v4708
        %v4710 = vmul.f32 %v4707, %v4709
        %v4711 = vadd.f32 %v4707, %v4710
        %vm4712 = vweird.f32 %v4649
        %vm4713 = vweird.f32 %v4707
        %vm4714 = vmor %vm4712, %vm4713
        %v4715 = vsel %vm4714, %v4707, %v4711
        %v4716 = vand.u32 2147483647, %v4649
        %vm4717 = vcmp.eq.f32.partialorder %v4716, 8.507059e+37
        %v4718 = vand.u32 %v4649, 2147483648
        %v4719 = vor.u32 1.1754944e-38, %v4718
        %v4720 = vsel %vm4717, %v4719, %v4715
        %v4721 = vmul.f32 1.0, %v4720
        %v4722 = vrcp.pop %v4650
        %v4723 = vmul.f32 %v4650, %v4722
        %v4724 = vsub.f32 1.0, %v4723
        %v4725 = vmul.f32 %v4722, %v4724
        %v4726 = vadd.f32 %v4722, %v4725
        %vm4727 = vweird.f32 %v4650
        %vm4728 = vweird.f32 %v4722
        %vm4729 = vmor %vm4727, %vm4728
        %v4730 = vsel %vm4729, %v4722, %v4726
        %v4731 = vand.u32 2147483647, %v4650
        %vm4732 = vcmp.eq.f32.partialorder %v4731, 8.507059e+37
        %v4733 = vand.u32 %v4650, 2147483648
        %v4734 = vor.u32 1.1754944e-38, %v4733
        %v4735 = vsel %vm4732, %v4734, %v4730
        %v4736 = vmul.f32 1.0, %v4735
        %v4737 = vrcp.pop %v4651
        %v4738 = vmul.f32 %v4651, %v4737
        %v4739 = vsub.f32 1.0, %v4738
        %v4740 = vmul.f32 %v4737, %v4739
        %v4741 = vadd.f32 %v4737, %v4740
        %vm4742 = vweird.f32 %v4651
        %vm4743 = vweird.f32 %v4737
        %vm4744 = vmor %vm4742, %vm4743
        %v4745 = vsel %vm4744, %v4737, %v4741
        %v4746 = vand.u32 2147483647, %v4651
        %vm4747 = vcmp.eq.f32.partialorder %v4746, 8.507059e+37
        %v4748 = vand.u32 %v4651, 2147483648
        %v4749 = vor.u32 1.1754944e-38, %v4748
        %v4750 = vsel %vm4747, %v4749, %v4745
        %v4751 = vmul.f32 1.0, %v4750
        %v4752 = vrcp.pop %v4652
        %v4753 = vmul.f32 %v4652, %v4752
        %v4754 = vsub.f32 1.0, %v4753
        %v4755 = vmul.f32 %v4752, %v4754
        %v4756 = vadd.f32 %v4752, %v4755
        %vm4757 = vweird.f32 %v4652
        %vm4758 = vweird.f32 %v4752
        %vm4759 = vmor %vm4757, %vm4758
        %v4760 = vsel %vm4759, %v4752, %v4756
        %v4761 = vand.u32 2147483647, %v4652
        %vm4762 = vcmp.eq.f32.partialorder %v4761, 8.507059e+37
        %v4763 = vand.u32 %v4652, 2147483648
        %v4764 = vor.u32 1.1754944e-38, %v4763
        %v4765 = vsel %vm4762, %v4764, %v4760
        %v4766 = vmul.f32 1.0, %v4765
        %v4767 = vrcp.pop %v4653
        %v4768 = vmul.f32 %v4653, %v4767
        %v4769 = vsub.f32 1.0, %v4768
        %v4770 = vmul.f32 %v4767, %v4769
        %v4771 = vadd.f32 %v4767, %v4770
        %vm4772 = vweird.f32 %v4653
        %vm4773 = vweird.f32 %v4767
        %vm4774 = vmor %vm4772, %vm4773
        %v4775 = vsel %vm4774, %v4767, %v4771
        %v4776 = vand.u32 2147483647, %v4653
        %vm4777 = vcmp.eq.f32.partialorder %v4776, 8.507059e+37
        %v4778 = vand.u32 %v4653, 2147483648
        %v4779 = vor.u32 1.1754944e-38, %v4778
        %v4780 = vsel %vm4777, %v4779, %v4775
        %v4781 = vmul.f32 1.0, %v4780
        %v4782 = vrcp.pop %v4654
        %v4783 = vmul.f32 %v4654, %v4782
        %v4784 = vsub.f32 1.0, %v4783
        %v4785 = vmul.f32 %v4782, %v4784
        %v4786 = vadd.f32 %v4782, %v4785
        %vm4787 = vweird.f32 %v4654
        %vm4788 = vweird.f32 %v4782
        %vm4789 = vmor %vm4787, %vm4788
        %v4790 = vsel %vm4789, %v4782, %v4786
        %v4791 = vand.u32 2147483647, %v4654
        %vm4792 = vcmp.eq.f32.partialorder %v4791, 8.507059e+37
        %v4793 = vand.u32 %v4654, 2147483648
        %v4794 = vor.u32 1.1754944e-38, %v4793
        %v4795 = vsel %vm4792, %v4794, %v4790
        %v4796 = vmul.f32 1.0, %v4795
        %v4797 = vrcp.pop %v4655
        %v4798 = vmul.f32 %v4655, %v4797
        %v4799 = vsub.f32 1.0, %v4798
        %v4800 = vmul.f32 %v4797, %v4799
        %v4801 = vadd.f32 %v4797, %v4800
        %vm4802 = vweird.f32 %v4655
        %vm4803 = vweird.f32 %v4797
        %vm4804 = vmor %vm4802, %vm4803
        %v4805 = vsel %vm4804, %v4797, %v4801
        %v4806 = vand.u32 2147483647, %v4655
        %vm4807 = vcmp.eq.f32.partialorder %v4806, 8.507059e+37
        %v4808 = vand.u32 %v4655, 2147483648
        %v4809 = vor.u32 1.1754944e-38, %v4808
        %v4810 = vsel %vm4807, %v4809, %v4805
        %v4811 = vmul.f32 1.0, %v4810
        %v4812 = vrcp.pop %v4656
        %v4813 = vmul.f32 %v4656, %v4812
        %v4814 = vsub.f32 1.0, %v4813
        %v4815 = vmul.f32 %v4812, %v4814
        %v4816 = vadd.f32 %v4812, %v4815
        %vm4817 = vweird.f32 %v4656
        %vm4818 = vweird.f32 %v4812
        %vm4819 = vmor %vm4817, %vm4818
        %v4820 = vsel %vm4819, %v4812, %v4816
        %v4821 = vand.u32 2147483647, %v4656
        %vm4822 = vcmp.eq.f32.partialorder %v4821, 8.507059e+37
        %v4823 = vand.u32 %v4656, 2147483648
        %v4824 = vor.u32 1.1754944e-38, %v4823
        %v4825 = vsel %vm4822, %v4824, %v4820
        %v4826 = vmul.f32 1.0, %v4825
        %v4827 = vrcp.pop %v4657
        %v4828 = vmul.f32 %v4657, %v4827
        %v4829 = vsub.f32 1.0, %v4828
        %v4830 = vmul.f32 %v4827, %v4829
        %v4831 = vadd.f32 %v4827, %v4830
        %vm4832 = vweird.f32 %v4657
        %vm4833 = vweird.f32 %v4827
        %vm4834 = vmor %vm4832, %vm4833
        %v4835 = vsel %vm4834, %v4827, %v4831
        %v4836 = vand.u32 2147483647, %v4657
        %vm4837 = vcmp.eq.f32.partialorder %v4836, 8.507059e+37
        %v4838 = vand.u32 %v4657, 2147483648
        %v4839 = vor.u32 1.1754944e-38, %v4838
        %v4840 = vsel %vm4837, %v4839, %v4835
        %v4841 = vmul.f32 1.0, %v4840
        %v4842 = vrcp.pop %v4658
        %v4843 = vmul.f32 %v4658, %v4842
        %v4844 = vsub.f32 1.0, %v4843
        %v4845 = vmul.f32 %v4842, %v4844
        %v4846 = vadd.f32 %v4842, %v4845
        %vm4847 = vweird.f32 %v4658
        %vm4848 = vweird.f32 %v4842
        %vm4849 = vmor %vm4847, %vm4848
        %v4850 = vsel %vm4849, %v4842, %v4846
        %v4851 = vand.u32 2147483647, %v4658
        %vm4852 = vcmp.eq.f32.partialorder %v4851, 8.507059e+37
        %v4853 = vand.u32 %v4658, 2147483648
        %v4854 = vor.u32 1.1754944e-38, %v4853
        %v4855 = vsel %vm4852, %v4854, %v4850
        %v4856 = vmul.f32 1.0, %v4855
        %v4857 = vrcp.pop %v4659
        %v4858 = vmul.f32 %v4659, %v4857
        %v4859 = vsub.f32 1.0, %v4858
        %v4860 = vmul.f32 %v4857, %v4859
        %v4861 = vadd.f32 %v4857, %v4860
        %vm4862 = vweird.f32 %v4659
        %vm4863 = vweird.f32 %v4857
        %vm4864 = vmor %vm4862, %vm4863
        %v4865 = vsel %vm4864, %v4857, %v4861
        %v4866 = vand.u32 2147483647, %v4659
        %vm4867 = vcmp.eq.f32.partialorder %v4866, 8.507059e+37
        %v4868 = vand.u32 %v4659, 2147483648
        %v4869 = vor.u32 1.1754944e-38, %v4868
        %v4870 = vsel %vm4867, %v4869, %v4865
        %v4871 = vmul.f32 1.0, %v4870
        %v4872 = vrcp.pop %v4660
        %v4873 = vmul.f32 %v4660, %v4872
        %v4874 = vsub.f32 1.0, %v4873
        %v4875 = vmul.f32 %v4872, %v4874
        %v4876 = vadd.f32 %v4872, %v4875
        %vm4877 = vweird.f32 %v4660
        %vm4878 = vweird.f32 %v4872
        %vm4879 = vmor %vm4877, %vm4878
        %v4880 = vsel %vm4879, %v4872, %v4876
        %v4881 = vand.u32 2147483647, %v4660
        %vm4882 = vcmp.eq.f32.partialorder %v4881, 8.507059e+37
        %v4883 = vand.u32 %v4660, 2147483648
        %v4884 = vor.u32 1.1754944e-38, %v4883
        %v4885 = vsel %vm4882, %v4884, %v4880
        %v4886 = vmul.f32 1.0, %v4885
        %v4887 = vrcp.pop %v4661
        %v4888 = vmul.f32 %v4661, %v4887
        %v4889 = vsub.f32 1.0, %v4888
        %v4890 = vmul.f32 %v4887, %v4889
        %v4891 = vadd.f32 %v4887, %v4890
        %vm4892 = vweird.f32 %v4661
        %vm4893 = vweird.f32 %v4887
        %vm4894 = vmor %vm4892, %vm4893
        %v4895 = vsel %vm4894, %v4887, %v4891
        %v4896 = vand.u32 2147483647, %v4661
        %vm4897 = vcmp.eq.f32.partialorder %v4896, 8.507059e+37
        %v4898 = vand.u32 %v4661, 2147483648
        %v4899 = vor.u32 1.1754944e-38, %v4898
        %v4900 = vsel %vm4897, %v4899, %v4895
        %v4901 = vmul.f32 1.0, %v4900
        %vm4902 = vcmask 7168
        %4903 = vst.msk [vmem:[%s486] sm:$0xff] %vm4902, %v4676
        %4904 = vst.msk [vmem:[%s486 + $0x8] sm:$0xff] %vm4902, %v4691
        %4905 = vst.msk [vmem:[%s486 + $0x10] sm:$0xff] %vm4902, %v4706
        %4906 = vst.msk [vmem:[%s486 + $0x18] sm:$0xff] %vm4902, %v4721
        %4907 = vst.msk [vmem:[%s486 + $0x20] sm:$0xff] %vm4902, %v4736
        %4908 = vst.msk [vmem:[%s486 + $0x28] sm:$0xff] %vm4902, %v4751
        %4909 = vst.msk [vmem:[%s486 + $0x30] sm:$0xff] %vm4902, %v4766
        %4910 = vst.msk [vmem:[%s486 + $0x38] sm:$0xff] %vm4902, %v4781
        %4911 = vst.msk [vmem:[%s486 + $0x40] sm:$0xff] %vm4902, %v4796
        %4912 = vst.msk [vmem:[%s486 + $0x48] sm:$0xff] %vm4902, %v4811
        %4913 = vst.msk [vmem:[%s486 + $0x50] sm:$0xff] %vm4902, %v4826
        %4914 = vst.msk [vmem:[%s486 + $0x58] sm:$0xff] %vm4902, %v4841
        %4915 = vst.msk [vmem:[%s486 + $0x60] sm:$0xff] %vm4902, %v4856
        %4916 = vst.msk [vmem:[%s486 + $0x68] sm:$0xff] %vm4902, %v4871
        %4917 = vst.msk [vmem:[%s486 + $0x70] sm:$0xff] %vm4902, %v4886
        %4918 = vst.msk [vmem:[%s486 + $0x78] sm:$0xff] %vm4902, %v4901
        %s4919 = sand.u32 %s258, 1
        %s4920 = sand.u32 %s258, 1
        %s4921 = smul.addr %s4920, 128
        %s4922 = scalar_lea.vmem [#allocation12], %s4921
        // Predicated region
        $region81: #{tpu_custom_call.1} parent=59 // pred_check
          %p4923 = pneg %p268
        $region82: #{tpu_custom_call.1} parent=59 // pred_check_branch
          %4925 = sbr.rel (%p4923) target = $region84
        $region83: #{tpu_custom_call.1} parent=59 // pred_region
          %s4926 = smul.u32 16, %s30
          %s4927 = ssub.s32 25, %s4926
          %p4928 = scmp.lt.s32.totalorder %s4927, 16
          %s4929 = scalar_select %p4928, %s4927, 16
          %s4930 = smul.u32 8, %s4929
          %p4931 = scmp.ne.s32.totalorder 0, %s4930
          %s4932 = smul.addr %s4926, 8
          %s4933 = scalar_lea.vmem %s10, %s4932
          // Predicated region
          $region85: #{tpu_custom_call.1} parent=83 // pred_check
            %p4934 = pneg %p4931
          $region86: #{tpu_custom_call.1} parent=83 // pred_check_branch
            %4936 = sbr.rel (%p4934) target = $region88
          $region87: #{tpu_custom_call.1} parent=83 // pred_region
            // Predicated region
            $region89: #{tpu_custom_call.1} parent=87 // pred_check
              _
            $region90: #{tpu_custom_call.1} parent=87 // pred_check_branch
              %4938 = sbr.rel (0) target = $region92
            $region91: #{tpu_custom_call.1} parent=87 // pred_region
              // Predicated region
              $region111: #{tpu_custom_call.1} parent=91 // pred_check
                _
              $region112: #{tpu_custom_call.1} parent=91 // pred_check_branch
                %5018 = sbr.rel (0) target = $region114
              $region113: #{tpu_custom_call.1} parent=91 // pred_region
                %s5019 = sshrl.u32 %s4929, 4
                // While loop
                $region115: #{tpu_custom_call.1} parent=113 // loop_pre_header
                  _
                $region116: #{tpu_custom_call.1} parent=113 // loop_header
                  %s5021 = sphi 0, %s5023
                  %p5022 = scmp.ge.s32.totalorder %s5021, %s5019
                  %s5026 = sphi 0, %s5063
                  %s5027 = sphi %s4922, %s5066
                  %s5028 = sphi %s4933, %s5067
                $region117: #{tpu_custom_call.1} parent=113 // loop_header_branch
                  %5025 = sbr.rel (%p5022) target = $region121
                $region118: #{tpu_custom_call.1} parent=113 // loop_body
                  %v5029 = vld [vmem:[%s5027] sm:$0xff]
                  %5030 = vst [vmem:[%s5028] sm:$0xff] %v5029
                  %v5031 = vld [vmem:[%s5027 + $0x8] sm:$0xff]
                  %5032 = vst [vmem:[%s5028 + $0x8] sm:$0xff] %v5031
                  %v5033 = vld [vmem:[%s5027 + $0x10] sm:$0xff]
                  %5034 = vst [vmem:[%s5028 + $0x10] sm:$0xff] %v5033
                  %v5035 = vld [vmem:[%s5027 + $0x18] sm:$0xff]
                  %5036 = vst [vmem:[%s5028 + $0x18] sm:$0xff] %v5035
                  %v5037 = vld [vmem:[%s5027 + $0x20] sm:$0xff]
                  %5038 = vst [vmem:[%s5028 + $0x20] sm:$0xff] %v5037
                  %v5039 = vld [vmem:[%s5027 + $0x28] sm:$0xff]
                  %5040 = vst [vmem:[%s5028 + $0x28] sm:$0xff] %v5039
                  %v5041 = vld [vmem:[%s5027 + $0x30] sm:$0xff]
                  %5042 = vst [vmem:[%s5028 + $0x30] sm:$0xff] %v5041
                  %v5043 = vld [vmem:[%s5027 + $0x38] sm:$0xff]
                  %5044 = vst [vmem:[%s5028 + $0x38] sm:$0xff] %v5043
                  %v5045 = vld [vmem:[%s5027 + $0x40] sm:$0xff]
                  %5046 = vst [vmem:[%s5028 + $0x40] sm:$0xff] %v5045
                  %v5047 = vld [vmem:[%s5027 + $0x48] sm:$0xff]
                  %5048 = vst [vmem:[%s5028 + $0x48] sm:$0xff] %v5047
                  %v5049 = vld [vmem:[%s5027 + $0x50] sm:$0xff]
                  %5050 = vst [vmem:[%s5028 + $0x50] sm:$0xff] %v5049
                  %v5051 = vld [vmem:[%s5027 + $0x58] sm:$0xff]
                  %5052 = vst [vmem:[%s5028 + $0x58] sm:$0xff] %v5051
                  %v5053 = vld [vmem:[%s5027 + $0x60] sm:$0xff]
                  %5054 = vst [vmem:[%s5028 + $0x60] sm:$0xff] %v5053
                  %v5055 = vld [vmem:[%s5027 + $0x68] sm:$0xff]
                  %5056 = vst [vmem:[%s5028 + $0x68] sm:$0xff] %v5055
                  %v5057 = vld [vmem:[%s5027 + $0x70] sm:$0xff]
                  %5058 = vst [vmem:[%s5028 + $0x70] sm:$0xff] %v5057
                  %v5059 = vld [vmem:[%s5027 + $0x78] sm:$0xff]
                  %5060 = vst [vmem:[%s5028 + $0x78] sm:$0xff] %v5059
                  %s5061 = sadd.s32 1, %s5026
                  %p5062 = scmp.ge.s32.totalorder %s5061, %s5019
                  %s5063 = scalar_select %p5062, 0, %s5061
                  %s5064 = smul.u32 %s5063, 128
                  %s5065 = smul.u32 %s5063, 128
                  %s5066 = scalar_lea.vmem %s4922, %s5064 [#allocation12]
                  %s5067 = scalar_lea.vmem %s4933, %s5065
                $region119: #{tpu_custom_call.1} parent=113 // loop_footer
                  %s5023 = sadd.s32 %s5021, 1
                $region120: #{tpu_custom_call.1} parent=113 // loop_footer_branch
                  %5020 = sbr.rel target = $region116
                $region121: #{tpu_custom_call.1} parent=113 // loop_exit
                  _
                %s5068 = sshrl.u32 %s4929, 4
                %s5069 = sand.u32 %s4929, 15
                %s5070 = smul.u32 %s5068, 16
                %s5071 = smul.u32 8, %s5070
                %s5072 = scalar_lea.vmem %s4922, %s5071 [#allocation12]
                %s5073 = smul.u32 8, %s5070
                %s5074 = scalar_lea.vmem %s4933, %s5073
                // While loop
                $region122: #{tpu_custom_call.1} parent=113 // loop_pre_header
                  _
                $region123: #{tpu_custom_call.1} parent=113 // loop_header
                  %s5076 = sphi 0, %s5078
                  %p5077 = scmp.ge.s32.totalorder %s5076, %s5069
                  %s5081 = sphi 0, %s5088
                  %s5082 = sphi %s5072, %s5091
                  %s5083 = sphi %s5074, %s5092
                $region124: #{tpu_custom_call.1} parent=113 // loop_header_branch
                  %5080 = sbr.rel (%p5077) target = $region128
                $region125: #{tpu_custom_call.1} parent=113 // loop_body
                  %v5084 = vld [vmem:[%s5082] sm:$0xff]
                  %5085 = vst [vmem:[%s5083] sm:$0xff] %v5084
                  %s5086 = sadd.s32 1, %s5081
                  %p5087 = scmp.ge.s32.totalorder %s5086, %s5069
                  %s5088 = scalar_select %p5087, 0, %s5086
                  %s5089 = smul.u32 %s5088, 8
                  %s5090 = smul.u32 %s5088, 8
                  %s5091 = scalar_lea.vmem %s5072, %s5089 [#allocation12]
                  %s5092 = scalar_lea.vmem %s5074, %s5090
                $region126: #{tpu_custom_call.1} parent=113 // loop_footer
                  %s5078 = sadd.s32 %s5076, 1
                $region127: #{tpu_custom_call.1} parent=113 // loop_footer_branch
                  %5075 = sbr.rel target = $region123
                $region128: #{tpu_custom_call.1} parent=113 // loop_exit
                  _
              $region114: #{tpu_custom_call.1} parent=91 // pred_fallthru
                _
              // Predicated region
              $region129: #{tpu_custom_call.1} parent=91 // pred_check
                _
              $region130: #{tpu_custom_call.1} parent=91 // pred_check_branch
                %5094 = sbr.rel target = $region132
              $region131: #{tpu_custom_call.1} parent=91 // pred_region
                _
              $region132: #{tpu_custom_call.1} parent=91 // pred_fallthru
                _
            $region92: #{tpu_custom_call.1} parent=87 // pred_fallthru
              _
            // Predicated region
            $region93: #{tpu_custom_call.1} parent=87 // pred_check
              _
            $region94: #{tpu_custom_call.1} parent=87 // pred_check_branch
              %4940 = sbr.rel target = $region96
            $region95: #{tpu_custom_call.1} parent=87 // pred_region
              %s4942 = ssub.s32 256, 1
              %s4943 = sshrl.u32 %s4929, 4
              // While loop
              $region97: #{tpu_custom_call.1} parent=95 // loop_pre_header
                _
              $region98: #{tpu_custom_call.1} parent=95 // loop_header
                %s4945 = sphi 0, %s4947
                %p4946 = scmp.ge.s32.totalorder %s4945, %s4943
                %s4950 = sphi 0, %s4987
                %s4951 = sphi %s4922, %s4990
                %s4952 = sphi %s4933, %s4991
              $region99: #{tpu_custom_call.1} parent=95 // loop_header_branch
                %4949 = sbr.rel (%p4946) target = $region103
              $region100: #{tpu_custom_call.1} parent=95 // loop_body
                %v4953 = vld [vmem:[%s4951] sm:%s4942]
                %4954 = vst [vmem:[%s4952] sm:%s4942] %v4953
                %v4955 = vld [vmem:[%s4951 + $0x8] sm:%s4942]
                %4956 = vst [vmem:[%s4952 + $0x8] sm:%s4942] %v4955
                %v4957 = vld [vmem:[%s4951 + $0x10] sm:%s4942]
                %4958 = vst [vmem:[%s4952 + $0x10] sm:%s4942] %v4957
                %v4959 = vld [vmem:[%s4951 + $0x18] sm:%s4942]
                %4960 = vst [vmem:[%s4952 + $0x18] sm:%s4942] %v4959
                %v4961 = vld [vmem:[%s4951 + $0x20] sm:%s4942]
                %4962 = vst [vmem:[%s4952 + $0x20] sm:%s4942] %v4961
                %v4963 = vld [vmem:[%s4951 + $0x28] sm:%s4942]
                %4964 = vst [vmem:[%s4952 + $0x28] sm:%s4942] %v4963
                %v4965 = vld [vmem:[%s4951 + $0x30] sm:%s4942]
                %4966 = vst [vmem:[%s4952 + $0x30] sm:%s4942] %v4965
                %v4967 = vld [vmem:[%s4951 + $0x38] sm:%s4942]
                %4968 = vst [vmem:[%s4952 + $0x38] sm:%s4942] %v4967
                %v4969 = vld [vmem:[%s4951 + $0x40] sm:%s4942]
                %4970 = vst [vmem:[%s4952 + $0x40] sm:%s4942] %v4969
                %v4971 = vld [vmem:[%s4951 + $0x48] sm:%s4942]
                %4972 = vst [vmem:[%s4952 + $0x48] sm:%s4942] %v4971
                %v4973 = vld [vmem:[%s4951 + $0x50] sm:%s4942]
                %4974 = vst [vmem:[%s4952 + $0x50] sm:%s4942] %v4973
                %v4975 = vld [vmem:[%s4951 + $0x58] sm:%s4942]
                %4976 = vst [vmem:[%s4952 + $0x58] sm:%s4942] %v4975
                %v4977 = vld [vmem:[%s4951 + $0x60] sm:%s4942]
                %4978 = vst [vmem:[%s4952 + $0x60] sm:%s4942] %v4977
                %v4979 = vld [vmem:[%s4951 + $0x68] sm:%s4942]
                %4980 = vst [vmem:[%s4952 + $0x68] sm:%s4942] %v4979
                %v4981 = vld [vmem:[%s4951 + $0x70] sm:%s4942]
                %4982 = vst [vmem:[%s4952 + $0x70] sm:%s4942] %v4981
                %v4983 = vld [vmem:[%s4951 + $0x78] sm:%s4942]
                %4984 = vst [vmem:[%s4952 + $0x78] sm:%s4942] %v4983
                %s4985 = sadd.s32 1, %s4950
                %p4986 = scmp.ge.s32.totalorder %s4985, %s4943
                %s4987 = scalar_select %p4986, 0, %s4985
                %s4988 = smul.u32 %s4987, 128
                %s4989 = smul.u32 %s4987, 128
                %s4990 = scalar_lea.vmem %s4922, %s4988 [#allocation12]
                %s4991 = scalar_lea.vmem %s4933, %s4989
              $region101: #{tpu_custom_call.1} parent=95 // loop_footer
                %s4947 = sadd.s32 %s4945, 1
              $region102: #{tpu_custom_call.1} parent=95 // loop_footer_branch
                %4944 = sbr.rel target = $region98
              $region103: #{tpu_custom_call.1} parent=95 // loop_exit
                _
              %s4992 = sshrl.u32 %s4929, 4
              %s4993 = sand.u32 %s4929, 15
              %s4994 = smul.u32 %s4992, 16
              %s4995 = smul.u32 8, %s4994
              %s4996 = scalar_lea.vmem %s4922, %s4995 [#allocation12]
              %s4997 = smul.u32 8, %s4994
              %s4998 = scalar_lea.vmem %s4933, %s4997
              // While loop
              $region104: #{tpu_custom_call.1} parent=95 // loop_pre_header
                _
              $region105: #{tpu_custom_call.1} parent=95 // loop_header
                %s5000 = sphi 0, %s5002
                %p5001 = scmp.ge.s32.totalorder %s5000, %s4993
                %s5005 = sphi 0, %s5012
                %s5006 = sphi %s4996, %s5015
                %s5007 = sphi %s4998, %s5016
              $region106: #{tpu_custom_call.1} parent=95 // loop_header_branch
                %5004 = sbr.rel (%p5001) target = $region110
              $region107: #{tpu_custom_call.1} parent=95 // loop_body
                %v5008 = vld [vmem:[%s5006] sm:%s4942]
                %5009 = vst [vmem:[%s5007] sm:%s4942] %v5008
                %s5010 = sadd.s32 1, %s5005
                %p5011 = scmp.ge.s32.totalorder %s5010, %s4993
                %s5012 = scalar_select %p5011, 0, %s5010
                %s5013 = smul.u32 %s5012, 8
                %s5014 = smul.u32 %s5012, 8
                %s5015 = scalar_lea.vmem %s4996, %s5013 [#allocation12]
                %s5016 = scalar_lea.vmem %s4998, %s5014
              $region108: #{tpu_custom_call.1} parent=95 // loop_footer
                %s5002 = sadd.s32 %s5000, 1
              $region109: #{tpu_custom_call.1} parent=95 // loop_footer_branch
                %4999 = sbr.rel target = $region105
              $region110: #{tpu_custom_call.1} parent=95 // loop_exit
                _
            $region96: #{tpu_custom_call.1} parent=87 // pred_fallthru
              _
          $region88: #{tpu_custom_call.1} parent=83 // pred_fallthru
            _
          %5095 = vnop
        $region84: #{tpu_custom_call.1} parent=59 // pred_fallthru
          _
      $region60: #{tpu_custom_call.1} parent=5 // pred_fallthru
        _
      %p5096 = scmp.le.s32.totalorder 2, %s25
      // Predicated region
      $region133: #{tpu_custom_call.1} parent=5 // pred_check
        %p5097 = pneg %p5096
      $region134: #{tpu_custom_call.1} parent=5 // pred_check_branch
        %5099 = sbr.rel (%p5097) target = $region136
      $region135: #{tpu_custom_call.1} parent=5 // pred_region
        %s5100 = ssub.s32 %s25, 2
        // Predicated region
        $region137: #{tpu_custom_call.1} parent=135 // pred_check
          %p5101 = pneg %p274
        $region138: #{tpu_custom_call.1} parent=135 // pred_check_branch
          %5103 = sbr.rel (%p5101) target = $region140
        $region139: #{tpu_custom_call.1} parent=135 // pred_region
          %s5104 = sand.u32 %s259, 1
          %s5105 = sand.u32 %s259, 1
          %s5106 = smul.addr %s5105, 128
          %s5107 = scalar_lea.vmem [#allocation12], %s5106
        $region140: #{tpu_custom_call.1} parent=135 // pred_fallthru
          _
      $region136: #{tpu_custom_call.1} parent=5 // pred_fallthru
        _
    $region6: #{tpu_custom_call.1} parent=1 // loop_footer
      %s29 = sadd.s32 1, %s25
    $region7: #{tpu_custom_call.1} parent=1 // loop_footer_branch
      %24 = sbr.rel target = $region3
    $region8: #{tpu_custom_call.1} parent=1 // loop_exit
      _
    %5108 = vsyncpa [#allocation5], 1
    %s5109 = scalar_lea.sflag [#allocation5], 1
    %5110 = vsyncpa %s5109, 1
    %5111 = vsyncpa [#allocation7], 1
    %s5112 = scalar_lea.sflag [#allocation7], 1
    %5113 = vsyncpa %s5112, 1
    %5114 = vsyncpa [#allocation10], 1

</llo_original>
